<compile_context>
chip_gen: v6e
topology: v6e:2x2x1
jax: 0.10.0
libtpu: 0.0.40
codegen_flags: <defaults>
</compile_context>

<pallas_src>
import functools

import jax
import jax.numpy as jnp
from jax.experimental import pallas as pl
from jax.experimental.pallas import tpu as pltpu

NEG_SLOPE = 0.2  # HANConv default negative_slope


def _round_up(n, m=8):
    return ((n + m - 1) // m) * m


# ------------------------- fused 2-layer HAN kernel --------------------------

def _han_fused_kernel(*refs, node_types, edge_types, heads, dim, hidden,
                      num_layers, n_real, n_pad, n_max):
    """All HANConv layers fused: wide projection -> edge attention -> group
    attention, looped over layers with everything resident in VMEM.

    Ref order:
      x[nt]*                              (bf16, padded)
      adj[et]*                            (bf16 {0,1}, padded dense)
      per layer: w_wide[nt]*, b_wide[nt]*, k_w, k_b, q
      out                                 (f32 packed slab, (n_max, n_nt*hidden))
    """
    f32 = jnp.float32
    bf16 = jnp.bfloat16
    n_nt = len(node_types)
    n_et = len(edge_types)

    i = 0
    x_refs = refs[i:i + n_nt]; i += n_nt
    adj_refs = refs[i:i + n_et]; i += n_et
    layer_refs = []
    for _ in range(num_layers):
        w_refs = refs[i:i + n_nt]; i += n_nt
        b_refs = refs[i:i + n_nt]; i += n_nt
        kw_ref, kb_ref, q_ref = refs[i], refs[i + 1], refs[i + 2]; i += 3
        layer_refs.append((w_refs, b_refs, kw_ref, kb_ref, q_ref))
    out_ref = refs[i]

    # --- adjacency loaded ONCE, shared by every layer (fused-layer win) ---
    adj_mask = {}
    has_edge = {}
    for e, et in enumerate(edge_types):
        a = adj_refs[e][...].astype(f32)                  # (Nd, Ns) {0,1}
        adj_mask[et] = a > 0.0                            # hoisted, head-invariant
        deg = jnp.sum(a, axis=1, keepdims=True)           # (Nd, 1)
        has_edge[et] = (deg > 0.0).astype(f32)            # zero-degree indicator

    x_cur = {nt: x_refs[t][...].astype(bf16) for t, nt in enumerate(node_types)}
    x_last = None

    for l in range(num_layers):
        w_refs, b_refs, kw_ref, kb_ref, q_ref = layer_refs[l]

        # ---- 1) wide projection: features + every alpha column, 1 matmul/type
        wide = {}
        for t, nt in enumerate(node_types):
            wide[nt] = (jnp.dot(x_cur[nt], w_refs[t][...],
                                preferred_element_type=f32)
                        + b_refs[t][...])                  # (N, hidden + 2*n_et*H)
        x_node = {nt: wide[nt][:, :hidden] for nt in node_types}

        # ---- 2) per-edge-type node-level attention (head-batched softmax) ---
        rel_out = {nt: [] for nt in node_types}
        for e, et in enumerate(edge_types):
            src, _, dst = et
            xs = x_node[src]                               # (Ns, H*D) f32
            c_src = hidden + e * heads
            c_dst = hidden + (n_et + e) * heads
            alpha_s = wide[src][:, c_src:c_src + heads]    # (Ns, H)
            alpha_d = wide[dst][:, c_dst:c_dst + heads]    # (Nd, H)
            a_s_t = jnp.transpose(alpha_s)                 # (H, Ns)
            a_d_t = jnp.transpose(alpha_d)                 # (H, Nd)

            # (H, Nd, Ns) score slab: all heads' elementwise work in one pass
            score = a_d_t[:, :, None] + a_s_t[:, None, :]
            score = jnp.where(score >= 0, score, NEG_SLOPE * score)  # leaky_relu
            score = jnp.where(adj_mask[et][None], score, -1e30)      # mask
            mrow = jnp.max(score, axis=-1, keepdims=True)
            ex = jnp.exp(score - mrow)                                # (H, Nd, Ns)
            denom = jnp.sum(ex, axis=-1, keepdims=True)               # >= 1
            # kill zero-degree / padded dst rows BEFORE the aggregation matmul
            ex = ex * has_edge[et][None]
            inv = pl.reciprocal(denom, approx=True)                   # (H, Nd, 1)

            head_outs = []
            for h in range(heads):
                agg = jnp.dot(ex[h].astype(bf16),
                              xs[:, h * dim:(h + 1) * dim].astype(bf16),
                              preferred_element_type=f32)             # (Nd, D)
                head_outs.append(agg * inv[h])
            out_e = jnp.concatenate(head_outs, axis=-1)               # (Nd, H*D)
            out_e = jnp.maximum(out_e, 0.0)                           # F.relu
            rel_out[dst].append(out_e)

        # ---- 3) semantic (group) attention across relations per dst type ---
        kw = kw_ref[...]                    # bf16 (hidden, hidden)
        kb = kb_ref[...]                    # f32  (1, hidden)
        qv = q_ref[...]                     # f32  (1, hidden)
        new_x = {}
        for t, nt in enumerate(node_types):
            outs = rel_out[nt]
            npad = n_pad[nt]
            if not outs:
                # TODO(synk): PyG returns None here; emit zeros to keep dense layout.
                new_x[nt] = jnp.zeros((npad, hidden), f32)
                continue
            n_rel = len(outs)
            nreal = n_real[nt]
            stacked = jnp.concatenate(outs, axis=0)                   # (R*Npad, C)
            k = jnp.tanh(jnp.dot(stacked.astype(bf16), kw,
                                 preferred_element_type=f32) + kb)
            # per-relation mean over *real* rows only (padded rows masked out)
            rowmask = (jax.lax.broadcasted_iota(jnp.int32, (npad, 1), 0)
                       < nreal).astype(f32)
            inv_n = 1.0 / float(nreal)
            scores = []
            for r in range(n_rel):
                k_r = k[r * npad:(r + 1) * npad, :] * rowmask
                kmean = jnp.sum(k_r, axis=0, keepdims=True) * inv_n   # (1, C)
                scores.append(jnp.sum(qv * kmean, keepdims=True))     # (1, 1)
            # softmax over relations (tiny, static unroll)
            m = scores[0]
            for r in range(1, n_rel):
                m = jnp.maximum(m, scores[r])
            exps = [jnp.exp(s - m) for s in scores]
            den = exps[0]
            for r in range(1, n_rel):
                den = den + exps[r]
            acc = (exps[0] / den) * outs[0]
            for r in range(1, n_rel):
                acc = acc + (exps[r] / den) * outs[r]
            new_x[nt] = acc

        x_last = new_x
        x_cur = {nt: new_x[nt].astype(bf16) for nt in node_types}  # bf16 between layers

    # ---- pack all node-type outputs into one lane-dense slab, single store ---
    packed = []
    for nt in node_types:
        o = x_last[nt]
        npad = n_pad[nt]
        if npad < n_max:
            o = jnp.concatenate(
                [o, jnp.zeros((n_max - npad, hidden), f32)], axis=0)
        packed.append(o)
    out_ref[...] = jnp.concatenate(packed, axis=-1)


# --------------------------- params / glue (plain JAX) -----------------------

def _alpha_to_mat(a, heads, dim):
    """(heads, dim) attention vector -> (heads*dim, heads) block matrix so that
    x_proj @ A reproduces (x_proj.view(-1, H, D) * a).sum(-1)."""
    m = jnp.zeros((heads * dim, heads), jnp.float32)
    for h in range(heads):
        m = m.at[h * dim:(h + 1) * dim, h].set(a[h])
    return m


def init_han_params(key, node_types, edge_types, hidden, heads, num_layers):
    """Create HANConv-style parameters and pre-fold the alpha projections into
    one wide projection matrix per node type per layer."""
    dim = hidden // heads
    params = []
    for _ in range(num_layers):
        proj_w, proj_b = {}, {}
        for nt in node_types:
            key, k1, k2 = jax.random.split(key, 3)
            proj_w[nt] = 0.1 * jax.random.normal(k1, (hidden, hidden), jnp.float32)
            proj_b[nt] = 0.1 * jax.random.normal(k2, (1, hidden), jnp.float32)
        # a_src for every edge type, then a_dst for every edge type (kernel order)
        a_mats = []
        for _et in edge_types:
            key, k1 = jax.random.split(key)
            a_mats.append(_alpha_to_mat(
                0.1 * jax.random.normal(k1, (heads, dim), jnp.float32), heads, dim))
        for _et in edge_types:
            key, k1 = jax.random.split(key)
            a_mats.append(_alpha_to_mat(
                0.1 * jax.random.normal(k1, (heads, dim), jnp.float32), heads, dim))
        key, k1, k2, k3 = jax.random.split(key, 4)
        k_w = 0.1 * jax.random.normal(k1, (hidden, hidden), jnp.float32)
        k_b = 0.1 * jax.random.normal(k2, (1, hidden), jnp.float32)
        q = 0.1 * jax.random.normal(k3, (1, hidden), jnp.float32)

        layer = {"w_wide": {}, "b_wide": {},
                 "k_w": k_w.astype(jnp.bfloat16), "k_b": k_b, "q": q}
        for nt in node_types:
            W, b = proj_w[nt], proj_b[nt]
            w_cols = [W] + [W @ A for A in a_mats]
            b_cols = [b] + [b @ A for A in a_mats]
            layer["w_wide"][nt] = jnp.concatenate(w_cols, axis=1).astype(jnp.bfloat16)
            layer["b_wide"][nt] = jnp.concatenate(b_cols, axis=1)   # f32
        params.append(layer)
    return params


def han_forward(params, x_dict, edge_index_dict, num_nodes,
                node_types, edge_types, heads, hidden, lp=True):
    dim = hidden // heads
    num_layers = len(params)
    n_real = {nt: int(num_nodes[nt]) for nt in node_types}
    n_pad = {nt: _round_up(num_nodes[nt], 8) for nt in node_types}
    n_max = max(n_pad.values())

    # pad node features to a sublane multiple, cast to bf16 (half the DMA bytes)
    x_in = []
    for nt in node_types:
        x = x_dict[nt]
        pad = n_pad[nt] - x.shape[0]
        if pad:
            x = jnp.pad(x, ((0, pad), (0, 0)))
        x_in.append(x.astype(jnp.bfloat16))

    # densify edge_index -> bf16 {0,1} adjacency, built once, resident for all layers
    adj_in = []
    for et in edge_types:
        src, _, dst = et
        ei = edge_index_dict[et]
        adj = jnp.zeros((n_pad[dst], n_pad[src]), jnp.float32)
        adj = adj.at[ei[1], ei[0]].set(1.0)
        adj_in.append(adj.astype(jnp.bfloat16))

    inputs = list(x_in) + list(adj_in)
    for layer in params:
        for nt in node_types:
            inputs.append(layer["w_wide"][nt])
        for nt in node_types:
            inputs.append(layer["b_wide"][nt])
        inputs.extend([layer["k_w"], layer["k_b"], layer["q"]])

    out_cols = len(node_types) * hidden
    in_specs = [pl.BlockSpec(a.shape, lambda i: (0, 0)) for a in inputs]
    out_spec = pl.BlockSpec((n_max, out_cols), lambda i: (0, 0))
    out_shape = jax.ShapeDtypeStruct((n_max, out_cols), jnp.float32)

    kern = functools.partial(
        _han_fused_kernel,
        node_types=tuple(node_types),
        edge_types=tuple(edge_types),
        heads=heads, dim=dim, hidden=hidden,
        num_layers=num_layers,
        n_real=dict(n_real), n_pad=dict(n_pad), n_max=n_max)

    packed = pl.pallas_call(
        kern,
        out_shape=out_shape,
        grid=(1,),
        in_specs=in_specs,
        out_specs=out_spec,
        compiler_params=pltpu.CompilerParams(
            dimension_semantics=("arbitrary",),
            vmem_limit_bytes=32 * 1024 * 1024),
    )(*inputs)

    # both lp branches of HAN.forward do the same unsqueeze(0)
    return {nt: packed[:n_real[nt], t * hidden:(t + 1) * hidden][None]
            for t, nt in enumerate(node_types)}


# --------------------------------- main --------------------------------------

if __name__ == "__main__":
    hidden_channels, num_heads, num_layers = 32, 4, 2
    node_types = ["author", "paper"]
    num_nodes = {"author": 16, "paper": 24}
    edge_types = [
        ("author", "writes", "paper"),
        ("paper", "rev_writes", "author"),
        ("paper", "cites", "paper"),
    ]

    key = jax.random.PRNGKey(0)
    key, ka, kp = jax.random.split(key, 3)
    x_dict = {
        "author": jax.random.normal(ka, (num_nodes["author"], hidden_channels),
                                    jnp.float32),
        "paper": jax.random.normal(kp, (num_nodes["paper"], hidden_channels),
                                   jnp.float32),
    }

    edge_index_dict = {}
    num_edges = 40
    for et in edge_types:
        src, _, dst = et
        key, ks, kd = jax.random.split(key, 3)
        srcs = jax.random.randint(ks, (num_edges,), 0, num_nodes[src])
        dsts = jax.random.randint(kd, (num_edges,), 0, num_nodes[dst])
        edge_index_dict[et] = jnp.stack([srcs, dsts], axis=0)  # [2, E]

    params = init_han_params(key, node_types, edge_types,
                             hidden_channels, num_heads, num_layers)

    out = han_forward(params, x_dict, edge_index_dict, num_nodes,
                      node_types, edge_types, num_heads, hidden_channels,
                      lp=True)

    for nt in node_types:
        jax.block_until_ready(out[nt])
        assert out[nt].shape == (1, num_nodes[nt], hidden_channels), out[nt].shape
        assert jnp.all(jnp.isfinite(out[nt]))

    print("KERNEL_OK")
</pallas_src>

<mosaic_0001>
module attributes {stable_mosaic.version = 11 : i64} {
  func.func @_han_fused_kernel(%arg0: i32, %arg1: memref<16x32xbf16, #tpu.memory_space<vmem>>, %arg2: memref<24x32xbf16, #tpu.memory_space<vmem>>, %arg3: memref<24x16xbf16, #tpu.memory_space<vmem>>, %arg4: memref<16x24xbf16, #tpu.memory_space<vmem>>, %arg5: memref<24x24xbf16, #tpu.memory_space<vmem>>, %arg6: memref<32x56xbf16, #tpu.memory_space<vmem>>, %arg7: memref<32x56xbf16, #tpu.memory_space<vmem>>, %arg8: memref<1x56xf32, #tpu.memory_space<vmem>>, %arg9: memref<1x56xf32, #tpu.memory_space<vmem>>, %arg10: memref<32x32xbf16, #tpu.memory_space<vmem>>, %arg11: memref<1x32xf32, #tpu.memory_space<vmem>>, %arg12: memref<1x32xf32, #tpu.memory_space<vmem>>, %arg13: memref<32x56xbf16, #tpu.memory_space<vmem>>, %arg14: memref<32x56xbf16, #tpu.memory_space<vmem>>, %arg15: memref<1x56xf32, #tpu.memory_space<vmem>>, %arg16: memref<1x56xf32, #tpu.memory_space<vmem>>, %arg17: memref<32x32xbf16, #tpu.memory_space<vmem>>, %arg18: memref<1x32xf32, #tpu.memory_space<vmem>>, %arg19: memref<1x32xf32, #tpu.memory_space<vmem>>, %arg20: memref<24x64xf32, #tpu.memory_space<vmem>>) attributes {dimension_semantics = [#tpu.dimension_semantics<arbitrary>], iteration_bounds = array<i64: 1>, scalar_prefetch = 0 : i64, scratch_operands = 0 : i64, tpu.core_type = #tpu.core_type<tc>, window_params = [{pipeline_mode = #tpu.pipeline_mode<synchronous>, transform_indices = @transform_0, window_bounds = array<i64: 16, 32>}, {pipeline_mode = #tpu.pipeline_mode<synchronous>, transform_indices = @transform_1, window_bounds = array<i64: 24, 32>}, {pipeline_mode = #tpu.pipeline_mode<synchronous>, transform_indices = @transform_2, window_bounds = array<i64: 24, 16>}, {pipeline_mode = #tpu.pipeline_mode<synchronous>, transform_indices = @transform_3, window_bounds = array<i64: 16, 24>}, {pipeline_mode = #tpu.pipeline_mode<synchronous>, transform_indices = @transform_4, window_bounds = array<i64: 24, 24>}, {pipeline_mode = #tpu.pipeline_mode<synchronous>, transform_indices = @transform_5, window_bounds = array<i64: 32, 56>}, {pipeline_mode = #tpu.pipeline_mode<synchronous>, transform_indices = @transform_6, window_bounds = array<i64: 32, 56>}, {pipeline_mode = #tpu.pipeline_mode<synchronous>, transform_indices = @transform_7, window_bounds = array<i64: 1, 56>}, {pipeline_mode = #tpu.pipeline_mode<synchronous>, transform_indices = @transform_8, window_bounds = array<i64: 1, 56>}, {pipeline_mode = #tpu.pipeline_mode<synchronous>, transform_indices = @transform_9, window_bounds = array<i64: 32, 32>}, {pipeline_mode = #tpu.pipeline_mode<synchronous>, transform_indices = @transform_10, window_bounds = array<i64: 1, 32>}, {pipeline_mode = #tpu.pipeline_mode<synchronous>, transform_indices = @transform_11, window_bounds = array<i64: 1, 32>}, {pipeline_mode = #tpu.pipeline_mode<synchronous>, transform_indices = @transform_12, window_bounds = array<i64: 32, 56>}, {pipeline_mode = #tpu.pipeline_mode<synchronous>, transform_indices = @transform_13, window_bounds = array<i64: 32, 56>}, {pipeline_mode = #tpu.pipeline_mode<synchronous>, transform_indices = @transform_14, window_bounds = array<i64: 1, 56>}, {pipeline_mode = #tpu.pipeline_mode<synchronous>, transform_indices = @transform_15, window_bounds = array<i64: 1, 56>}, {pipeline_mode = #tpu.pipeline_mode<synchronous>, transform_indices = @transform_16, window_bounds = array<i64: 32, 32>}, {pipeline_mode = #tpu.pipeline_mode<synchronous>, transform_indices = @transform_17, window_bounds = array<i64: 1, 32>}, {pipeline_mode = #tpu.pipeline_mode<synchronous>, transform_indices = @transform_18, window_bounds = array<i64: 1, 32>}, {pipeline_mode = #tpu.pipeline_mode<synchronous>, transform_indices = @transform_19, window_bounds = array<i64: 24, 64>}]} {
    %c0 = arith.constant 0 : index
    %c0_0 = arith.constant 0 : index
    %0 = vector.load %arg3[%c0, %c0_0] : memref<24x16xbf16, #tpu.memory_space<vmem>>, vector<24x16xbf16>
    %1 = arith.extf %0 : vector<24x16xbf16> to vector<24x16xf32>
    %cst = arith.constant 0.000000e+00 : f32
    %2 = vector.broadcast %cst : f32 to vector<24x16xf32>
    %3 = arith.cmpf ogt, %1, %2 : vector<24x16xf32>
    %cst_1 = arith.constant dense<0.000000e+00> : vector<24xf32>
    %4 = vector.multi_reduction <add>, %1, %cst_1 [1] : vector<24x16xf32> to vector<24xf32>
    %5 = vector.shape_cast %4 : vector<24xf32> to vector<24x1xf32>
    %cst_2 = arith.constant 0.000000e+00 : f32
    %6 = vector.broadcast %cst_2 : f32 to vector<24x1xf32>
    %7 = arith.cmpf ogt, %5, %6 : vector<24x1xf32>
    %8 = arith.extui %7 : vector<24x1xi1> to vector<24x1xi32>
    %9 = arith.sitofp %8 : vector<24x1xi32> to vector<24x1xf32>
    %c0_3 = arith.constant 0 : index
    %c0_4 = arith.constant 0 : index
    %10 = vector.load %arg4[%c0_3, %c0_4] : memref<16x24xbf16, #tpu.memory_space<vmem>>, vector<16x24xbf16>
    %11 = arith.extf %10 : vector<16x24xbf16> to vector<16x24xf32>
    %cst_5 = arith.constant 0.000000e+00 : f32
    %12 = vector.broadcast %cst_5 : f32 to vector<16x24xf32>
    %13 = arith.cmpf ogt, %11, %12 : vector<16x24xf32>
    %cst_6 = arith.constant dense<0.000000e+00> : vector<16xf32>
    %14 = vector.multi_reduction <add>, %11, %cst_6 [1] : vector<16x24xf32> to vector<16xf32>
    %15 = vector.shape_cast %14 : vector<16xf32> to vector<16x1xf32>
    %cst_7 = arith.constant 0.000000e+00 : f32
    %16 = vector.broadcast %cst_7 : f32 to vector<16x1xf32>
    %17 = arith.cmpf ogt, %15, %16 : vector<16x1xf32>
    %18 = arith.extui %17 : vector<16x1xi1> to vector<16x1xi32>
    %19 = arith.sitofp %18 : vector<16x1xi32> to vector<16x1xf32>
    %c0_8 = arith.constant 0 : index
    %c0_9 = arith.constant 0 : index
    %20 = vector.load %arg5[%c0_8, %c0_9] : memref<24x24xbf16, #tpu.memory_space<vmem>>, vector<24x24xbf16>
    %21 = arith.extf %20 : vector<24x24xbf16> to vector<24x24xf32>
    %cst_10 = arith.constant 0.000000e+00 : f32
    %22 = vector.broadcast %cst_10 : f32 to vector<24x24xf32>
    %23 = arith.cmpf ogt, %21, %22 : vector<24x24xf32>
    %cst_11 = arith.constant dense<0.000000e+00> : vector<24xf32>
    %24 = vector.multi_reduction <add>, %21, %cst_11 [1] : vector<24x24xf32> to vector<24xf32>
    %25 = vector.shape_cast %24 : vector<24xf32> to vector<24x1xf32>
    %cst_12 = arith.constant 0.000000e+00 : f32
    %26 = vector.broadcast %cst_12 : f32 to vector<24x1xf32>
    %27 = arith.cmpf ogt, %25, %26 : vector<24x1xf32>
    %28 = arith.extui %27 : vector<24x1xi1> to vector<24x1xi32>
    %29 = arith.sitofp %28 : vector<24x1xi32> to vector<24x1xf32>
    %c0_13 = arith.constant 0 : index
    %c0_14 = arith.constant 0 : index
    %30 = vector.load %arg1[%c0_13, %c0_14] : memref<16x32xbf16, #tpu.memory_space<vmem>>, vector<16x32xbf16>
    %c0_15 = arith.constant 0 : index
    %c0_16 = arith.constant 0 : index
    %31 = vector.load %arg2[%c0_15, %c0_16] : memref<24x32xbf16, #tpu.memory_space<vmem>>, vector<24x32xbf16>
    %c0_17 = arith.constant 0 : index
    %c0_18 = arith.constant 0 : index
    %32 = vector.load %arg6[%c0_17, %c0_18] : memref<32x56xbf16, #tpu.memory_space<vmem>>, vector<32x56xbf16>
    %cst_19 = arith.constant dense<0.000000e+00> : vector<16x56xf32>
    %33 = tpu.matmul %30, %32, %cst_19 {dimension_numbers = #tpu.dot_dimension_numbers<[1], [0], [0], [1], [0, 0, 1, 1], [], []>} : vector<16x32xbf16>, vector<32x56xbf16>, vector<16x56xf32> -> vector<16x56xf32>
    %c0_20 = arith.constant 0 : index
    %c0_21 = arith.constant 0 : index
    %34 = vector.load %arg8[%c0_20, %c0_21] : memref<1x56xf32, #tpu.memory_space<vmem>>, vector<1x56xf32>
    %35 = vector.broadcast %34 : vector<1x56xf32> to vector<16x56xf32>
    %36 = arith.addf %33, %35 : vector<16x56xf32>
    %c0_22 = arith.constant 0 : index
    %c0_23 = arith.constant 0 : index
    %37 = vector.load %arg7[%c0_22, %c0_23] : memref<32x56xbf16, #tpu.memory_space<vmem>>, vector<32x56xbf16>
    %cst_24 = arith.constant dense<0.000000e+00> : vector<24x56xf32>
    %38 = tpu.matmul %31, %37, %cst_24 {dimension_numbers = #tpu.dot_dimension_numbers<[1], [0], [0], [1], [0, 0, 1, 1], [], []>} : vector<24x32xbf16>, vector<32x56xbf16>, vector<24x56xf32> -> vector<24x56xf32>
    %c0_25 = arith.constant 0 : index
    %c0_26 = arith.constant 0 : index
    %39 = vector.load %arg9[%c0_25, %c0_26] : memref<1x56xf32, #tpu.memory_space<vmem>>, vector<1x56xf32>
    %40 = vector.broadcast %39 : vector<1x56xf32> to vector<24x56xf32>
    %41 = arith.addf %38, %40 : vector<24x56xf32>
    %42 = vector.extract_strided_slice %36 {offsets = [0, 0], sizes = [16, 32], strides = [1, 1]} : vector<16x56xf32> to vector<16x32xf32>
    %43 = vector.extract_strided_slice %41 {offsets = [0, 0], sizes = [24, 32], strides = [1, 1]} : vector<24x56xf32> to vector<24x32xf32>
    %44 = vector.extract_strided_slice %36 {offsets = [0, 32], sizes = [16, 4], strides = [1, 1]} : vector<16x56xf32> to vector<16x4xf32>
    %45 = vector.extract_strided_slice %41 {offsets = [0, 44], sizes = [24, 4], strides = [1, 1]} : vector<24x56xf32> to vector<24x4xf32>
    %46 = tpu.transpose %44, [1, 0] : vector<16x4xf32> -> vector<4x16xf32>
    %47 = tpu.transpose %45, [1, 0] : vector<24x4xf32> -> vector<4x24xf32>
    %48 = vector.shape_cast %47 : vector<4x24xf32> to vector<4x24x1xf32>
    %49 = vector.shape_cast %46 : vector<4x16xf32> to vector<4x1x16xf32>
    %50 = vector.broadcast %48 : vector<4x24x1xf32> to vector<4x24x16xf32>
    %51 = vector.broadcast %49 : vector<4x1x16xf32> to vector<4x24x16xf32>
    %52 = arith.addf %50, %51 : vector<4x24x16xf32>
    %cst_27 = arith.constant 0.000000e+00 : f32
    %53 = vector.broadcast %cst_27 : f32 to vector<4x24x16xf32>
    %54 = arith.cmpf oge, %52, %53 : vector<4x24x16xf32>
    %cst_28 = arith.constant 2.000000e-01 : f32
    %55 = vector.broadcast %cst_28 : f32 to vector<4x24x16xf32>
    %56 = arith.mulf %55, %52 : vector<4x24x16xf32>
    %57 = arith.select %54, %52, %56 : vector<4x24x16xi1>, vector<4x24x16xf32>
    %58 = vector.shape_cast %3 : vector<24x16xi1> to vector<1x24x16xi1>
    %cst_29 = arith.constant -1.000000e+30 : f32
    %59 = vector.shape_cast %58 : vector<1x24x16xi1> to vector<1x24x16xi1>
    %60 = vector.broadcast %59 : vector<1x24x16xi1> to vector<4x24x16xi1>
    %61 = vector.broadcast %cst_29 : f32 to vector<4x24x16xf32>
    %62 = arith.select %60, %57, %61 : vector<4x24x16xi1>, vector<4x24x16xf32>
    %cst_30 = arith.constant dense<0xFF800000> : vector<4x24xf32>
    %63 = vector.multi_reduction <maximumf>, %62, %cst_30 [2] : vector<4x24x16xf32> to vector<4x24xf32>
    %64 = vector.shape_cast %63 : vector<4x24xf32> to vector<4x24x1xf32>
    %65 = vector.broadcast %64 : vector<4x24x1xf32> to vector<4x24x16xf32>
    %66 = arith.subf %62, %65 : vector<4x24x16xf32>
    %67 = math.exp %66 : vector<4x24x16xf32>
    %cst_31 = arith.constant dense<0.000000e+00> : vector<4x24xf32>
    %68 = vector.multi_reduction <add>, %67, %cst_31 [2] : vector<4x24x16xf32> to vector<4x24xf32>
    %69 = vector.shape_cast %68 : vector<4x24xf32> to vector<4x24x1xf32>
    %70 = vector.shape_cast %9 : vector<24x1xf32> to vector<1x24x1xf32>
    %71 = vector.broadcast %70 : vector<1x24x1xf32> to vector<4x24x16xf32>
    %72 = arith.mulf %67, %71 : vector<4x24x16xf32>
    %73 = tpu.reciprocal %69 {approx = true} : vector<4x24x1xf32> -> vector<4x24x1xf32>
    %74 = vector.extract_strided_slice %72 {offsets = [0, 0, 0], sizes = [1, 24, 16], strides = [1, 1, 1]} : vector<4x24x16xf32> to vector<1x24x16xf32>
    %75 = vector.shape_cast %74 : vector<1x24x16xf32> to vector<24x16xf32>
    %76 = arith.truncf %75 : vector<24x16xf32> to vector<24x16xbf16>
    %77 = vector.extract_strided_slice %42 {offsets = [0, 0], sizes = [16, 8], strides = [1, 1]} : vector<16x32xf32> to vector<16x8xf32>
    %78 = arith.truncf %77 : vector<16x8xf32> to vector<16x8xbf16>
    %cst_32 = arith.constant dense<0.000000e+00> : vector<24x8xf32>
    %79 = tpu.matmul %76, %78, %cst_32 {dimension_numbers = #tpu.dot_dimension_numbers<[1], [0], [0], [1], [0, 0, 1, 1], [], []>} : vector<24x16xbf16>, vector<16x8xbf16>, vector<24x8xf32> -> vector<24x8xf32>
    %80 = vector.extract_strided_slice %73 {offsets = [0, 0, 0], sizes = [1, 24, 1], strides = [1, 1, 1]} : vector<4x24x1xf32> to vector<1x24x1xf32>
    %81 = vector.shape_cast %80 : vector<1x24x1xf32> to vector<24x1xf32>
    %82 = vector.broadcast %81 : vector<24x1xf32> to vector<24x8xf32>
    %83 = arith.mulf %79, %82 : vector<24x8xf32>
    %84 = vector.extract_strided_slice %72 {offsets = [1, 0, 0], sizes = [1, 24, 16], strides = [1, 1, 1]} : vector<4x24x16xf32> to vector<1x24x16xf32>
    %85 = vector.shape_cast %84 : vector<1x24x16xf32> to vector<24x16xf32>
    %86 = arith.truncf %85 : vector<24x16xf32> to vector<24x16xbf16>
    %87 = vector.extract_strided_slice %42 {offsets = [0, 8], sizes = [16, 8], strides = [1, 1]} : vector<16x32xf32> to vector<16x8xf32>
    %88 = arith.truncf %87 : vector<16x8xf32> to vector<16x8xbf16>
    %cst_33 = arith.constant dense<0.000000e+00> : vector<24x8xf32>
    %89 = tpu.matmul %86, %88, %cst_33 {dimension_numbers = #tpu.dot_dimension_numbers<[1], [0], [0], [1], [0, 0, 1, 1], [], []>} : vector<24x16xbf16>, vector<16x8xbf16>, vector<24x8xf32> -> vector<24x8xf32>
    %90 = vector.extract_strided_slice %73 {offsets = [1, 0, 0], sizes = [1, 24, 1], strides = [1, 1, 1]} : vector<4x24x1xf32> to vector<1x24x1xf32>
    %91 = vector.shape_cast %90 : vector<1x24x1xf32> to vector<24x1xf32>
    %92 = vector.broadcast %91 : vector<24x1xf32> to vector<24x8xf32>
    %93 = arith.mulf %89, %92 : vector<24x8xf32>
    %94 = vector.extract_strided_slice %72 {offsets = [2, 0, 0], sizes = [1, 24, 16], strides = [1, 1, 1]} : vector<4x24x16xf32> to vector<1x24x16xf32>
    %95 = vector.shape_cast %94 : vector<1x24x16xf32> to vector<24x16xf32>
    %96 = arith.truncf %95 : vector<24x16xf32> to vector<24x16xbf16>
    %97 = vector.extract_strided_slice %42 {offsets = [0, 16], sizes = [16, 8], strides = [1, 1]} : vector<16x32xf32> to vector<16x8xf32>
    %98 = arith.truncf %97 : vector<16x8xf32> to vector<16x8xbf16>
    %cst_34 = arith.constant dense<0.000000e+00> : vector<24x8xf32>
    %99 = tpu.matmul %96, %98, %cst_34 {dimension_numbers = #tpu.dot_dimension_numbers<[1], [0], [0], [1], [0, 0, 1, 1], [], []>} : vector<24x16xbf16>, vector<16x8xbf16>, vector<24x8xf32> -> vector<24x8xf32>
    %100 = vector.extract_strided_slice %73 {offsets = [2, 0, 0], sizes = [1, 24, 1], strides = [1, 1, 1]} : vector<4x24x1xf32> to vector<1x24x1xf32>
    %101 = vector.shape_cast %100 : vector<1x24x1xf32> to vector<24x1xf32>
    %102 = vector.broadcast %101 : vector<24x1xf32> to vector<24x8xf32>
    %103 = arith.mulf %99, %102 : vector<24x8xf32>
    %104 = vector.extract_strided_slice %72 {offsets = [3, 0, 0], sizes = [1, 24, 16], strides = [1, 1, 1]} : vector<4x24x16xf32> to vector<1x24x16xf32>
    %105 = vector.shape_cast %104 : vector<1x24x16xf32> to vector<24x16xf32>
    %106 = arith.truncf %105 : vector<24x16xf32> to vector<24x16xbf16>
    %107 = vector.extract_strided_slice %42 {offsets = [0, 24], sizes = [16, 8], strides = [1, 1]} : vector<16x32xf32> to vector<16x8xf32>
    %108 = arith.truncf %107 : vector<16x8xf32> to vector<16x8xbf16>
    %cst_35 = arith.constant dense<0.000000e+00> : vector<24x8xf32>
    %109 = tpu.matmul %106, %108, %cst_35 {dimension_numbers = #tpu.dot_dimension_numbers<[1], [0], [0], [1], [0, 0, 1, 1], [], []>} : vector<24x16xbf16>, vector<16x8xbf16>, vector<24x8xf32> -> vector<24x8xf32>
    %110 = vector.extract_strided_slice %73 {offsets = [3, 0, 0], sizes = [1, 24, 1], strides = [1, 1, 1]} : vector<4x24x1xf32> to vector<1x24x1xf32>
    %111 = vector.shape_cast %110 : vector<1x24x1xf32> to vector<24x1xf32>
    %112 = vector.broadcast %111 : vector<24x1xf32> to vector<24x8xf32>
    %113 = arith.mulf %109, %112 : vector<24x8xf32>
    %114 = tpu.concatenate %83, %93, %103, %113 in 1 : vector<24x8xf32>, vector<24x8xf32>, vector<24x8xf32>, vector<24x8xf32> -> vector<24x32xf32>
    %cst_36 = arith.constant 0.000000e+00 : f32
    %115 = vector.broadcast %cst_36 : f32 to vector<24x32xf32>
    %116 = arith.maximumf %114, %115 : vector<24x32xf32>
    %117 = vector.extract_strided_slice %41 {offsets = [0, 36], sizes = [24, 4], strides = [1, 1]} : vector<24x56xf32> to vector<24x4xf32>
    %118 = vector.extract_strided_slice %36 {offsets = [0, 48], sizes = [16, 4], strides = [1, 1]} : vector<16x56xf32> to vector<16x4xf32>
    %119 = tpu.transpose %117, [1, 0] : vector<24x4xf32> -> vector<4x24xf32>
    %120 = tpu.transpose %118, [1, 0] : vector<16x4xf32> -> vector<4x16xf32>
    %121 = vector.shape_cast %120 : vector<4x16xf32> to vector<4x16x1xf32>
    %122 = vector.shape_cast %119 : vector<4x24xf32> to vector<4x1x24xf32>
    %123 = vector.broadcast %121 : vector<4x16x1xf32> to vector<4x16x24xf32>
    %124 = vector.broadcast %122 : vector<4x1x24xf32> to vector<4x16x24xf32>
    %125 = arith.addf %123, %124 : vector<4x16x24xf32>
    %cst_37 = arith.constant 0.000000e+00 : f32
    %126 = vector.broadcast %cst_37 : f32 to vector<4x16x24xf32>
    %127 = arith.cmpf oge, %125, %126 : vector<4x16x24xf32>
    %cst_38 = arith.constant 2.000000e-01 : f32
    %128 = vector.broadcast %cst_38 : f32 to vector<4x16x24xf32>
    %129 = arith.mulf %128, %125 : vector<4x16x24xf32>
    %130 = arith.select %127, %125, %129 : vector<4x16x24xi1>, vector<4x16x24xf32>
    %131 = vector.shape_cast %13 : vector<16x24xi1> to vector<1x16x24xi1>
    %cst_39 = arith.constant -1.000000e+30 : f32
    %132 = vector.shape_cast %131 : vector<1x16x24xi1> to vector<1x16x24xi1>
    %133 = vector.broadcast %132 : vector<1x16x24xi1> to vector<4x16x24xi1>
    %134 = vector.broadcast %cst_39 : f32 to vector<4x16x24xf32>
    %135 = arith.select %133, %130, %134 : vector<4x16x24xi1>, vector<4x16x24xf32>
    %cst_40 = arith.constant dense<0xFF800000> : vector<4x16xf32>
    %136 = vector.multi_reduction <maximumf>, %135, %cst_40 [2] : vector<4x16x24xf32> to vector<4x16xf32>
    %137 = vector.shape_cast %136 : vector<4x16xf32> to vector<4x16x1xf32>
    %138 = vector.broadcast %137 : vector<4x16x1xf32> to vector<4x16x24xf32>
    %139 = arith.subf %135, %138 : vector<4x16x24xf32>
    %140 = math.exp %139 : vector<4x16x24xf32>
    %cst_41 = arith.constant dense<0.000000e+00> : vector<4x16xf32>
    %141 = vector.multi_reduction <add>, %140, %cst_41 [2] : vector<4x16x24xf32> to vector<4x16xf32>
    %142 = vector.shape_cast %141 : vector<4x16xf32> to vector<4x16x1xf32>
    %143 = vector.shape_cast %19 : vector<16x1xf32> to vector<1x16x1xf32>
    %144 = vector.broadcast %143 : vector<1x16x1xf32> to vector<4x16x24xf32>
    %145 = arith.mulf %140, %144 : vector<4x16x24xf32>
    %146 = tpu.reciprocal %142 {approx = true} : vector<4x16x1xf32> -> vector<4x16x1xf32>
    %147 = vector.extract_strided_slice %145 {offsets = [0, 0, 0], sizes = [1, 16, 24], strides = [1, 1, 1]} : vector<4x16x24xf32> to vector<1x16x24xf32>
    %148 = vector.shape_cast %147 : vector<1x16x24xf32> to vector<16x24xf32>
    %149 = arith.truncf %148 : vector<16x24xf32> to vector<16x24xbf16>
    %150 = vector.extract_strided_slice %43 {offsets = [0, 0], sizes = [24, 8], strides = [1, 1]} : vector<24x32xf32> to vector<24x8xf32>
    %151 = arith.truncf %150 : vector<24x8xf32> to vector<24x8xbf16>
    %cst_42 = arith.constant dense<0.000000e+00> : vector<16x8xf32>
    %152 = tpu.matmul %149, %151, %cst_42 {dimension_numbers = #tpu.dot_dimension_numbers<[1], [0], [0], [1], [0, 0, 1, 1], [], []>} : vector<16x24xbf16>, vector<24x8xbf16>, vector<16x8xf32> -> vector<16x8xf32>
    %153 = vector.extract_strided_slice %146 {offsets = [0, 0, 0], sizes = [1, 16, 1], strides = [1, 1, 1]} : vector<4x16x1xf32> to vector<1x16x1xf32>
    %154 = vector.shape_cast %153 : vector<1x16x1xf32> to vector<16x1xf32>
    %155 = vector.broadcast %154 : vector<16x1xf32> to vector<16x8xf32>
    %156 = arith.mulf %152, %155 : vector<16x8xf32>
    %157 = vector.extract_strided_slice %145 {offsets = [1, 0, 0], sizes = [1, 16, 24], strides = [1, 1, 1]} : vector<4x16x24xf32> to vector<1x16x24xf32>
    %158 = vector.shape_cast %157 : vector<1x16x24xf32> to vector<16x24xf32>
    %159 = arith.truncf %158 : vector<16x24xf32> to vector<16x24xbf16>
    %160 = vector.extract_strided_slice %43 {offsets = [0, 8], sizes = [24, 8], strides = [1, 1]} : vector<24x32xf32> to vector<24x8xf32>
    %161 = arith.truncf %160 : vector<24x8xf32> to vector<24x8xbf16>
    %cst_43 = arith.constant dense<0.000000e+00> : vector<16x8xf32>
    %162 = tpu.matmul %159, %161, %cst_43 {dimension_numbers = #tpu.dot_dimension_numbers<[1], [0], [0], [1], [0, 0, 1, 1], [], []>} : vector<16x24xbf16>, vector<24x8xbf16>, vector<16x8xf32> -> vector<16x8xf32>
    %163 = vector.extract_strided_slice %146 {offsets = [1, 0, 0], sizes = [1, 16, 1], strides = [1, 1, 1]} : vector<4x16x1xf32> to vector<1x16x1xf32>
    %164 = vector.shape_cast %163 : vector<1x16x1xf32> to vector<16x1xf32>
    %165 = vector.broadcast %164 : vector<16x1xf32> to vector<16x8xf32>
    %166 = arith.mulf %162, %165 : vector<16x8xf32>
    %167 = vector.extract_strided_slice %145 {offsets = [2, 0, 0], sizes = [1, 16, 24], strides = [1, 1, 1]} : vector<4x16x24xf32> to vector<1x16x24xf32>
    %168 = vector.shape_cast %167 : vector<1x16x24xf32> to vector<16x24xf32>
    %169 = arith.truncf %168 : vector<16x24xf32> to vector<16x24xbf16>
    %170 = vector.extract_strided_slice %43 {offsets = [0, 16], sizes = [24, 8], strides = [1, 1]} : vector<24x32xf32> to vector<24x8xf32>
    %171 = arith.truncf %170 : vector<24x8xf32> to vector<24x8xbf16>
    %cst_44 = arith.constant dense<0.000000e+00> : vector<16x8xf32>
    %172 = tpu.matmul %169, %171, %cst_44 {dimension_numbers = #tpu.dot_dimension_numbers<[1], [0], [0], [1], [0, 0, 1, 1], [], []>} : vector<16x24xbf16>, vector<24x8xbf16>, vector<16x8xf32> -> vector<16x8xf32>
    %173 = vector.extract_strided_slice %146 {offsets = [2, 0, 0], sizes = [1, 16, 1], strides = [1, 1, 1]} : vector<4x16x1xf32> to vector<1x16x1xf32>
    %174 = vector.shape_cast %173 : vector<1x16x1xf32> to vector<16x1xf32>
    %175 = vector.broadcast %174 : vector<16x1xf32> to vector<16x8xf32>
    %176 = arith.mulf %172, %175 : vector<16x8xf32>
    %177 = vector.extract_strided_slice %145 {offsets = [3, 0, 0], sizes = [1, 16, 24], strides = [1, 1, 1]} : vector<4x16x24xf32> to vector<1x16x24xf32>
    %178 = vector.shape_cast %177 : vector<1x16x24xf32> to vector<16x24xf32>
    %179 = arith.truncf %178 : vector<16x24xf32> to vector<16x24xbf16>
    %180 = vector.extract_strided_slice %43 {offsets = [0, 24], sizes = [24, 8], strides = [1, 1]} : vector<24x32xf32> to vector<24x8xf32>
    %181 = arith.truncf %180 : vector<24x8xf32> to vector<24x8xbf16>
    %cst_45 = arith.constant dense<0.000000e+00> : vector<16x8xf32>
    %182 = tpu.matmul %179, %181, %cst_45 {dimension_numbers = #tpu.dot_dimension_numbers<[1], [0], [0], [1], [0, 0, 1, 1], [], []>} : vector<16x24xbf16>, vector<24x8xbf16>, vector<16x8xf32> -> vector<16x8xf32>
    %183 = vector.extract_strided_slice %146 {offsets = [3, 0, 0], sizes = [1, 16, 1], strides = [1, 1, 1]} : vector<4x16x1xf32> to vector<1x16x1xf32>
    %184 = vector.shape_cast %183 : vector<1x16x1xf32> to vector<16x1xf32>
    %185 = vector.broadcast %184 : vector<16x1xf32> to vector<16x8xf32>
    %186 = arith.mulf %182, %185 : vector<16x8xf32>
    %187 = tpu.concatenate %156, %166, %176, %186 in 1 : vector<16x8xf32>, vector<16x8xf32>, vector<16x8xf32>, vector<16x8xf32> -> vector<16x32xf32>
    %cst_46 = arith.constant 0.000000e+00 : f32
    %188 = vector.broadcast %cst_46 : f32 to vector<16x32xf32>
    %189 = arith.maximumf %187, %188 : vector<16x32xf32>
    %190 = vector.extract_strided_slice %41 {offsets = [0, 40], sizes = [24, 4], strides = [1, 1]} : vector<24x56xf32> to vector<24x4xf32>
    %191 = vector.extract_strided_slice %41 {offsets = [0, 52], sizes = [24, 4], strides = [1, 1]} : vector<24x56xf32> to vector<24x4xf32>
    %192 = tpu.transpose %190, [1, 0] : vector<24x4xf32> -> vector<4x24xf32>
    %193 = tpu.transpose %191, [1, 0] : vector<24x4xf32> -> vector<4x24xf32>
    %194 = vector.shape_cast %193 : vector<4x24xf32> to vector<4x24x1xf32>
    %195 = vector.shape_cast %192 : vector<4x24xf32> to vector<4x1x24xf32>
    %196 = vector.broadcast %194 : vector<4x24x1xf32> to vector<4x24x24xf32>
    %197 = vector.broadcast %195 : vector<4x1x24xf32> to vector<4x24x24xf32>
    %198 = arith.addf %196, %197 : vector<4x24x24xf32>
    %cst_47 = arith.constant 0.000000e+00 : f32
    %199 = vector.broadcast %cst_47 : f32 to vector<4x24x24xf32>
    %200 = arith.cmpf oge, %198, %199 : vector<4x24x24xf32>
    %cst_48 = arith.constant 2.000000e-01 : f32
    %201 = vector.broadcast %cst_48 : f32 to vector<4x24x24xf32>
    %202 = arith.mulf %201, %198 : vector<4x24x24xf32>
    %203 = arith.select %200, %198, %202 : vector<4x24x24xi1>, vector<4x24x24xf32>
    %204 = vector.shape_cast %23 : vector<24x24xi1> to vector<1x24x24xi1>
    %cst_49 = arith.constant -1.000000e+30 : f32
    %205 = vector.shape_cast %204 : vector<1x24x24xi1> to vector<1x24x24xi1>
    %206 = vector.broadcast %205 : vector<1x24x24xi1> to vector<4x24x24xi1>
    %207 = vector.broadcast %cst_49 : f32 to vector<4x24x24xf32>
    %208 = arith.select %206, %203, %207 : vector<4x24x24xi1>, vector<4x24x24xf32>
    %cst_50 = arith.constant dense<0xFF800000> : vector<4x24xf32>
    %209 = vector.multi_reduction <maximumf>, %208, %cst_50 [2] : vector<4x24x24xf32> to vector<4x24xf32>
    %210 = vector.shape_cast %209 : vector<4x24xf32> to vector<4x24x1xf32>
    %211 = vector.broadcast %210 : vector<4x24x1xf32> to vector<4x24x24xf32>
    %212 = arith.subf %208, %211 : vector<4x24x24xf32>
    %213 = math.exp %212 : vector<4x24x24xf32>
    %cst_51 = arith.constant dense<0.000000e+00> : vector<4x24xf32>
    %214 = vector.multi_reduction <add>, %213, %cst_51 [2] : vector<4x24x24xf32> to vector<4x24xf32>
    %215 = vector.shape_cast %214 : vector<4x24xf32> to vector<4x24x1xf32>
    %216 = vector.shape_cast %29 : vector<24x1xf32> to vector<1x24x1xf32>
    %217 = vector.broadcast %216 : vector<1x24x1xf32> to vector<4x24x24xf32>
    %218 = arith.mulf %213, %217 : vector<4x24x24xf32>
    %219 = tpu.reciprocal %215 {approx = true} : vector<4x24x1xf32> -> vector<4x24x1xf32>
    %220 = vector.extract_strided_slice %218 {offsets = [0, 0, 0], sizes = [1, 24, 24], strides = [1, 1, 1]} : vector<4x24x24xf32> to vector<1x24x24xf32>
    %221 = vector.shape_cast %220 : vector<1x24x24xf32> to vector<24x24xf32>
    %222 = arith.truncf %221 : vector<24x24xf32> to vector<24x24xbf16>
    %223 = vector.extract_strided_slice %43 {offsets = [0, 0], sizes = [24, 8], strides = [1, 1]} : vector<24x32xf32> to vector<24x8xf32>
    %224 = arith.truncf %223 : vector<24x8xf32> to vector<24x8xbf16>
    %cst_52 = arith.constant dense<0.000000e+00> : vector<24x8xf32>
    %225 = tpu.matmul %222, %224, %cst_52 {dimension_numbers = #tpu.dot_dimension_numbers<[1], [0], [0], [1], [0, 0, 1, 1], [], []>} : vector<24x24xbf16>, vector<24x8xbf16>, vector<24x8xf32> -> vector<24x8xf32>
    %226 = vector.extract_strided_slice %219 {offsets = [0, 0, 0], sizes = [1, 24, 1], strides = [1, 1, 1]} : vector<4x24x1xf32> to vector<1x24x1xf32>
    %227 = vector.shape_cast %226 : vector<1x24x1xf32> to vector<24x1xf32>
    %228 = vector.broadcast %227 : vector<24x1xf32> to vector<24x8xf32>
    %229 = arith.mulf %225, %228 : vector<24x8xf32>
    %230 = vector.extract_strided_slice %218 {offsets = [1, 0, 0], sizes = [1, 24, 24], strides = [1, 1, 1]} : vector<4x24x24xf32> to vector<1x24x24xf32>
    %231 = vector.shape_cast %230 : vector<1x24x24xf32> to vector<24x24xf32>
    %232 = arith.truncf %231 : vector<24x24xf32> to vector<24x24xbf16>
    %233 = vector.extract_strided_slice %43 {offsets = [0, 8], sizes = [24, 8], strides = [1, 1]} : vector<24x32xf32> to vector<24x8xf32>
    %234 = arith.truncf %233 : vector<24x8xf32> to vector<24x8xbf16>
    %cst_53 = arith.constant dense<0.000000e+00> : vector<24x8xf32>
    %235 = tpu.matmul %232, %234, %cst_53 {dimension_numbers = #tpu.dot_dimension_numbers<[1], [0], [0], [1], [0, 0, 1, 1], [], []>} : vector<24x24xbf16>, vector<24x8xbf16>, vector<24x8xf32> -> vector<24x8xf32>
    %236 = vector.extract_strided_slice %219 {offsets = [1, 0, 0], sizes = [1, 24, 1], strides = [1, 1, 1]} : vector<4x24x1xf32> to vector<1x24x1xf32>
    %237 = vector.shape_cast %236 : vector<1x24x1xf32> to vector<24x1xf32>
    %238 = vector.broadcast %237 : vector<24x1xf32> to vector<24x8xf32>
    %239 = arith.mulf %235, %238 : vector<24x8xf32>
    %240 = vector.extract_strided_slice %218 {offsets = [2, 0, 0], sizes = [1, 24, 24], strides = [1, 1, 1]} : vector<4x24x24xf32> to vector<1x24x24xf32>
    %241 = vector.shape_cast %240 : vector<1x24x24xf32> to vector<24x24xf32>
    %242 = arith.truncf %241 : vector<24x24xf32> to vector<24x24xbf16>
    %243 = vector.extract_strided_slice %43 {offsets = [0, 16], sizes = [24, 8], strides = [1, 1]} : vector<24x32xf32> to vector<24x8xf32>
    %244 = arith.truncf %243 : vector<24x8xf32> to vector<24x8xbf16>
    %cst_54 = arith.constant dense<0.000000e+00> : vector<24x8xf32>
    %245 = tpu.matmul %242, %244, %cst_54 {dimension_numbers = #tpu.dot_dimension_numbers<[1], [0], [0], [1], [0, 0, 1, 1], [], []>} : vector<24x24xbf16>, vector<24x8xbf16>, vector<24x8xf32> -> vector<24x8xf32>
    %246 = vector.extract_strided_slice %219 {offsets = [2, 0, 0], sizes = [1, 24, 1], strides = [1, 1, 1]} : vector<4x24x1xf32> to vector<1x24x1xf32>
    %247 = vector.shape_cast %246 : vector<1x24x1xf32> to vector<24x1xf32>
    %248 = vector.broadcast %247 : vector<24x1xf32> to vector<24x8xf32>
    %249 = arith.mulf %245, %248 : vector<24x8xf32>
    %250 = vector.extract_strided_slice %218 {offsets = [3, 0, 0], sizes = [1, 24, 24], strides = [1, 1, 1]} : vector<4x24x24xf32> to vector<1x24x24xf32>
    %251 = vector.shape_cast %250 : vector<1x24x24xf32> to vector<24x24xf32>
    %252 = arith.truncf %251 : vector<24x24xf32> to vector<24x24xbf16>
    %253 = vector.extract_strided_slice %43 {offsets = [0, 24], sizes = [24, 8], strides = [1, 1]} : vector<24x32xf32> to vector<24x8xf32>
    %254 = arith.truncf %253 : vector<24x8xf32> to vector<24x8xbf16>
    %cst_55 = arith.constant dense<0.000000e+00> : vector<24x8xf32>
    %255 = tpu.matmul %252, %254, %cst_55 {dimension_numbers = #tpu.dot_dimension_numbers<[1], [0], [0], [1], [0, 0, 1, 1], [], []>} : vector<24x24xbf16>, vector<24x8xbf16>, vector<24x8xf32> -> vector<24x8xf32>
    %256 = vector.extract_strided_slice %219 {offsets = [3, 0, 0], sizes = [1, 24, 1], strides = [1, 1, 1]} : vector<4x24x1xf32> to vector<1x24x1xf32>
    %257 = vector.shape_cast %256 : vector<1x24x1xf32> to vector<24x1xf32>
    %258 = vector.broadcast %257 : vector<24x1xf32> to vector<24x8xf32>
    %259 = arith.mulf %255, %258 : vector<24x8xf32>
    %260 = tpu.concatenate %229, %239, %249, %259 in 1 : vector<24x8xf32>, vector<24x8xf32>, vector<24x8xf32>, vector<24x8xf32> -> vector<24x32xf32>
    %cst_56 = arith.constant 0.000000e+00 : f32
    %261 = vector.broadcast %cst_56 : f32 to vector<24x32xf32>
    %262 = arith.maximumf %260, %261 : vector<24x32xf32>
    %c0_57 = arith.constant 0 : index
    %c0_58 = arith.constant 0 : index
    %263 = vector.load %arg10[%c0_57, %c0_58] : memref<32x32xbf16, #tpu.memory_space<vmem>>, vector<32x32xbf16>
    %c0_59 = arith.constant 0 : index
    %c0_60 = arith.constant 0 : index
    %264 = vector.load %arg11[%c0_59, %c0_60] : memref<1x32xf32, #tpu.memory_space<vmem>>, vector<1x32xf32>
    %c0_61 = arith.constant 0 : index
    %c0_62 = arith.constant 0 : index
    %265 = vector.load %arg12[%c0_61, %c0_62] : memref<1x32xf32, #tpu.memory_space<vmem>>, vector<1x32xf32>
    %266 = arith.truncf %189 : vector<16x32xf32> to vector<16x32xbf16>
    %cst_63 = arith.constant dense<0.000000e+00> : vector<16x32xf32>
    %267 = tpu.matmul %266, %263, %cst_63 {dimension_numbers = #tpu.dot_dimension_numbers<[1], [0], [0], [1], [0, 0, 1, 1], [], []>} : vector<16x32xbf16>, vector<32x32xbf16>, vector<16x32xf32> -> vector<16x32xf32>
    %268 = vector.broadcast %264 : vector<1x32xf32> to vector<16x32xf32>
    %269 = arith.addf %267, %268 : vector<16x32xf32>
    %270 = math.tanh %269 : vector<16x32xf32>
    %271 = tpu.iota {dimensions = array<i32: 0>} : vector<16x1xi32>
    %c16_i32 = arith.constant 16 : i32
    %272 = vector.broadcast %c16_i32 : i32 to vector<16x1xi32>
    %273 = arith.cmpi slt, %271, %272 : vector<16x1xi32>
    %274 = arith.extui %273 : vector<16x1xi1> to vector<16x1xi32>
    %275 = arith.sitofp %274 : vector<16x1xi32> to vector<16x1xf32>
    %276 = vector.broadcast %275 : vector<16x1xf32> to vector<16x32xf32>
    %277 = arith.mulf %270, %276 : vector<16x32xf32>
    %cst_64 = arith.constant dense<0.000000e+00> : vector<32xf32>
    %278 = vector.multi_reduction <add>, %277, %cst_64 [0] : vector<16x32xf32> to vector<32xf32>
    %279 = vector.shape_cast %278 : vector<32xf32> to vector<1x32xf32>
    %cst_65 = arith.constant 6.250000e-02 : f32
    %280 = vector.broadcast %cst_65 : f32 to vector<1x32xf32>
    %281 = arith.mulf %279, %280 : vector<1x32xf32>
    %282 = arith.mulf %265, %281 : vector<1x32xf32>
    %283 = vector.shape_cast %282 : vector<1x32xf32> to vector<1x1x32xf32>
    %cst_66 = arith.constant dense<0.000000e+00> : vector<1xf32>
    %284 = vector.multi_reduction <add>, %283, %cst_66 [1, 2] : vector<1x1x32xf32> to vector<1xf32>
    %285 = vector.shape_cast %284 : vector<1xf32> to vector<1x1x1xf32>
    %286 = vector.extract %285[0, 0, 0] : f32 from vector<1x1x1xf32>
    %287 = vector.broadcast %286 : f32 to vector<1x1xf32>
    %288 = arith.subf %287, %287 : vector<1x1xf32>
    %289 = math.exp %288 : vector<1x1xf32>
    %290 = arith.divf %289, %289 : vector<1x1xf32>
    %291 = vector.broadcast %290 : vector<1x1xf32> to vector<16x32xf32>
    %292 = arith.mulf %291, %189 : vector<16x32xf32>
    %293 = tpu.concatenate %116, %262 in 0 : vector<24x32xf32>, vector<24x32xf32> -> vector<48x32xf32>
    %294 = arith.truncf %293 : vector<48x32xf32> to vector<48x32xbf16>
    %cst_67 = arith.constant dense<0.000000e+00> : vector<48x32xf32>
    %295 = tpu.matmul %294, %263, %cst_67 {dimension_numbers = #tpu.dot_dimension_numbers<[1], [0], [0], [1], [0, 0, 1, 1], [], []>} : vector<48x32xbf16>, vector<32x32xbf16>, vector<48x32xf32> -> vector<48x32xf32>
    %296 = vector.broadcast %264 : vector<1x32xf32> to vector<48x32xf32>
    %297 = arith.addf %295, %296 : vector<48x32xf32>
    %298 = math.tanh %297 : vector<48x32xf32>
    %299 = tpu.iota {dimensions = array<i32: 0>} : vector<24x1xi32>
    %c24_i32 = arith.constant 24 : i32
    %300 = vector.broadcast %c24_i32 : i32 to vector<24x1xi32>
    %301 = arith.cmpi slt, %299, %300 : vector<24x1xi32>
    %302 = arith.extui %301 : vector<24x1xi1> to vector<24x1xi32>
    %303 = arith.sitofp %302 : vector<24x1xi32> to vector<24x1xf32>
    %304 = vector.extract_strided_slice %298 {offsets = [0, 0], sizes = [24, 32], strides = [1, 1]} : vector<48x32xf32> to vector<24x32xf32>
    %305 = vector.broadcast %303 : vector<24x1xf32> to vector<24x32xf32>
    %306 = arith.mulf %304, %305 : vector<24x32xf32>
    %cst_68 = arith.constant dense<0.000000e+00> : vector<32xf32>
    %307 = vector.multi_reduction <add>, %306, %cst_68 [0] : vector<24x32xf32> to vector<32xf32>
    %308 = vector.shape_cast %307 : vector<32xf32> to vector<1x32xf32>
    %cst_69 = arith.constant 0.0416666679 : f32
    %309 = vector.broadcast %cst_69 : f32 to vector<1x32xf32>
    %310 = arith.mulf %308, %309 : vector<1x32xf32>
    %311 = arith.mulf %265, %310 : vector<1x32xf32>
    %312 = vector.shape_cast %311 : vector<1x32xf32> to vector<1x1x32xf32>
    %cst_70 = arith.constant dense<0.000000e+00> : vector<1xf32>
    %313 = vector.multi_reduction <add>, %312, %cst_70 [1, 2] : vector<1x1x32xf32> to vector<1xf32>
    %314 = vector.shape_cast %313 : vector<1xf32> to vector<1x1x1xf32>
    %315 = vector.extract %314[0, 0, 0] : f32 from vector<1x1x1xf32>
    %316 = vector.broadcast %315 : f32 to vector<1x1xf32>
    %317 = vector.extract_strided_slice %298 {offsets = [24, 0], sizes = [24, 32], strides = [1, 1]} : vector<48x32xf32> to vector<24x32xf32>
    %318 = vector.broadcast %303 : vector<24x1xf32> to vector<24x32xf32>
    %319 = arith.mulf %317, %318 : vector<24x32xf32>
    %cst_71 = arith.constant dense<0.000000e+00> : vector<32xf32>
    %320 = vector.multi_reduction <add>, %319, %cst_71 [0] : vector<24x32xf32> to vector<32xf32>
    %321 = vector.shape_cast %320 : vector<32xf32> to vector<1x32xf32>
    %cst_72 = arith.constant 0.0416666679 : f32
    %322 = vector.broadcast %cst_72 : f32 to vector<1x32xf32>
    %323 = arith.mulf %321, %322 : vector<1x32xf32>
    %324 = arith.mulf %265, %323 : vector<1x32xf32>
    %325 = vector.shape_cast %324 : vector<1x32xf32> to vector<1x1x32xf32>
    %cst_73 = arith.constant dense<0.000000e+00> : vector<1xf32>
    %326 = vector.multi_reduction <add>, %325, %cst_73 [1, 2] : vector<1x1x32xf32> to vector<1xf32>
    %327 = vector.shape_cast %326 : vector<1xf32> to vector<1x1x1xf32>
    %328 = vector.extract %327[0, 0, 0] : f32 from vector<1x1x1xf32>
    %329 = vector.broadcast %328 : f32 to vector<1x1xf32>
    %330 = arith.maximumf %316, %329 : vector<1x1xf32>
    %331 = arith.subf %316, %330 : vector<1x1xf32>
    %332 = math.exp %331 : vector<1x1xf32>
    %333 = arith.subf %329, %330 : vector<1x1xf32>
    %334 = math.exp %333 : vector<1x1xf32>
    %335 = arith.addf %332, %334 : vector<1x1xf32>
    %336 = arith.divf %332, %335 : vector<1x1xf32>
    %337 = vector.broadcast %336 : vector<1x1xf32> to vector<24x32xf32>
    %338 = arith.mulf %337, %116 : vector<24x32xf32>
    %339 = arith.divf %334, %335 : vector<1x1xf32>
    %340 = vector.broadcast %339 : vector<1x1xf32> to vector<24x32xf32>
    %341 = arith.mulf %340, %262 : vector<24x32xf32>
    %342 = arith.addf %338, %341 : vector<24x32xf32>
    %343 = arith.truncf %292 : vector<16x32xf32> to vector<16x32xbf16>
    %344 = arith.truncf %342 : vector<24x32xf32> to vector<24x32xbf16>
    %c0_74 = arith.constant 0 : index
    %c0_75 = arith.constant 0 : index
    %345 = vector.load %arg13[%c0_74, %c0_75] : memref<32x56xbf16, #tpu.memory_space<vmem>>, vector<32x56xbf16>
    %cst_76 = arith.constant dense<0.000000e+00> : vector<16x56xf32>
    %346 = tpu.matmul %343, %345, %cst_76 {dimension_numbers = #tpu.dot_dimension_numbers<[1], [0], [0], [1], [0, 0, 1, 1], [], []>} : vector<16x32xbf16>, vector<32x56xbf16>, vector<16x56xf32> -> vector<16x56xf32>
    %c0_77 = arith.constant 0 : index
    %c0_78 = arith.constant 0 : index
    %347 = vector.load %arg15[%c0_77, %c0_78] : memref<1x56xf32, #tpu.memory_space<vmem>>, vector<1x56xf32>
    %348 = vector.broadcast %347 : vector<1x56xf32> to vector<16x56xf32>
    %349 = arith.addf %346, %348 : vector<16x56xf32>
    %c0_79 = arith.constant 0 : index
    %c0_80 = arith.constant 0 : index
    %350 = vector.load %arg14[%c0_79, %c0_80] : memref<32x56xbf16, #tpu.memory_space<vmem>>, vector<32x56xbf16>
    %cst_81 = arith.constant dense<0.000000e+00> : vector<24x56xf32>
    %351 = tpu.matmul %344, %350, %cst_81 {dimension_numbers = #tpu.dot_dimension_numbers<[1], [0], [0], [1], [0, 0, 1, 1], [], []>} : vector<24x32xbf16>, vector<32x56xbf16>, vector<24x56xf32> -> vector<24x56xf32>
    %c0_82 = arith.constant 0 : index
    %c0_83 = arith.constant 0 : index
    %352 = vector.load %arg16[%c0_82, %c0_83] : memref<1x56xf32, #tpu.memory_space<vmem>>, vector<1x56xf32>
    %353 = vector.broadcast %352 : vector<1x56xf32> to vector<24x56xf32>
    %354 = arith.addf %351, %353 : vector<24x56xf32>
    %355 = vector.extract_strided_slice %349 {offsets = [0, 0], sizes = [16, 32], strides = [1, 1]} : vector<16x56xf32> to vector<16x32xf32>
    %356 = vector.extract_strided_slice %354 {offsets = [0, 0], sizes = [24, 32], strides = [1, 1]} : vector<24x56xf32> to vector<24x32xf32>
    %357 = vector.extract_strided_slice %349 {offsets = [0, 32], sizes = [16, 4], strides = [1, 1]} : vector<16x56xf32> to vector<16x4xf32>
    %358 = vector.extract_strided_slice %354 {offsets = [0, 44], sizes = [24, 4], strides = [1, 1]} : vector<24x56xf32> to vector<24x4xf32>
    %359 = tpu.transpose %357, [1, 0] : vector<16x4xf32> -> vector<4x16xf32>
    %360 = tpu.transpose %358, [1, 0] : vector<24x4xf32> -> vector<4x24xf32>
    %361 = vector.shape_cast %360 : vector<4x24xf32> to vector<4x24x1xf32>
    %362 = vector.shape_cast %359 : vector<4x16xf32> to vector<4x1x16xf32>
    %363 = vector.broadcast %361 : vector<4x24x1xf32> to vector<4x24x16xf32>
    %364 = vector.broadcast %362 : vector<4x1x16xf32> to vector<4x24x16xf32>
    %365 = arith.addf %363, %364 : vector<4x24x16xf32>
    %cst_84 = arith.constant 0.000000e+00 : f32
    %366 = vector.broadcast %cst_84 : f32 to vector<4x24x16xf32>
    %367 = arith.cmpf oge, %365, %366 : vector<4x24x16xf32>
    %cst_85 = arith.constant 2.000000e-01 : f32
    %368 = vector.broadcast %cst_85 : f32 to vector<4x24x16xf32>
    %369 = arith.mulf %368, %365 : vector<4x24x16xf32>
    %370 = arith.select %367, %365, %369 : vector<4x24x16xi1>, vector<4x24x16xf32>
    %371 = vector.shape_cast %3 : vector<24x16xi1> to vector<1x24x16xi1>
    %cst_86 = arith.constant -1.000000e+30 : f32
    %372 = vector.shape_cast %371 : vector<1x24x16xi1> to vector<1x24x16xi1>
    %373 = vector.broadcast %372 : vector<1x24x16xi1> to vector<4x24x16xi1>
    %374 = vector.broadcast %cst_86 : f32 to vector<4x24x16xf32>
    %375 = arith.select %373, %370, %374 : vector<4x24x16xi1>, vector<4x24x16xf32>
    %cst_87 = arith.constant dense<0xFF800000> : vector<4x24xf32>
    %376 = vector.multi_reduction <maximumf>, %375, %cst_87 [2] : vector<4x24x16xf32> to vector<4x24xf32>
    %377 = vector.shape_cast %376 : vector<4x24xf32> to vector<4x24x1xf32>
    %378 = vector.broadcast %377 : vector<4x24x1xf32> to vector<4x24x16xf32>
    %379 = arith.subf %375, %378 : vector<4x24x16xf32>
    %380 = math.exp %379 : vector<4x24x16xf32>
    %cst_88 = arith.constant dense<0.000000e+00> : vector<4x24xf32>
    %381 = vector.multi_reduction <add>, %380, %cst_88 [2] : vector<4x24x16xf32> to vector<4x24xf32>
    %382 = vector.shape_cast %381 : vector<4x24xf32> to vector<4x24x1xf32>
    %383 = vector.shape_cast %9 : vector<24x1xf32> to vector<1x24x1xf32>
    %384 = vector.broadcast %383 : vector<1x24x1xf32> to vector<4x24x16xf32>
    %385 = arith.mulf %380, %384 : vector<4x24x16xf32>
    %386 = tpu.reciprocal %382 {approx = true} : vector<4x24x1xf32> -> vector<4x24x1xf32>
    %387 = vector.extract_strided_slice %385 {offsets = [0, 0, 0], sizes = [1, 24, 16], strides = [1, 1, 1]} : vector<4x24x16xf32> to vector<1x24x16xf32>
    %388 = vector.shape_cast %387 : vector<1x24x16xf32> to vector<24x16xf32>
    %389 = arith.truncf %388 : vector<24x16xf32> to vector<24x16xbf16>
    %390 = vector.extract_strided_slice %355 {offsets = [0, 0], sizes = [16, 8], strides = [1, 1]} : vector<16x32xf32> to vector<16x8xf32>
    %391 = arith.truncf %390 : vector<16x8xf32> to vector<16x8xbf16>
    %cst_89 = arith.constant dense<0.000000e+00> : vector<24x8xf32>
    %392 = tpu.matmul %389, %391, %cst_89 {dimension_numbers = #tpu.dot_dimension_numbers<[1], [0], [0], [1], [0, 0, 1, 1], [], []>} : vector<24x16xbf16>, vector<16x8xbf16>, vector<24x8xf32> -> vector<24x8xf32>
    %393 = vector.extract_strided_slice %386 {offsets = [0, 0, 0], sizes = [1, 24, 1], strides = [1, 1, 1]} : vector<4x24x1xf32> to vector<1x24x1xf32>
    %394 = vector.shape_cast %393 : vector<1x24x1xf32> to vector<24x1xf32>
    %395 = vector.broadcast %394 : vector<24x1xf32> to vector<24x8xf32>
    %396 = arith.mulf %392, %395 : vector<24x8xf32>
    %397 = vector.extract_strided_slice %385 {offsets = [1, 0, 0], sizes = [1, 24, 16], strides = [1, 1, 1]} : vector<4x24x16xf32> to vector<1x24x16xf32>
    %398 = vector.shape_cast %397 : vector<1x24x16xf32> to vector<24x16xf32>
    %399 = arith.truncf %398 : vector<24x16xf32> to vector<24x16xbf16>
    %400 = vector.extract_strided_slice %355 {offsets = [0, 8], sizes = [16, 8], strides = [1, 1]} : vector<16x32xf32> to vector<16x8xf32>
    %401 = arith.truncf %400 : vector<16x8xf32> to vector<16x8xbf16>
    %cst_90 = arith.constant dense<0.000000e+00> : vector<24x8xf32>
    %402 = tpu.matmul %399, %401, %cst_90 {dimension_numbers = #tpu.dot_dimension_numbers<[1], [0], [0], [1], [0, 0, 1, 1], [], []>} : vector<24x16xbf16>, vector<16x8xbf16>, vector<24x8xf32> -> vector<24x8xf32>
    %403 = vector.extract_strided_slice %386 {offsets = [1, 0, 0], sizes = [1, 24, 1], strides = [1, 1, 1]} : vector<4x24x1xf32> to vector<1x24x1xf32>
    %404 = vector.shape_cast %403 : vector<1x24x1xf32> to vector<24x1xf32>
    %405 = vector.broadcast %404 : vector<24x1xf32> to vector<24x8xf32>
    %406 = arith.mulf %402, %405 : vector<24x8xf32>
    %407 = vector.extract_strided_slice %385 {offsets = [2, 0, 0], sizes = [1, 24, 16], strides = [1, 1, 1]} : vector<4x24x16xf32> to vector<1x24x16xf32>
    %408 = vector.shape_cast %407 : vector<1x24x16xf32> to vector<24x16xf32>
    %409 = arith.truncf %408 : vector<24x16xf32> to vector<24x16xbf16>
    %410 = vector.extract_strided_slice %355 {offsets = [0, 16], sizes = [16, 8], strides = [1, 1]} : vector<16x32xf32> to vector<16x8xf32>
    %411 = arith.truncf %410 : vector<16x8xf32> to vector<16x8xbf16>
    %cst_91 = arith.constant dense<0.000000e+00> : vector<24x8xf32>
    %412 = tpu.matmul %409, %411, %cst_91 {dimension_numbers = #tpu.dot_dimension_numbers<[1], [0], [0], [1], [0, 0, 1, 1], [], []>} : vector<24x16xbf16>, vector<16x8xbf16>, vector<24x8xf32> -> vector<24x8xf32>
    %413 = vector.extract_strided_slice %386 {offsets = [2, 0, 0], sizes = [1, 24, 1], strides = [1, 1, 1]} : vector<4x24x1xf32> to vector<1x24x1xf32>
    %414 = vector.shape_cast %413 : vector<1x24x1xf32> to vector<24x1xf32>
    %415 = vector.broadcast %414 : vector<24x1xf32> to vector<24x8xf32>
    %416 = arith.mulf %412, %415 : vector<24x8xf32>
    %417 = vector.extract_strided_slice %385 {offsets = [3, 0, 0], sizes = [1, 24, 16], strides = [1, 1, 1]} : vector<4x24x16xf32> to vector<1x24x16xf32>
    %418 = vector.shape_cast %417 : vector<1x24x16xf32> to vector<24x16xf32>
    %419 = arith.truncf %418 : vector<24x16xf32> to vector<24x16xbf16>
    %420 = vector.extract_strided_slice %355 {offsets = [0, 24], sizes = [16, 8], strides = [1, 1]} : vector<16x32xf32> to vector<16x8xf32>
    %421 = arith.truncf %420 : vector<16x8xf32> to vector<16x8xbf16>
    %cst_92 = arith.constant dense<0.000000e+00> : vector<24x8xf32>
    %422 = tpu.matmul %419, %421, %cst_92 {dimension_numbers = #tpu.dot_dimension_numbers<[1], [0], [0], [1], [0, 0, 1, 1], [], []>} : vector<24x16xbf16>, vector<16x8xbf16>, vector<24x8xf32> -> vector<24x8xf32>
    %423 = vector.extract_strided_slice %386 {offsets = [3, 0, 0], sizes = [1, 24, 1], strides = [1, 1, 1]} : vector<4x24x1xf32> to vector<1x24x1xf32>
    %424 = vector.shape_cast %423 : vector<1x24x1xf32> to vector<24x1xf32>
    %425 = vector.broadcast %424 : vector<24x1xf32> to vector<24x8xf32>
    %426 = arith.mulf %422, %425 : vector<24x8xf32>
    %427 = tpu.concatenate %396, %406, %416, %426 in 1 : vector<24x8xf32>, vector<24x8xf32>, vector<24x8xf32>, vector<24x8xf32> -> vector<24x32xf32>
    %cst_93 = arith.constant 0.000000e+00 : f32
    %428 = vector.broadcast %cst_93 : f32 to vector<24x32xf32>
    %429 = arith.maximumf %427, %428 : vector<24x32xf32>
    %430 = vector.extract_strided_slice %354 {offsets = [0, 36], sizes = [24, 4], strides = [1, 1]} : vector<24x56xf32> to vector<24x4xf32>
    %431 = vector.extract_strided_slice %349 {offsets = [0, 48], sizes = [16, 4], strides = [1, 1]} : vector<16x56xf32> to vector<16x4xf32>
    %432 = tpu.transpose %430, [1, 0] : vector<24x4xf32> -> vector<4x24xf32>
    %433 = tpu.transpose %431, [1, 0] : vector<16x4xf32> -> vector<4x16xf32>
    %434 = vector.shape_cast %433 : vector<4x16xf32> to vector<4x16x1xf32>
    %435 = vector.shape_cast %432 : vector<4x24xf32> to vector<4x1x24xf32>
    %436 = vector.broadcast %434 : vector<4x16x1xf32> to vector<4x16x24xf32>
    %437 = vector.broadcast %435 : vector<4x1x24xf32> to vector<4x16x24xf32>
    %438 = arith.addf %436, %437 : vector<4x16x24xf32>
    %cst_94 = arith.constant 0.000000e+00 : f32
    %439 = vector.broadcast %cst_94 : f32 to vector<4x16x24xf32>
    %440 = arith.cmpf oge, %438, %439 : vector<4x16x24xf32>
    %cst_95 = arith.constant 2.000000e-01 : f32
    %441 = vector.broadcast %cst_95 : f32 to vector<4x16x24xf32>
    %442 = arith.mulf %441, %438 : vector<4x16x24xf32>
    %443 = arith.select %440, %438, %442 : vector<4x16x24xi1>, vector<4x16x24xf32>
    %444 = vector.shape_cast %13 : vector<16x24xi1> to vector<1x16x24xi1>
    %cst_96 = arith.constant -1.000000e+30 : f32
    %445 = vector.shape_cast %444 : vector<1x16x24xi1> to vector<1x16x24xi1>
    %446 = vector.broadcast %445 : vector<1x16x24xi1> to vector<4x16x24xi1>
    %447 = vector.broadcast %cst_96 : f32 to vector<4x16x24xf32>
    %448 = arith.select %446, %443, %447 : vector<4x16x24xi1>, vector<4x16x24xf32>
    %cst_97 = arith.constant dense<0xFF800000> : vector<4x16xf32>
    %449 = vector.multi_reduction <maximumf>, %448, %cst_97 [2] : vector<4x16x24xf32> to vector<4x16xf32>
    %450 = vector.shape_cast %449 : vector<4x16xf32> to vector<4x16x1xf32>
    %451 = vector.broadcast %450 : vector<4x16x1xf32> to vector<4x16x24xf32>
    %452 = arith.subf %448, %451 : vector<4x16x24xf32>
    %453 = math.exp %452 : vector<4x16x24xf32>
    %cst_98 = arith.constant dense<0.000000e+00> : vector<4x16xf32>
    %454 = vector.multi_reduction <add>, %453, %cst_98 [2] : vector<4x16x24xf32> to vector<4x16xf32>
    %455 = vector.shape_cast %454 : vector<4x16xf32> to vector<4x16x1xf32>
    %456 = vector.shape_cast %19 : vector<16x1xf32> to vector<1x16x1xf32>
    %457 = vector.broadcast %456 : vector<1x16x1xf32> to vector<4x16x24xf32>
    %458 = arith.mulf %453, %457 : vector<4x16x24xf32>
    %459 = tpu.reciprocal %455 {approx = true} : vector<4x16x1xf32> -> vector<4x16x1xf32>
    %460 = vector.extract_strided_slice %458 {offsets = [0, 0, 0], sizes = [1, 16, 24], strides = [1, 1, 1]} : vector<4x16x24xf32> to vector<1x16x24xf32>
    %461 = vector.shape_cast %460 : vector<1x16x24xf32> to vector<16x24xf32>
    %462 = arith.truncf %461 : vector<16x24xf32> to vector<16x24xbf16>
    %463 = vector.extract_strided_slice %356 {offsets = [0, 0], sizes = [24, 8], strides = [1, 1]} : vector<24x32xf32> to vector<24x8xf32>
    %464 = arith.truncf %463 : vector<24x8xf32> to vector<24x8xbf16>
    %cst_99 = arith.constant dense<0.000000e+00> : vector<16x8xf32>
    %465 = tpu.matmul %462, %464, %cst_99 {dimension_numbers = #tpu.dot_dimension_numbers<[1], [0], [0], [1], [0, 0, 1, 1], [], []>} : vector<16x24xbf16>, vector<24x8xbf16>, vector<16x8xf32> -> vector<16x8xf32>
    %466 = vector.extract_strided_slice %459 {offsets = [0, 0, 0], sizes = [1, 16, 1], strides = [1, 1, 1]} : vector<4x16x1xf32> to vector<1x16x1xf32>
    %467 = vector.shape_cast %466 : vector<1x16x1xf32> to vector<16x1xf32>
    %468 = vector.broadcast %467 : vector<16x1xf32> to vector<16x8xf32>
    %469 = arith.mulf %465, %468 : vector<16x8xf32>
    %470 = vector.extract_strided_slice %458 {offsets = [1, 0, 0], sizes = [1, 16, 24], strides = [1, 1, 1]} : vector<4x16x24xf32> to vector<1x16x24xf32>
    %471 = vector.shape_cast %470 : vector<1x16x24xf32> to vector<16x24xf32>
    %472 = arith.truncf %471 : vector<16x24xf32> to vector<16x24xbf16>
    %473 = vector.extract_strided_slice %356 {offsets = [0, 8], sizes = [24, 8], strides = [1, 1]} : vector<24x32xf32> to vector<24x8xf32>
    %474 = arith.truncf %473 : vector<24x8xf32> to vector<24x8xbf16>
    %cst_100 = arith.constant dense<0.000000e+00> : vector<16x8xf32>
    %475 = tpu.matmul %472, %474, %cst_100 {dimension_numbers = #tpu.dot_dimension_numbers<[1], [0], [0], [1], [0, 0, 1, 1], [], []>} : vector<16x24xbf16>, vector<24x8xbf16>, vector<16x8xf32> -> vector<16x8xf32>
    %476 = vector.extract_strided_slice %459 {offsets = [1, 0, 0], sizes = [1, 16, 1], strides = [1, 1, 1]} : vector<4x16x1xf32> to vector<1x16x1xf32>
    %477 = vector.shape_cast %476 : vector<1x16x1xf32> to vector<16x1xf32>
    %478 = vector.broadcast %477 : vector<16x1xf32> to vector<16x8xf32>
    %479 = arith.mulf %475, %478 : vector<16x8xf32>
    %480 = vector.extract_strided_slice %458 {offsets = [2, 0, 0], sizes = [1, 16, 24], strides = [1, 1, 1]} : vector<4x16x24xf32> to vector<1x16x24xf32>
    %481 = vector.shape_cast %480 : vector<1x16x24xf32> to vector<16x24xf32>
    %482 = arith.truncf %481 : vector<16x24xf32> to vector<16x24xbf16>
    %483 = vector.extract_strided_slice %356 {offsets = [0, 16], sizes = [24, 8], strides = [1, 1]} : vector<24x32xf32> to vector<24x8xf32>
    %484 = arith.truncf %483 : vector<24x8xf32> to vector<24x8xbf16>
    %cst_101 = arith.constant dense<0.000000e+00> : vector<16x8xf32>
    %485 = tpu.matmul %482, %484, %cst_101 {dimension_numbers = #tpu.dot_dimension_numbers<[1], [0], [0], [1], [0, 0, 1, 1], [], []>} : vector<16x24xbf16>, vector<24x8xbf16>, vector<16x8xf32> -> vector<16x8xf32>
    %486 = vector.extract_strided_slice %459 {offsets = [2, 0, 0], sizes = [1, 16, 1], strides = [1, 1, 1]} : vector<4x16x1xf32> to vector<1x16x1xf32>
    %487 = vector.shape_cast %486 : vector<1x16x1xf32> to vector<16x1xf32>
    %488 = vector.broadcast %487 : vector<16x1xf32> to vector<16x8xf32>
    %489 = arith.mulf %485, %488 : vector<16x8xf32>
    %490 = vector.extract_strided_slice %458 {offsets = [3, 0, 0], sizes = [1, 16, 24], strides = [1, 1, 1]} : vector<4x16x24xf32> to vector<1x16x24xf32>
    %491 = vector.shape_cast %490 : vector<1x16x24xf32> to vector<16x24xf32>
    %492 = arith.truncf %491 : vector<16x24xf32> to vector<16x24xbf16>
    %493 = vector.extract_strided_slice %356 {offsets = [0, 24], sizes = [24, 8], strides = [1, 1]} : vector<24x32xf32> to vector<24x8xf32>
    %494 = arith.truncf %493 : vector<24x8xf32> to vector<24x8xbf16>
    %cst_102 = arith.constant dense<0.000000e+00> : vector<16x8xf32>
    %495 = tpu.matmul %492, %494, %cst_102 {dimension_numbers = #tpu.dot_dimension_numbers<[1], [0], [0], [1], [0, 0, 1, 1], [], []>} : vector<16x24xbf16>, vector<24x8xbf16>, vector<16x8xf32> -> vector<16x8xf32>
    %496 = vector.extract_strided_slice %459 {offsets = [3, 0, 0], sizes = [1, 16, 1], strides = [1, 1, 1]} : vector<4x16x1xf32> to vector<1x16x1xf32>
    %497 = vector.shape_cast %496 : vector<1x16x1xf32> to vector<16x1xf32>
    %498 = vector.broadcast %497 : vector<16x1xf32> to vector<16x8xf32>
    %499 = arith.mulf %495, %498 : vector<16x8xf32>
    %500 = tpu.concatenate %469, %479, %489, %499 in 1 : vector<16x8xf32>, vector<16x8xf32>, vector<16x8xf32>, vector<16x8xf32> -> vector<16x32xf32>
    %cst_103 = arith.constant 0.000000e+00 : f32
    %501 = vector.broadcast %cst_103 : f32 to vector<16x32xf32>
    %502 = arith.maximumf %500, %501 : vector<16x32xf32>
    %503 = vector.extract_strided_slice %354 {offsets = [0, 40], sizes = [24, 4], strides = [1, 1]} : vector<24x56xf32> to vector<24x4xf32>
    %504 = vector.extract_strided_slice %354 {offsets = [0, 52], sizes = [24, 4], strides = [1, 1]} : vector<24x56xf32> to vector<24x4xf32>
    %505 = tpu.transpose %503, [1, 0] : vector<24x4xf32> -> vector<4x24xf32>
    %506 = tpu.transpose %504, [1, 0] : vector<24x4xf32> -> vector<4x24xf32>
    %507 = vector.shape_cast %506 : vector<4x24xf32> to vector<4x24x1xf32>
    %508 = vector.shape_cast %505 : vector<4x24xf32> to vector<4x1x24xf32>
    %509 = vector.broadcast %507 : vector<4x24x1xf32> to vector<4x24x24xf32>
    %510 = vector.broadcast %508 : vector<4x1x24xf32> to vector<4x24x24xf32>
    %511 = arith.addf %509, %510 : vector<4x24x24xf32>
    %cst_104 = arith.constant 0.000000e+00 : f32
    %512 = vector.broadcast %cst_104 : f32 to vector<4x24x24xf32>
    %513 = arith.cmpf oge, %511, %512 : vector<4x24x24xf32>
    %cst_105 = arith.constant 2.000000e-01 : f32
    %514 = vector.broadcast %cst_105 : f32 to vector<4x24x24xf32>
    %515 = arith.mulf %514, %511 : vector<4x24x24xf32>
    %516 = arith.select %513, %511, %515 : vector<4x24x24xi1>, vector<4x24x24xf32>
    %517 = vector.shape_cast %23 : vector<24x24xi1> to vector<1x24x24xi1>
    %cst_106 = arith.constant -1.000000e+30 : f32
    %518 = vector.shape_cast %517 : vector<1x24x24xi1> to vector<1x24x24xi1>
    %519 = vector.broadcast %518 : vector<1x24x24xi1> to vector<4x24x24xi1>
    %520 = vector.broadcast %cst_106 : f32 to vector<4x24x24xf32>
    %521 = arith.select %519, %516, %520 : vector<4x24x24xi1>, vector<4x24x24xf32>
    %cst_107 = arith.constant dense<0xFF800000> : vector<4x24xf32>
    %522 = vector.multi_reduction <maximumf>, %521, %cst_107 [2] : vector<4x24x24xf32> to vector<4x24xf32>
    %523 = vector.shape_cast %522 : vector<4x24xf32> to vector<4x24x1xf32>
    %524 = vector.broadcast %523 : vector<4x24x1xf32> to vector<4x24x24xf32>
    %525 = arith.subf %521, %524 : vector<4x24x24xf32>
    %526 = math.exp %525 : vector<4x24x24xf32>
    %cst_108 = arith.constant dense<0.000000e+00> : vector<4x24xf32>
    %527 = vector.multi_reduction <add>, %526, %cst_108 [2] : vector<4x24x24xf32> to vector<4x24xf32>
    %528 = vector.shape_cast %527 : vector<4x24xf32> to vector<4x24x1xf32>
    %529 = vector.shape_cast %29 : vector<24x1xf32> to vector<1x24x1xf32>
    %530 = vector.broadcast %529 : vector<1x24x1xf32> to vector<4x24x24xf32>
    %531 = arith.mulf %526, %530 : vector<4x24x24xf32>
    %532 = tpu.reciprocal %528 {approx = true} : vector<4x24x1xf32> -> vector<4x24x1xf32>
    %533 = vector.extract_strided_slice %531 {offsets = [0, 0, 0], sizes = [1, 24, 24], strides = [1, 1, 1]} : vector<4x24x24xf32> to vector<1x24x24xf32>
    %534 = vector.shape_cast %533 : vector<1x24x24xf32> to vector<24x24xf32>
    %535 = arith.truncf %534 : vector<24x24xf32> to vector<24x24xbf16>
    %536 = vector.extract_strided_slice %356 {offsets = [0, 0], sizes = [24, 8], strides = [1, 1]} : vector<24x32xf32> to vector<24x8xf32>
    %537 = arith.truncf %536 : vector<24x8xf32> to vector<24x8xbf16>
    %cst_109 = arith.constant dense<0.000000e+00> : vector<24x8xf32>
    %538 = tpu.matmul %535, %537, %cst_109 {dimension_numbers = #tpu.dot_dimension_numbers<[1], [0], [0], [1], [0, 0, 1, 1], [], []>} : vector<24x24xbf16>, vector<24x8xbf16>, vector<24x8xf32> -> vector<24x8xf32>
    %539 = vector.extract_strided_slice %532 {offsets = [0, 0, 0], sizes = [1, 24, 1], strides = [1, 1, 1]} : vector<4x24x1xf32> to vector<1x24x1xf32>
    %540 = vector.shape_cast %539 : vector<1x24x1xf32> to vector<24x1xf32>
    %541 = vector.broadcast %540 : vector<24x1xf32> to vector<24x8xf32>
    %542 = arith.mulf %538, %541 : vector<24x8xf32>
    %543 = vector.extract_strided_slice %531 {offsets = [1, 0, 0], sizes = [1, 24, 24], strides = [1, 1, 1]} : vector<4x24x24xf32> to vector<1x24x24xf32>
    %544 = vector.shape_cast %543 : vector<1x24x24xf32> to vector<24x24xf32>
    %545 = arith.truncf %544 : vector<24x24xf32> to vector<24x24xbf16>
    %546 = vector.extract_strided_slice %356 {offsets = [0, 8], sizes = [24, 8], strides = [1, 1]} : vector<24x32xf32> to vector<24x8xf32>
    %547 = arith.truncf %546 : vector<24x8xf32> to vector<24x8xbf16>
    %cst_110 = arith.constant dense<0.000000e+00> : vector<24x8xf32>
    %548 = tpu.matmul %545, %547, %cst_110 {dimension_numbers = #tpu.dot_dimension_numbers<[1], [0], [0], [1], [0, 0, 1, 1], [], []>} : vector<24x24xbf16>, vector<24x8xbf16>, vector<24x8xf32> -> vector<24x8xf32>
    %549 = vector.extract_strided_slice %532 {offsets = [1, 0, 0], sizes = [1, 24, 1], strides = [1, 1, 1]} : vector<4x24x1xf32> to vector<1x24x1xf32>
    %550 = vector.shape_cast %549 : vector<1x24x1xf32> to vector<24x1xf32>
    %551 = vector.broadcast %550 : vector<24x1xf32> to vector<24x8xf32>
    %552 = arith.mulf %548, %551 : vector<24x8xf32>
    %553 = vector.extract_strided_slice %531 {offsets = [2, 0, 0], sizes = [1, 24, 24], strides = [1, 1, 1]} : vector<4x24x24xf32> to vector<1x24x24xf32>
    %554 = vector.shape_cast %553 : vector<1x24x24xf32> to vector<24x24xf32>
    %555 = arith.truncf %554 : vector<24x24xf32> to vector<24x24xbf16>
    %556 = vector.extract_strided_slice %356 {offsets = [0, 16], sizes = [24, 8], strides = [1, 1]} : vector<24x32xf32> to vector<24x8xf32>
    %557 = arith.truncf %556 : vector<24x8xf32> to vector<24x8xbf16>
    %cst_111 = arith.constant dense<0.000000e+00> : vector<24x8xf32>
    %558 = tpu.matmul %555, %557, %cst_111 {dimension_numbers = #tpu.dot_dimension_numbers<[1], [0], [0], [1], [0, 0, 1, 1], [], []>} : vector<24x24xbf16>, vector<24x8xbf16>, vector<24x8xf32> -> vector<24x8xf32>
    %559 = vector.extract_strided_slice %532 {offsets = [2, 0, 0], sizes = [1, 24, 1], strides = [1, 1, 1]} : vector<4x24x1xf32> to vector<1x24x1xf32>
    %560 = vector.shape_cast %559 : vector<1x24x1xf32> to vector<24x1xf32>
    %561 = vector.broadcast %560 : vector<24x1xf32> to vector<24x8xf32>
    %562 = arith.mulf %558, %561 : vector<24x8xf32>
    %563 = vector.extract_strided_slice %531 {offsets = [3, 0, 0], sizes = [1, 24, 24], strides = [1, 1, 1]} : vector<4x24x24xf32> to vector<1x24x24xf32>
    %564 = vector.shape_cast %563 : vector<1x24x24xf32> to vector<24x24xf32>
    %565 = arith.truncf %564 : vector<24x24xf32> to vector<24x24xbf16>
    %566 = vector.extract_strided_slice %356 {offsets = [0, 24], sizes = [24, 8], strides = [1, 1]} : vector<24x32xf32> to vector<24x8xf32>
    %567 = arith.truncf %566 : vector<24x8xf32> to vector<24x8xbf16>
    %cst_112 = arith.constant dense<0.000000e+00> : vector<24x8xf32>
    %568 = tpu.matmul %565, %567, %cst_112 {dimension_numbers = #tpu.dot_dimension_numbers<[1], [0], [0], [1], [0, 0, 1, 1], [], []>} : vector<24x24xbf16>, vector<24x8xbf16>, vector<24x8xf32> -> vector<24x8xf32>
    %569 = vector.extract_strided_slice %532 {offsets = [3, 0, 0], sizes = [1, 24, 1], strides = [1, 1, 1]} : vector<4x24x1xf32> to vector<1x24x1xf32>
    %570 = vector.shape_cast %569 : vector<1x24x1xf32> to vector<24x1xf32>
    %571 = vector.broadcast %570 : vector<24x1xf32> to vector<24x8xf32>
    %572 = arith.mulf %568, %571 : vector<24x8xf32>
    %573 = tpu.concatenate %542, %552, %562, %572 in 1 : vector<24x8xf32>, vector<24x8xf32>, vector<24x8xf32>, vector<24x8xf32> -> vector<24x32xf32>
    %cst_113 = arith.constant 0.000000e+00 : f32
    %574 = vector.broadcast %cst_113 : f32 to vector<24x32xf32>
    %575 = arith.maximumf %573, %574 : vector<24x32xf32>
    %c0_114 = arith.constant 0 : index
    %c0_115 = arith.constant 0 : index
    %576 = vector.load %arg17[%c0_114, %c0_115] : memref<32x32xbf16, #tpu.memory_space<vmem>>, vector<32x32xbf16>
    %c0_116 = arith.constant 0 : index
    %c0_117 = arith.constant 0 : index
    %577 = vector.load %arg18[%c0_116, %c0_117] : memref<1x32xf32, #tpu.memory_space<vmem>>, vector<1x32xf32>
    %c0_118 = arith.constant 0 : index
    %c0_119 = arith.constant 0 : index
    %578 = vector.load %arg19[%c0_118, %c0_119] : memref<1x32xf32, #tpu.memory_space<vmem>>, vector<1x32xf32>
    %579 = arith.truncf %502 : vector<16x32xf32> to vector<16x32xbf16>
    %cst_120 = arith.constant dense<0.000000e+00> : vector<16x32xf32>
    %580 = tpu.matmul %579, %576, %cst_120 {dimension_numbers = #tpu.dot_dimension_numbers<[1], [0], [0], [1], [0, 0, 1, 1], [], []>} : vector<16x32xbf16>, vector<32x32xbf16>, vector<16x32xf32> -> vector<16x32xf32>
    %581 = vector.broadcast %577 : vector<1x32xf32> to vector<16x32xf32>
    %582 = arith.addf %580, %581 : vector<16x32xf32>
    %583 = math.tanh %582 : vector<16x32xf32>
    %584 = tpu.iota {dimensions = array<i32: 0>} : vector<16x1xi32>
    %c16_i32_121 = arith.constant 16 : i32
    %585 = vector.broadcast %c16_i32_121 : i32 to vector<16x1xi32>
    %586 = arith.cmpi slt, %584, %585 : vector<16x1xi32>
    %587 = arith.extui %586 : vector<16x1xi1> to vector<16x1xi32>
    %588 = arith.sitofp %587 : vector<16x1xi32> to vector<16x1xf32>
    %589 = vector.broadcast %588 : vector<16x1xf32> to vector<16x32xf32>
    %590 = arith.mulf %583, %589 : vector<16x32xf32>
    %cst_122 = arith.constant dense<0.000000e+00> : vector<32xf32>
    %591 = vector.multi_reduction <add>, %590, %cst_122 [0] : vector<16x32xf32> to vector<32xf32>
    %592 = vector.shape_cast %591 : vector<32xf32> to vector<1x32xf32>
    %cst_123 = arith.constant 6.250000e-02 : f32
    %593 = vector.broadcast %cst_123 : f32 to vector<1x32xf32>
    %594 = arith.mulf %592, %593 : vector<1x32xf32>
    %595 = arith.mulf %578, %594 : vector<1x32xf32>
    %596 = vector.shape_cast %595 : vector<1x32xf32> to vector<1x1x32xf32>
    %cst_124 = arith.constant dense<0.000000e+00> : vector<1xf32>
    %597 = vector.multi_reduction <add>, %596, %cst_124 [1, 2] : vector<1x1x32xf32> to vector<1xf32>
    %598 = vector.shape_cast %597 : vector<1xf32> to vector<1x1x1xf32>
    %599 = vector.extract %598[0, 0, 0] : f32 from vector<1x1x1xf32>
    %600 = vector.broadcast %599 : f32 to vector<1x1xf32>
    %601 = arith.subf %600, %600 : vector<1x1xf32>
    %602 = math.exp %601 : vector<1x1xf32>
    %603 = arith.divf %602, %602 : vector<1x1xf32>
    %604 = vector.broadcast %603 : vector<1x1xf32> to vector<16x32xf32>
    %605 = arith.mulf %604, %502 : vector<16x32xf32>
    %606 = tpu.concatenate %429, %575 in 0 : vector<24x32xf32>, vector<24x32xf32> -> vector<48x32xf32>
    %607 = arith.truncf %606 : vector<48x32xf32> to vector<48x32xbf16>
    %cst_125 = arith.constant dense<0.000000e+00> : vector<48x32xf32>
    %608 = tpu.matmul %607, %576, %cst_125 {dimension_numbers = #tpu.dot_dimension_numbers<[1], [0], [0], [1], [0, 0, 1, 1], [], []>} : vector<48x32xbf16>, vector<32x32xbf16>, vector<48x32xf32> -> vector<48x32xf32>
    %609 = vector.broadcast %577 : vector<1x32xf32> to vector<48x32xf32>
    %610 = arith.addf %608, %609 : vector<48x32xf32>
    %611 = math.tanh %610 : vector<48x32xf32>
    %612 = tpu.iota {dimensions = array<i32: 0>} : vector<24x1xi32>
    %c24_i32_126 = arith.constant 24 : i32
    %613 = vector.broadcast %c24_i32_126 : i32 to vector<24x1xi32>
    %614 = arith.cmpi slt, %612, %613 : vector<24x1xi32>
    %615 = arith.extui %614 : vector<24x1xi1> to vector<24x1xi32>
    %616 = arith.sitofp %615 : vector<24x1xi32> to vector<24x1xf32>
    %617 = vector.extract_strided_slice %611 {offsets = [0, 0], sizes = [24, 32], strides = [1, 1]} : vector<48x32xf32> to vector<24x32xf32>
    %618 = vector.broadcast %616 : vector<24x1xf32> to vector<24x32xf32>
    %619 = arith.mulf %617, %618 : vector<24x32xf32>
    %cst_127 = arith.constant dense<0.000000e+00> : vector<32xf32>
    %620 = vector.multi_reduction <add>, %619, %cst_127 [0] : vector<24x32xf32> to vector<32xf32>
    %621 = vector.shape_cast %620 : vector<32xf32> to vector<1x32xf32>
    %cst_128 = arith.constant 0.0416666679 : f32
    %622 = vector.broadcast %cst_128 : f32 to vector<1x32xf32>
    %623 = arith.mulf %621, %622 : vector<1x32xf32>
    %624 = arith.mulf %578, %623 : vector<1x32xf32>
    %625 = vector.shape_cast %624 : vector<1x32xf32> to vector<1x1x32xf32>
    %cst_129 = arith.constant dense<0.000000e+00> : vector<1xf32>
    %626 = vector.multi_reduction <add>, %625, %cst_129 [1, 2] : vector<1x1x32xf32> to vector<1xf32>
    %627 = vector.shape_cast %626 : vector<1xf32> to vector<1x1x1xf32>
    %628 = vector.extract %627[0, 0, 0] : f32 from vector<1x1x1xf32>
    %629 = vector.broadcast %628 : f32 to vector<1x1xf32>
    %630 = vector.extract_strided_slice %611 {offsets = [24, 0], sizes = [24, 32], strides = [1, 1]} : vector<48x32xf32> to vector<24x32xf32>
    %631 = vector.broadcast %616 : vector<24x1xf32> to vector<24x32xf32>
    %632 = arith.mulf %630, %631 : vector<24x32xf32>
    %cst_130 = arith.constant dense<0.000000e+00> : vector<32xf32>
    %633 = vector.multi_reduction <add>, %632, %cst_130 [0] : vector<24x32xf32> to vector<32xf32>
    %634 = vector.shape_cast %633 : vector<32xf32> to vector<1x32xf32>
    %cst_131 = arith.constant 0.0416666679 : f32
    %635 = vector.broadcast %cst_131 : f32 to vector<1x32xf32>
    %636 = arith.mulf %634, %635 : vector<1x32xf32>
    %637 = arith.mulf %578, %636 : vector<1x32xf32>
    %638 = vector.shape_cast %637 : vector<1x32xf32> to vector<1x1x32xf32>
    %cst_132 = arith.constant dense<0.000000e+00> : vector<1xf32>
    %639 = vector.multi_reduction <add>, %638, %cst_132 [1, 2] : vector<1x1x32xf32> to vector<1xf32>
    %640 = vector.shape_cast %639 : vector<1xf32> to vector<1x1x1xf32>
    %641 = vector.extract %640[0, 0, 0] : f32 from vector<1x1x1xf32>
    %642 = vector.broadcast %641 : f32 to vector<1x1xf32>
    %643 = arith.maximumf %629, %642 : vector<1x1xf32>
    %644 = arith.subf %629, %643 : vector<1x1xf32>
    %645 = math.exp %644 : vector<1x1xf32>
    %646 = arith.subf %642, %643 : vector<1x1xf32>
    %647 = math.exp %646 : vector<1x1xf32>
    %648 = arith.addf %645, %647 : vector<1x1xf32>
    %649 = arith.divf %645, %648 : vector<1x1xf32>
    %650 = vector.broadcast %649 : vector<1x1xf32> to vector<24x32xf32>
    %651 = arith.mulf %650, %429 : vector<24x32xf32>
    %652 = arith.divf %647, %648 : vector<1x1xf32>
    %653 = vector.broadcast %652 : vector<1x1xf32> to vector<24x32xf32>
    %654 = arith.mulf %653, %575 : vector<24x32xf32>
    %655 = arith.addf %651, %654 : vector<24x32xf32>
    %cst_133 = arith.constant 0.000000e+00 : f32
    %656 = vector.broadcast %cst_133 : f32 to vector<8x32xf32>
    %657 = tpu.concatenate %605, %656 in 0 : vector<16x32xf32>, vector<8x32xf32> -> vector<24x32xf32>
    %658 = tpu.concatenate %657, %655 in 1 : vector<24x32xf32>, vector<24x32xf32> -> vector<24x64xf32>
    %c0_134 = arith.constant 0 : index
    %c0_135 = arith.constant 0 : index
    %659 = vector.load %arg20[%c0_134, %c0_135] : memref<24x64xf32, #tpu.memory_space<vmem>>, vector<24x64xf32>
    tpu.vector_store %arg20[%c0_134, %c0_135], %658 {strides = array<i32>} : memref<24x64xf32, #tpu.memory_space<vmem>>, vector<24x64xf32>,
    return
  }
  func.func @transform_0(%arg0: i32) -> (i32, i32) {
    %c0_i32 = arith.constant 0 : i32
    %c0_i32_0 = arith.constant 0 : i32
    %c0_i32_1 = arith.constant 0 : i32
    return %c0_i32, %c0_i32_0 : i32, i32
  }
  func.func @transform_1(%arg0: i32) -> (i32, i32) {
    %c0_i32 = arith.constant 0 : i32
    %c0_i32_0 = arith.constant 0 : i32
    %c0_i32_1 = arith.constant 0 : i32
    return %c0_i32, %c0_i32_0 : i32, i32
  }
  func.func @transform_2(%arg0: i32) -> (i32, i32) {
    %c0_i32 = arith.constant 0 : i32
    %c0_i32_0 = arith.constant 0 : i32
    %c0_i32_1 = arith.constant 0 : i32
    return %c0_i32, %c0_i32_0 : i32, i32
  }
  func.func @transform_3(%arg0: i32) -> (i32, i32) {
    %c0_i32 = arith.constant 0 : i32
    %c0_i32_0 = arith.constant 0 : i32
    %c0_i32_1 = arith.constant 0 : i32
    return %c0_i32, %c0_i32_0 : i32, i32
  }
  func.func @transform_4(%arg0: i32) -> (i32, i32) {
    %c0_i32 = arith.constant 0 : i32
    %c0_i32_0 = arith.constant 0 : i32
    %c0_i32_1 = arith.constant 0 : i32
    return %c0_i32, %c0_i32_0 : i32, i32
  }
  func.func @transform_5(%arg0: i32) -> (i32, i32) {
    %c0_i32 = arith.constant 0 : i32
    %c0_i32_0 = arith.constant 0 : i32
    %c0_i32_1 = arith.constant 0 : i32
    return %c0_i32, %c0_i32_0 : i32, i32
  }
  func.func @transform_6(%arg0: i32) -> (i32, i32) {
    %c0_i32 = arith.constant 0 : i32
    %c0_i32_0 = arith.constant 0 : i32
    %c0_i32_1 = arith.constant 0 : i32
    return %c0_i32, %c0_i32_0 : i32, i32
  }
  func.func @transform_7(%arg0: i32) -> (i32, i32) {
    %c0_i32 = arith.constant 0 : i32
    %c0_i32_0 = arith.constant 0 : i32
    %c0_i32_1 = arith.constant 0 : i32
    return %c0_i32, %c0_i32_0 : i32, i32
  }
  func.func @transform_8(%arg0: i32) -> (i32, i32) {
    %c0_i32 = arith.constant 0 : i32
    %c0_i32_0 = arith.constant 0 : i32
    %c0_i32_1 = arith.constant 0 : i32
    return %c0_i32, %c0_i32_0 : i32, i32
  }
  func.func @transform_9(%arg0: i32) -> (i32, i32) {
    %c0_i32 = arith.constant 0 : i32
    %c0_i32_0 = arith.constant 0 : i32
    %c0_i32_1 = arith.constant 0 : i32
    return %c0_i32, %c0_i32_0 : i32, i32
  }
  func.func @transform_10(%arg0: i32) -> (i32, i32) {
    %c0_i32 = arith.constant 0 : i32
    %c0_i32_0 = arith.constant 0 : i32
    %c0_i32_1 = arith.constant 0 : i32
    return %c0_i32, %c0_i32_0 : i32, i32
  }
  func.func @transform_11(%arg0: i32) -> (i32, i32) {
    %c0_i32 = arith.constant 0 : i32
    %c0_i32_0 = arith.constant 0 : i32
    %c0_i32_1 = arith.constant 0 : i32
    return %c0_i32, %c0_i32_0 : i32, i32
  }
  func.func @transform_12(%arg0: i32) -> (i32, i32) {
    %c0_i32 = arith.constant 0 : i32
    %c0_i32_0 = arith.constant 0 : i32
    %c0_i32_1 = arith.constant 0 : i32
    return %c0_i32, %c0_i32_0 : i32, i32
  }
  func.func @transform_13(%arg0: i32) -> (i32, i32) {
    %c0_i32 = arith.constant 0 : i32
    %c0_i32_0 = arith.constant 0 : i32
    %c0_i32_1 = arith.constant 0 : i32
    return %c0_i32, %c0_i32_0 : i32, i32
  }
  func.func @transform_14(%arg0: i32) -> (i32, i32) {
    %c0_i32 = arith.constant 0 : i32
    %c0_i32_0 = arith.constant 0 : i32
    %c0_i32_1 = arith.constant 0 : i32
    return %c0_i32, %c0_i32_0 : i32, i32
  }
  func.func @transform_15(%arg0: i32) -> (i32, i32) {
    %c0_i32 = arith.constant 0 : i32
    %c0_i32_0 = arith.constant 0 : i32
    %c0_i32_1 = arith.constant 0 : i32
    return %c0_i32, %c0_i32_0 : i32, i32
  }
  func.func @transform_16(%arg0: i32) -> (i32, i32) {
    %c0_i32 = arith.constant 0 : i32
    %c0_i32_0 = arith.constant 0 : i32
    %c0_i32_1 = arith.constant 0 : i32
    return %c0_i32, %c0_i32_0 : i32, i32
  }
  func.func @transform_17(%arg0: i32) -> (i32, i32) {
    %c0_i32 = arith.constant 0 : i32
    %c0_i32_0 = arith.constant 0 : i32
    %c0_i32_1 = arith.constant 0 : i32
    return %c0_i32, %c0_i32_0 : i32, i32
  }
  func.func @transform_18(%arg0: i32) -> (i32, i32) {
    %c0_i32 = arith.constant 0 : i32
    %c0_i32_0 = arith.constant 0 : i32
    %c0_i32_1 = arith.constant 0 : i32
    return %c0_i32, %c0_i32_0 : i32, i32
  }
  func.func @transform_19(%arg0: i32) -> (i32, i32) {
    %c0_i32 = arith.constant 0 : i32
    %c0_i32_0 = arith.constant 0 : i32
    %c0_i32_1 = arith.constant 0 : i32
    return %c0_i32, %c0_i32_0 : i32, i32
  }
}

</mosaic_0001>

<llo_original>
// kernel: tpu_custom_call.1
$region0: #{tpu_custom_call.1}
  #allocation0 [shape = 'u32[]', space=smem, size = 0x4, offset = 0x4, fixed_abs, tag = 'smem constant byte address 0x4 - core index']
  #allocation1 [shape = 'u32[144,128]{1,0:T(1,128)}', space=vmem, size = 0x12000, scoped, tag = 'internal scratch']
  %s0 = inlined_call_operand.hbm [shape: bf16[16,32], index: 0, kind: input, shape index: {}]
  %s1 = inlined_call_operand.hbm [shape: bf16[24,32], index: 1, kind: input, shape index: {}]
  %s2 = inlined_call_operand.vmem [shape: bf16[24,16], index: 2, kind: input, shape index: {}]
  %s3 = inlined_call_operand.hbm [shape: bf16[16,24], index: 3, kind: input, shape index: {}]
  %s4 = inlined_call_operand.hbm [shape: bf16[24,24], index: 4, kind: input, shape index: {}]
  %s5 = inlined_call_operand.vmem [shape: bf16[32,56], index: 5, kind: input, shape index: {}]
  %s6 = inlined_call_operand.hbm [shape: bf16[32,56], index: 6, kind: input, shape index: {}]
  %s7 = inlined_call_operand.hbm [shape: f32[1,56], index: 7, kind: input, shape index: {}]
  %s8 = inlined_call_operand.vmem [shape: f32[1,56], index: 8, kind: input, shape index: {}]
  %s9 = inlined_call_operand.vmem [shape: bf16[32,32], index: 9, kind: input, shape index: {}]
  %s10 = inlined_call_operand.hbm [shape: f32[1,32], index: 10, kind: input, shape index: {}]
  %s11 = inlined_call_operand.hbm [shape: f32[1,32], index: 11, kind: input, shape index: {}]
  %s12 = inlined_call_operand.hbm [shape: bf16[32,56], index: 12, kind: input, shape index: {}]
  %s13 = inlined_call_operand.hbm [shape: bf16[32,56], index: 13, kind: input, shape index: {}]
  %s14 = inlined_call_operand.hbm [shape: f32[1,56], index: 14, kind: input, shape index: {}]
  %s15 = inlined_call_operand.hbm [shape: f32[1,56], index: 15, kind: input, shape index: {}]
  %s16 = inlined_call_operand.vmem [shape: bf16[32,32], index: 16, kind: input, shape index: {}]
  %s17 = inlined_call_operand.vmem [shape: f32[1,32], index: 17, kind: input, shape index: {}]
  %s18 = inlined_call_operand.vmem [shape: f32[1,32], index: 18, kind: input, shape index: {}]
  %s19 = inlined_call_operand.hbm [shape: f32[24,64], index: 19, kind: output, shape index: {}]
  %s20 = sld [smem:[#allocation0]]
  $region134: #{tpu_custom_call.1} parent=0
    _
  %s22 = ssub.s32 1, %s20
  %s23 = scalar_select 0, %s22, %s20
  $region1: #{tpu_custom_call.1} parent=0
    #allocation2 [shape = 'u8[4096]{0}', space=vmem, size = 0x1000, scoped, tag = 'input window, operand 0, single buffered']
    #allocation3 [shape = 's32[1]{0}', space=sflag, size = 0x4, scoped, tag = 'scoped memory for tpu_custom_call.1']
    #allocation4 [shape = 's32[1]{0}', space=sflag, size = 0x4, scoped, tag = 'scoped memory for tpu_custom_call.1']
    #allocation5 [shape = 'u8[6144]{0}', space=vmem, size = 0x1800, scoped, tag = 'input window, operand 1, single buffered']
    #allocation6 [shape = 's32[1]{0}', space=sflag, size = 0x4, scoped, tag = 'scoped memory for tpu_custom_call.1']
    #allocation7 [shape = 'u8[4096]{0}', space=vmem, size = 0x1000, scoped, tag = 'input window, operand 3, single buffered']
    #allocation8 [shape = 'u8[6144]{0}', space=vmem, size = 0x1800, scoped, tag = 'input window, operand 4, single buffered']
    #allocation9 [shape = 's32[1]{0}', space=sflag, size = 0x4, scoped, tag = 'scoped memory for tpu_custom_call.1']
    #allocation10 [shape = 'u8[8192]{0}', space=vmem, size = 0x2000, scoped, tag = 'input window, operand 6, single buffered']
    #allocation11 [shape = 'u8[512]{0}', space=vmem, size = 0x400, scoped, tag = 'input window, operand 7, single buffered']
    #allocation12 [shape = 's32[1]{0}', space=sflag, size = 0x4, scoped, tag = 'scoped memory for tpu_custom_call.1']
    #allocation13 [shape = 'u8[512]{0}', space=vmem, size = 0x400, scoped, tag = 'input window, operand 10, single buffered']
    #allocation14 [shape = 'u8[512]{0}', space=vmem, size = 0x400, scoped, tag = 'input window, operand 11, single buffered']
    #allocation15 [shape = 's32[1]{0}', space=sflag, size = 0x4, scoped, tag = 'scoped memory for tpu_custom_call.1']
    #allocation16 [shape = 'u8[8192]{0}', space=vmem, size = 0x2000, scoped, tag = 'input window, operand 12, single buffered']
    #allocation17 [shape = 'u8[8192]{0}', space=vmem, size = 0x2000, scoped, tag = 'input window, operand 13, single buffered']
    #allocation18 [shape = 's32[1]{0}', space=sflag, size = 0x4, scoped, tag = 'scoped memory for tpu_custom_call.1']
    #allocation19 [shape = 'u8[512]{0}', space=vmem, size = 0x400, scoped, tag = 'input window, operand 14, single buffered']
    #allocation20 [shape = 'u8[512]{0}', space=vmem, size = 0x400, scoped, tag = 'input window, operand 15, single buffered']
    #allocation21 [shape = 's32[1]{0}', space=sflag, size = 0x4, scoped, tag = 'scoped memory for tpu_custom_call.1']
    #allocation22 [shape = 'u8[12288]{0}', space=vmem, size = 0x3000, scoped, tag = 'output window, operand 0, single buffered']
    %24 = vsyncpa [#allocation3], 0
    %25 = vsyncpa [#allocation6], 0
    %26 = vsyncpa [#allocation9], 0
    %27 = vsyncpa [#allocation12], 0
    %28 = vsyncpa [#allocation15], 0
    %29 = vsyncpa [#allocation18], 0
    %30 = vsyncpa [#allocation21], 0
    %31 = vsyncpa [#allocation4], 0
    // Predicated region
    $region2: #{tpu_custom_call.1} parent=1 // pred_check
      _
    $region3: #{tpu_custom_call.1} parent=1 // pred_check_branch
      %33 = sbr.rel (0) target = $region5
    $region4: #{tpu_custom_call.1} parent=1 // pred_region
      %s35 = ssub.s32 128, 128
      %36 = vsyncadd [#allocation3], %s35
      %s37 = sshll.u32 [#allocation2], 4
      %s38 = int_to_ptr.vmem [resolvable:$true] %s37
      %43 = dma.hbm_to_vmem [thread:$0]  %s0, 128, %s38, [#allocation3], 64, 64, 4
    $region5: #{tpu_custom_call.1} parent=1 // pred_fallthru
      _
    // Predicated region
    $region6: #{tpu_custom_call.1} parent=1 // pred_check
      _
    $region7: #{tpu_custom_call.1} parent=1 // pred_check_branch
      %45 = sbr.rel (0) target = $region9
    $region8: #{tpu_custom_call.1} parent=1 // pred_region
      %s47 = ssub.s32 192, 192
      %48 = vsyncadd [#allocation6], %s47
      %s49 = sshll.u32 [#allocation5], 4
      %s50 = int_to_ptr.vmem [resolvable:$true] %s49
      %55 = dma.hbm_to_vmem [thread:$0]  %s1, 192, %s50, [#allocation6], 64, 64, 4
    $region9: #{tpu_custom_call.1} parent=1 // pred_fallthru
      _
    // Predicated region
    $region10: #{tpu_custom_call.1} parent=1 // pred_check
      _
    $region11: #{tpu_custom_call.1} parent=1 // pred_check_branch
      %57 = sbr.rel (0) target = $region13
    $region12: #{tpu_custom_call.1} parent=1 // pred_region
      _
    $region13: #{tpu_custom_call.1} parent=1 // pred_fallthru
      _
    // Predicated region
    $region14: #{tpu_custom_call.1} parent=1 // pred_check
      _
    $region15: #{tpu_custom_call.1} parent=1 // pred_check_branch
      %59 = sbr.rel (0) target = $region17
    $region16: #{tpu_custom_call.1} parent=1 // pred_region
      %s61 = ssub.s32 128, 128
      %62 = vsyncadd [#allocation6], %s61
      %s63 = sshll.u32 [#allocation7], 4
      %s64 = int_to_ptr.vmem [resolvable:$true] %s63
      %69 = dma.hbm_to_vmem [thread:$0]  %s3, 128, %s64, [#allocation6], 64, 64, 4
    $region17: #{tpu_custom_call.1} parent=1 // pred_fallthru
      _
    // Predicated region
    $region18: #{tpu_custom_call.1} parent=1 // pred_check
      _
    $region19: #{tpu_custom_call.1} parent=1 // pred_check_branch
      %71 = sbr.rel (0) target = $region21
    $region20: #{tpu_custom_call.1} parent=1 // pred_region
      %s73 = ssub.s32 192, 192
      %74 = vsyncadd [#allocation9], %s73
      %s75 = sshll.u32 [#allocation8], 4
      %s76 = int_to_ptr.vmem [resolvable:$true] %s75
      %81 = dma.hbm_to_vmem [thread:$0]  %s4, 192, %s76, [#allocation9], 64, 64, 4
    $region21: #{tpu_custom_call.1} parent=1 // pred_fallthru
      _
    // Predicated region
    $region22: #{tpu_custom_call.1} parent=1 // pred_check
      _
    $region23: #{tpu_custom_call.1} parent=1 // pred_check_branch
      %83 = sbr.rel (0) target = $region25
    $region24: #{tpu_custom_call.1} parent=1 // pred_region
      _
    $region25: #{tpu_custom_call.1} parent=1 // pred_fallthru
      _
    // Predicated region
    $region26: #{tpu_custom_call.1} parent=1 // pred_check
      _
    $region27: #{tpu_custom_call.1} parent=1 // pred_check_branch
      %85 = sbr.rel (0) target = $region29
    $region28: #{tpu_custom_call.1} parent=1 // pred_region
      %s87 = ssub.s32 256, 256
      %88 = vsyncadd [#allocation9], %s87
      %s89 = sshll.u32 [#allocation10], 4
      %s90 = int_to_ptr.vmem [resolvable:$true] %s89
      %95 = dma.hbm_to_vmem [thread:$0]  %s6, 256, %s90, [#allocation9], 64, 64, 4
    $region29: #{tpu_custom_call.1} parent=1 // pred_fallthru
      _
    // Predicated region
    $region30: #{tpu_custom_call.1} parent=1 // pred_check
      _
    $region31: #{tpu_custom_call.1} parent=1 // pred_check_branch
      %97 = sbr.rel (0) target = $region33
    $region32: #{tpu_custom_call.1} parent=1 // pred_region
      %s99 = ssub.s32 16, 16
      %100 = vsyncadd [#allocation12], %s99
      %s102 = sshll.u32 [#allocation11], 4
      %s103 = int_to_ptr.vmem [resolvable:$true] %s102
      %105 = dma.hbm_to_vmem [thread:$0]  %s7, 16, %s103, [#allocation12]
    $region33: #{tpu_custom_call.1} parent=1 // pred_fallthru
      _
    // Predicated region
    $region34: #{tpu_custom_call.1} parent=1 // pred_check
      _
    $region35: #{tpu_custom_call.1} parent=1 // pred_check_branch
      %107 = sbr.rel (0) target = $region37
    $region36: #{tpu_custom_call.1} parent=1 // pred_region
      _
    $region37: #{tpu_custom_call.1} parent=1 // pred_fallthru
      _
    // Predicated region
    $region38: #{tpu_custom_call.1} parent=1 // pred_check
      _
    $region39: #{tpu_custom_call.1} parent=1 // pred_check_branch
      %109 = sbr.rel (0) target = $region41
    $region40: #{tpu_custom_call.1} parent=1 // pred_region
      _
    $region41: #{tpu_custom_call.1} parent=1 // pred_fallthru
      _
    // Predicated region
    $region42: #{tpu_custom_call.1} parent=1 // pred_check
      _
    $region43: #{tpu_custom_call.1} parent=1 // pred_check_branch
      %111 = sbr.rel (0) target = $region45
    $region44: #{tpu_custom_call.1} parent=1 // pred_region
      %s113 = ssub.s32 16, 16
      %114 = vsyncadd [#allocation12], %s113
      %s116 = sshll.u32 [#allocation13], 4
      %s117 = int_to_ptr.vmem [resolvable:$true] %s116
      %119 = dma.hbm_to_vmem [thread:$0]  %s10, 16, %s117, [#allocation12]
    $region45: #{tpu_custom_call.1} parent=1 // pred_fallthru
      _
    // Predicated region
    $region46: #{tpu_custom_call.1} parent=1 // pred_check
      _
    $region47: #{tpu_custom_call.1} parent=1 // pred_check_branch
      %121 = sbr.rel (0) target = $region49
    $region48: #{tpu_custom_call.1} parent=1 // pred_region
      %s123 = ssub.s32 16, 16
      %124 = vsyncadd [#allocation15], %s123
      %s126 = sshll.u32 [#allocation14], 4
      %s127 = int_to_ptr.vmem [resolvable:$true] %s126
      %129 = dma.hbm_to_vmem [thread:$0]  %s11, 16, %s127, [#allocation15]
    $region49: #{tpu_custom_call.1} parent=1 // pred_fallthru
      _
    // Predicated region
    $region50: #{tpu_custom_call.1} parent=1 // pred_check
      _
    $region51: #{tpu_custom_call.1} parent=1 // pred_check_branch
      %131 = sbr.rel (0) target = $region53
    $region52: #{tpu_custom_call.1} parent=1 // pred_region
      %s133 = ssub.s32 256, 256
      %134 = vsyncadd [#allocation15], %s133
      %s135 = sshll.u32 [#allocation16], 4
      %s136 = int_to_ptr.vmem [resolvable:$true] %s135
      %141 = dma.hbm_to_vmem [thread:$0]  %s12, 256, %s136, [#allocation15], 64, 64, 4
    $region53: #{tpu_custom_call.1} parent=1 // pred_fallthru
      _
    // Predicated region
    $region54: #{tpu_custom_call.1} parent=1 // pred_check
      _
    $region55: #{tpu_custom_call.1} parent=1 // pred_check_branch
      %143 = sbr.rel (0) target = $region57
    $region56: #{tpu_custom_call.1} parent=1 // pred_region
      %s145 = ssub.s32 256, 256
      %146 = vsyncadd [#allocation18], %s145
      %s147 = sshll.u32 [#allocation17], 4
      %s148 = int_to_ptr.vmem [resolvable:$true] %s147
      %153 = dma.hbm_to_vmem [thread:$0]  %s13, 256, %s148, [#allocation18], 64, 64, 4
    $region57: #{tpu_custom_call.1} parent=1 // pred_fallthru
      _
    // Predicated region
    $region58: #{tpu_custom_call.1} parent=1 // pred_check
      _
    $region59: #{tpu_custom_call.1} parent=1 // pred_check_branch
      %155 = sbr.rel (0) target = $region61
    $region60: #{tpu_custom_call.1} parent=1 // pred_region
      %s157 = ssub.s32 16, 16
      %158 = vsyncadd [#allocation18], %s157
      %s160 = sshll.u32 [#allocation19], 4
      %s161 = int_to_ptr.vmem [resolvable:$true] %s160
      %163 = dma.hbm_to_vmem [thread:$0]  %s14, 16, %s161, [#allocation18]
    $region61: #{tpu_custom_call.1} parent=1 // pred_fallthru
      _
    // Predicated region
    $region62: #{tpu_custom_call.1} parent=1 // pred_check
      _
    $region63: #{tpu_custom_call.1} parent=1 // pred_check_branch
      %165 = sbr.rel (0) target = $region65
    $region64: #{tpu_custom_call.1} parent=1 // pred_region
      %s167 = ssub.s32 16, 16
      %168 = vsyncadd [#allocation21], %s167
      %s170 = sshll.u32 [#allocation20], 4
      %s171 = int_to_ptr.vmem [resolvable:$true] %s170
      %173 = dma.hbm_to_vmem [thread:$0]  %s15, 16, %s171, [#allocation21]
    $region65: #{tpu_custom_call.1} parent=1 // pred_fallthru
      _
    // Predicated region
    $region66: #{tpu_custom_call.1} parent=1 // pred_check
      _
    $region67: #{tpu_custom_call.1} parent=1 // pred_check_branch
      %175 = sbr.rel (0) target = $region69
    $region68: #{tpu_custom_call.1} parent=1 // pred_region
      _
    $region69: #{tpu_custom_call.1} parent=1 // pred_fallthru
      _
    // Predicated region
    $region70: #{tpu_custom_call.1} parent=1 // pred_check
      _
    $region71: #{tpu_custom_call.1} parent=1 // pred_check_branch
      %177 = sbr.rel (0) target = $region73
    $region72: #{tpu_custom_call.1} parent=1 // pred_region
      _
    $region73: #{tpu_custom_call.1} parent=1 // pred_fallthru
      _
    // Predicated region
    $region74: #{tpu_custom_call.1} parent=1 // pred_check
      _
    $region75: #{tpu_custom_call.1} parent=1 // pred_check_branch
      %179 = sbr.rel (0) target = $region77
    $region76: #{tpu_custom_call.1} parent=1 // pred_region
      _
    $region77: #{tpu_custom_call.1} parent=1 // pred_fallthru
      _
    // Predicated region
    $region78: #{tpu_custom_call.1} parent=1 // pred_check
      _
    $region79: #{tpu_custom_call.1} parent=1 // pred_check_branch
      %181 = sbr.rel (0) target = $region81
    $region80: #{tpu_custom_call.1} parent=1 // pred_region
      %182 = dma.done [#allocation3], 128
    $region81: #{tpu_custom_call.1} parent=1 // pred_fallthru
      _
    // Predicated region
    $region82: #{tpu_custom_call.1} parent=1 // pred_check
      _
    $region83: #{tpu_custom_call.1} parent=1 // pred_check_branch
      %184 = sbr.rel (0) target = $region85
    $region84: #{tpu_custom_call.1} parent=1 // pred_region
      %185 = dma.done [#allocation6], 192
    $region85: #{tpu_custom_call.1} parent=1 // pred_fallthru
      _
    // Predicated region
    $region86: #{tpu_custom_call.1} parent=1 // pred_check
      _
    $region87: #{tpu_custom_call.1} parent=1 // pred_check_branch
      %187 = sbr.rel (0) target = $region89
    $region88: #{tpu_custom_call.1} parent=1 // pred_region
      %188 = dma.done [#allocation6], 128
    $region89: #{tpu_custom_call.1} parent=1 // pred_fallthru
      _
    // Predicated region
    $region90: #{tpu_custom_call.1} parent=1 // pred_check
      _
    $region91: #{tpu_custom_call.1} parent=1 // pred_check_branch
      %190 = sbr.rel (0) target = $region93
    $region92: #{tpu_custom_call.1} parent=1 // pred_region
      %191 = dma.done [#allocation9], 192
    $region93: #{tpu_custom_call.1} parent=1 // pred_fallthru
      _
    // Predicated region
    $region94: #{tpu_custom_call.1} parent=1 // pred_check
      _
    $region95: #{tpu_custom_call.1} parent=1 // pred_check_branch
      %193 = sbr.rel (0) target = $region97
    $region96: #{tpu_custom_call.1} parent=1 // pred_region
      %194 = dma.done [#allocation9], 256
    $region97: #{tpu_custom_call.1} parent=1 // pred_fallthru
      _
    // Predicated region
    $region98: #{tpu_custom_call.1} parent=1 // pred_check
      _
    $region99: #{tpu_custom_call.1} parent=1 // pred_check_branch
      %196 = sbr.rel (0) target = $region101
    $region100: #{tpu_custom_call.1} parent=1 // pred_region
      %197 = dma.done [#allocation12], 16
    $region101: #{tpu_custom_call.1} parent=1 // pred_fallthru
      _
    // Predicated region
    $region102: #{tpu_custom_call.1} parent=1 // pred_check
      _
    $region103: #{tpu_custom_call.1} parent=1 // pred_check_branch
      %199 = sbr.rel (0) target = $region105
    $region104: #{tpu_custom_call.1} parent=1 // pred_region
      %200 = dma.done [#allocation12], 16
    $region105: #{tpu_custom_call.1} parent=1 // pred_fallthru
      _
    // Predicated region
    $region106: #{tpu_custom_call.1} parent=1 // pred_check
      _
    $region107: #{tpu_custom_call.1} parent=1 // pred_check_branch
      %202 = sbr.rel (0) target = $region109
    $region108: #{tpu_custom_call.1} parent=1 // pred_region
      %203 = dma.done [#allocation15], 16
    $region109: #{tpu_custom_call.1} parent=1 // pred_fallthru
      _
    // Predicated region
    $region110: #{tpu_custom_call.1} parent=1 // pred_check
      _
    $region111: #{tpu_custom_call.1} parent=1 // pred_check_branch
      %205 = sbr.rel (0) target = $region113
    $region112: #{tpu_custom_call.1} parent=1 // pred_region
      %206 = dma.done [#allocation15], 256
    $region113: #{tpu_custom_call.1} parent=1 // pred_fallthru
      _
    // Predicated region
    $region114: #{tpu_custom_call.1} parent=1 // pred_check
      _
    $region115: #{tpu_custom_call.1} parent=1 // pred_check_branch
      %208 = sbr.rel (0) target = $region117
    $region116: #{tpu_custom_call.1} parent=1 // pred_region
      %209 = dma.done [#allocation18], 256
    $region117: #{tpu_custom_call.1} parent=1 // pred_fallthru
      _
    // Predicated region
    $region118: #{tpu_custom_call.1} parent=1 // pred_check
      _
    $region119: #{tpu_custom_call.1} parent=1 // pred_check_branch
      %211 = sbr.rel (0) target = $region121
    $region120: #{tpu_custom_call.1} parent=1 // pred_region
      %212 = dma.done [#allocation18], 16
    $region121: #{tpu_custom_call.1} parent=1 // pred_fallthru
      _
    // Predicated region
    $region122: #{tpu_custom_call.1} parent=1 // pred_check
      _
    $region123: #{tpu_custom_call.1} parent=1 // pred_check_branch
      %214 = sbr.rel (0) target = $region125
    $region124: #{tpu_custom_call.1} parent=1 // pred_region
      %215 = dma.done [#allocation21], 16
    $region125: #{tpu_custom_call.1} parent=1 // pred_fallthru
      _
    %v217 = vld [vmem:[%s2] sm:$0xf]
    %v218 = vld [vmem:[%s2 + $0x4] sm:$0xf]
    %v219 = vld [vmem:[%s2 + $0x8] sm:$0xf]
    %v220 = vunpack.c.l.bf16 %v217
    %v221 = vunpack.c.l.bf16 %v218
    %v222 = vunpack.c.l.bf16 %v219
    %vm223 = vcmp.gt.f32.partialorder %v220, 0.0
    %vm224 = vcmp.gt.f32.partialorder %v221, 0.0
    %vm225 = vcmp.gt.f32.partialorder %v222, 0.0
    %vm226 = vcmask 130048
    %v227 = vsel %vm226, %v220, 0.0
    %228 = vadd.xlane.f32.xlu0 %v227
    %v229 = vpop.xlane.xlu0 %228
    %v230 = vsel %vm226, %v221, 0.0
    %231 = vadd.xlane.f32.xlu0 %v230
    %v232 = vpop.xlane.xlu0 %231
    %v233 = vsel %vm226, %v222, 0.0
    %234 = vadd.xlane.f32.xlu0 %v233
    %v235 = vpop.xlane.xlu0 %234
    %vm236 = vcmp.gt.f32.partialorder %v229, 0.0
    %vm237 = vcmp.gt.f32.partialorder %v232, 0.0
    %vm238 = vcmp.gt.f32.partialorder %v235, 0.0
    %v239 = vsel %vm236, 1, 0
    %v240 = vsel %vm237, 1, 0
    %v241 = vsel %vm238, 1, 0
    %v242 = vcvt.s32.f32 %v239
    %v243 = vcvt.s32.f32 %v240
    %v244 = vcvt.s32.f32 %v241
    %v245 = vld [vmem:[#allocation7] sm:$0xf]
    %v246 = vld [vmem:[#allocation7 + $0x4] sm:$0xf]
    %v247 = vunpack.c.l.bf16 %v245
    %v248 = vunpack.c.l.bf16 %v246
    %vm249 = vcmp.gt.f32.partialorder %v247, 0.0
    %vm250 = vcmp.gt.f32.partialorder %v248, 0.0
    %vm251 = vcmask 195584
    %v252 = vsel %vm251, %v247, 0.0
    %253 = vadd.xlane.f32.xlu0 %v252
    %v254 = vpop.xlane.xlu0 %253
    %v255 = vsel %vm251, %v248, 0.0
    %256 = vadd.xlane.f32.xlu0 %v255
    %v257 = vpop.xlane.xlu0 %256
    %vm258 = vcmp.gt.f32.partialorder %v254, 0.0
    %vm259 = vcmp.gt.f32.partialorder %v257, 0.0
    %v260 = vsel %vm258, 1, 0
    %v261 = vsel %vm259, 1, 0
    %v262 = vcvt.s32.f32 %v260
    %v263 = vcvt.s32.f32 %v261
    %v264 = vld [vmem:[#allocation8] sm:$0xf]
    %v265 = vld [vmem:[#allocation8 + $0x4] sm:$0xf]
    %v266 = vld [vmem:[#allocation8 + $0x8] sm:$0xf]
    %v267 = vunpack.c.l.bf16 %v264
    %v268 = vunpack.c.l.bf16 %v265
    %v269 = vunpack.c.l.bf16 %v266
    %vm270 = vcmp.gt.f32.partialorder %v267, 0.0
    %vm271 = vcmp.gt.f32.partialorder %v268, 0.0
    %vm272 = vcmp.gt.f32.partialorder %v269, 0.0
    %v273 = vsel %vm251, %v267, 0.0
    %274 = vadd.xlane.f32.xlu0 %v273
    %v275 = vpop.xlane.xlu0 %274
    %v276 = vsel %vm251, %v268, 0.0
    %277 = vadd.xlane.f32.xlu0 %v276
    %v278 = vpop.xlane.xlu0 %277
    %v279 = vsel %vm251, %v269, 0.0
    %280 = vadd.xlane.f32.xlu0 %v279
    %v281 = vpop.xlane.xlu0 %280
    %vm282 = vcmp.gt.f32.partialorder %v275, 0.0
    %vm283 = vcmp.gt.f32.partialorder %v278, 0.0
    %vm284 = vcmp.gt.f32.partialorder %v281, 0.0
    %v285 = vsel %vm282, 1, 0
    %v286 = vsel %vm283, 1, 0
    %v287 = vsel %vm284, 1, 0
    %v288 = vcvt.s32.f32 %v285
    %v289 = vcvt.s32.f32 %v286
    %v290 = vcvt.s32.f32 %v287
    %v291 = vld [vmem:[#allocation2] sm:$0xf]
    %v292 = vld [vmem:[#allocation2 + $0x4] sm:$0xf]
    %v293 = vld [vmem:[#allocation5] sm:$0xf]
    %v294 = vld [vmem:[#allocation5 + $0x4] sm:$0xf]
    %v295 = vld [vmem:[#allocation5 + $0x8] sm:$0xf]
    %v296 = vld [vmem:[%s5] sm:$0xf]
    %v297 = vld [vmem:[%s5 + $0x4] sm:$0xf]
    %v298 = vld [vmem:[%s5 + $0x8] sm:$0xf]
    %v299 = vld [vmem:[%s5 + $0xc] sm:$0xf]
    %v300 = vld [vmem:[#allocation11] sm:$0x1]
    %v302 = vlaneseq
    %v303 = vshrl.u32 %v302, 7
    %v304 = vsub.s32 0, %v303
    %v305 = vrot.slane %v300, %v304
    %v309 = vunpack.c.l.b16 %v291
    %v310 = vunpack.c.l.b16 %v292
    %v311 = vpack.c.b16 %v310, %v309
    %v316 = vunpack.c.l.b16 %v296
    %v317 = vunpack.c.l.b16 %v297
    %v318 = vunpack.c.l.b16 %v298
    %v319 = vunpack.c.l.b16 %v299
    %v320 = vpack.c.b16 %v317, %v316
    %v321 = vpack.c.b16 %v319, %v318
    %vm324 = vcmask 261120
    %v326 = vsel %vm324, %v311, 0
    %328 = vmatprep.subr.bf16.mxu0 0
    %329 = vmatpush1.bf16.msra.mxu0 0
    %330 = vmatprep.subr.bf16.mxu0 0
    %331 = vmatpush1.bf16.msra.mxu0 0
    %332 = vmatprep.subr.bf16.mxu0 0
    %333 = vmatpush1.bf16.msra.mxu0 0
    %334 = vmatprep.subr.bf16.mxu0 0
    %335 = vmatpush1.bf16.msra.mxu0 0
    %336 = vmatprep.subr.bf16.mxu0 0
    %337 = vmatpush1.bf16.msra.mxu0 0
    %338 = vmatprep.subr.bf16.mxu0 0
    %339 = vmatpush1.bf16.msra.mxu0 0
    %340 = vmatprep.subr.bf16.mxu0 0
    %341 = vmatpush1.bf16.msra.mxu0 %v321
    %342 = vmatprep.subr.bf16.mxu0 0
    %343 = vmatpush1.bf16.msra.mxu0 %v320
    %344 = vmatprep.subr.bf16.mxu0 0
    %345 = vmatpush2.bf16.msra.mxu0 0
    %346 = vmatprep.subr.bf16.mxu0 0
    %347 = vmatpush2.bf16.msra.mxu0 0
    %348 = vmatprep.subr.bf16.mxu0 0
    %349 = vmatpush2.bf16.msra.mxu0 0
    %350 = vmatprep.subr.bf16.mxu0 0
    %351 = vmatpush2.bf16.msra.mxu0 0
    %352 = vmatprep.subr.bf16.mxu0 0
    %353 = vmatpush2.bf16.msra.mxu0 0
    %354 = vmatprep.subr.bf16.mxu0 0
    %355 = vmatpush2.bf16.msra.mxu0 0
    %356 = vmatprep.subr.bf16.mxu0 0
    %357 = vmatpush2.bf16.msra.mxu0 0
    %358 = vmatprep.subr.bf16.mxu0 0
    %359 = vmatpush2.bf16.msra.mxu0 0
    %360 = vmatprep.mubr.bf16.mxu0 0
    %361 = vmatmul.mubr.bf16.gmra.mxu0 %v326
    %v362 = vpop.f32.mrf.mxu0
    %v363 = vadd.f32 %v305, %v362
    %v364 = vpop.f32.mrf.mxu0
    %v365 = vpop.f32.mrf.mxu0
    %v366 = vadd.f32 %v305, %v365
    %v367 = vpop.f32.mrf.mxu0
    %368 = vdwg.mxu0
    %v369 = vld [vmem:[#allocation10] sm:$0xf]
    %v370 = vld [vmem:[#allocation10 + $0x4] sm:$0xf]
    %v371 = vld [vmem:[#allocation10 + $0x8] sm:$0xf]
    %v372 = vld [vmem:[#allocation10 + $0xc] sm:$0xf]
    %v373 = vld [vmem:[%s8] sm:$0x1]
    %v375 = vlaneseq
    %v376 = vshrl.u32 %v375, 7
    %v377 = vsub.s32 0, %v376
    %v378 = vrot.slane %v373, %v377
    %v383 = vunpack.c.l.b16 %v293
    %v384 = vunpack.c.l.b16 %v294
    %v385 = vunpack.c.l.b16 %v295
    %v386 = vpack.c.b16 %v384, %v383
    %v387 = vpack.c.b16 %v385, %v385
    %v392 = vunpack.c.l.b16 %v369
    %v393 = vunpack.c.l.b16 %v370
    %v394 = vunpack.c.l.b16 %v371
    %v395 = vunpack.c.l.b16 %v372
    %v396 = vpack.c.b16 %v393, %v392
    %v397 = vpack.c.b16 %v395, %v394
    %v401 = vsel %vm324, %v386, 0
    %v404 = vsel %vm324, %v387, 0
    %406 = vmatprep.subr.bf16.mxu0 0
    %407 = vmatpush1.bf16.msra.mxu0 0
    %408 = vmatprep.subr.bf16.mxu0 0
    %409 = vmatpush1.bf16.msra.mxu0 0
    %410 = vmatprep.subr.bf16.mxu0 0
    %411 = vmatpush1.bf16.msra.mxu0 0
    %412 = vmatprep.subr.bf16.mxu0 0
    %413 = vmatpush1.bf16.msra.mxu0 0
    %414 = vmatprep.subr.bf16.mxu0 0
    %415 = vmatpush1.bf16.msra.mxu0 0
    %416 = vmatprep.subr.bf16.mxu0 0
    %417 = vmatpush1.bf16.msra.mxu0 0
    %418 = vmatprep.subr.bf16.mxu0 0
    %419 = vmatpush1.bf16.msra.mxu0 %v397
    %420 = vmatprep.subr.bf16.mxu0 0
    %421 = vmatpush1.bf16.msra.mxu0 %v396
    %422 = vmatprep.subr.bf16.mxu0 0
    %423 = vmatpush2.bf16.msra.mxu0 0
    %424 = vmatprep.subr.bf16.mxu0 0
    %425 = vmatpush2.bf16.msra.mxu0 0
    %426 = vmatprep.subr.bf16.mxu0 0
    %427 = vmatpush2.bf16.msra.mxu0 0
    %428 = vmatprep.subr.bf16.mxu0 0
    %429 = vmatpush2.bf16.msra.mxu0 0
    %430 = vmatprep.subr.bf16.mxu0 0
    %431 = vmatpush2.bf16.msra.mxu0 0
    %432 = vmatprep.subr.bf16.mxu0 0
    %433 = vmatpush2.bf16.msra.mxu0 0
    %434 = vmatprep.subr.bf16.mxu0 0
    %435 = vmatpush2.bf16.msra.mxu0 0
    %436 = vmatprep.subr.bf16.mxu0 0
    %437 = vmatpush2.bf16.msra.mxu0 0
    %438 = vmatprep.mubr.bf16.mxu0 0
    %439 = vmatmul.mubr.bf16.gmra.mxu0 %v401
    %v440 = vpop.f32.mrf.mxu0
    %v441 = vadd.f32 %v378, %v440
    %v442 = vpop.f32.mrf.mxu0
    %v443 = vpop.f32.mrf.mxu0
    %v444 = vadd.f32 %v378, %v443
    %v445 = vpop.f32.mrf.mxu0
    %446 = vmatprep.mubr.bf16.mxu0 0
    %447 = vmatmul.mubr.bf16.gmra.mxu0 %v404
    %v448 = vpop.f32.mrf.mxu0
    %v449 = vadd.f32 %v378, %v448
    %v450 = vpop.f32.mrf.mxu0
    %v451 = vpop.f32.mrf.mxu0
    %v452 = vpop.f32.mrf.mxu0
    %453 = vdwg.mxu0
    %456 = vrot.lane.b32.xlu0 %v363, 96
    %v457 = vpop.permute.xlu0 %456
    %458 = vrot.lane.b32.xlu0 %v366, 96
    %v459 = vpop.permute.xlu0 %458
    %462 = vxpose.xlu0.b32.start [1/16] %v457, 128
    %463 = vxpose.xlu0.b32.cont [2/16] %v459, 128
    %464 = vxpose.xlu0.b32.cont [3/16] 0.0, 128
    %465 = vxpose.xlu0.b32.cont [4/16] 0.0, 128
    %466 = vxpose.xlu0.b32.cont [5/16] 0.0, 128
    %467 = vxpose.xlu0.b32.cont [6/16] 0.0, 128
    %468 = vxpose.xlu0.b32.cont [7/16] 0.0, 128
    %469 = vxpose.xlu0.b32.cont [8/16] 0.0, 128
    %470 = vxpose.xlu0.b32.cont [9/16] 0.0, 128
    %471 = vxpose.xlu0.b32.cont [10/16] 0.0, 128
    %472 = vxpose.xlu0.b32.cont [11/16] 0.0, 128
    %473 = vxpose.xlu0.b32.cont [12/16] 0.0, 128
    %474 = vxpose.xlu0.b32.cont [13/16] 0.0, 128
    %475 = vxpose.xlu0.b32.cont [14/16] 0.0, 128
    %476 = vxpose.xlu0.b32.cont [15/16] 0.0, 128
    %477 = vxpose.xlu0.b32.end [16/16] 0.0, 128
    %v478 = vpop.trf.xlu0
    %v479 = vpop.trf.xlu0
    %v480 = vpop.trf.xlu0
    %v481 = vpop.trf.xlu0
    %v482 = vpop.trf.xlu0
    %v483 = vpop.trf.xlu0
    %v484 = vpop.trf.xlu0
    %v485 = vpop.trf.xlu0
    %v486 = vpop.trf.xlu0
    %v487 = vpop.trf.xlu0
    %v488 = vpop.trf.xlu0
    %v489 = vpop.trf.xlu0
    %v490 = vpop.trf.xlu0
    %v491 = vpop.trf.xlu0
    %v492 = vpop.trf.xlu0
    %v493 = vpop.trf.xlu0
    %497 = vrot.lane.b32.xlu0 %v441, 84
    %v498 = vpop.permute.xlu0 %497
    %499 = vrot.lane.b32.xlu0 %v444, 84
    %v500 = vpop.permute.xlu0 %499
    %501 = vrot.lane.b32.xlu0 %v449, 84
    %v502 = vpop.permute.xlu0 %501
    %506 = vxpose.xlu0.b32.start [1/16] %v498, 128
    %507 = vxpose.xlu0.b32.cont [2/16] %v500, 128
    %508 = vxpose.xlu0.b32.cont [3/16] %v502, 128
    %509 = vxpose.xlu0.b32.cont [4/16] 0.0, 128
    %510 = vxpose.xlu0.b32.cont [5/16] 0.0, 128
    %511 = vxpose.xlu0.b32.cont [6/16] 0.0, 128
    %512 = vxpose.xlu0.b32.cont [7/16] 0.0, 128
    %513 = vxpose.xlu0.b32.cont [8/16] 0.0, 128
    %514 = vxpose.xlu0.b32.cont [9/16] 0.0, 128
    %515 = vxpose.xlu0.b32.cont [10/16] 0.0, 128
    %516 = vxpose.xlu0.b32.cont [11/16] 0.0, 128
    %517 = vxpose.xlu0.b32.cont [12/16] 0.0, 128
    %518 = vxpose.xlu0.b32.cont [13/16] 0.0, 128
    %519 = vxpose.xlu0.b32.cont [14/16] 0.0, 128
    %520 = vxpose.xlu0.b32.cont [15/16] 0.0, 128
    %521 = vxpose.xlu0.b32.end [16/16] 0.0, 128
    %v522 = vpop.trf.xlu0
    %v523 = vpop.trf.xlu0
    %v524 = vpop.trf.xlu0
    %v525 = vpop.trf.xlu0
    %v526 = vpop.trf.xlu0
    %v527 = vpop.trf.xlu0
    %v528 = vpop.trf.xlu0
    %v529 = vpop.trf.xlu0
    %v530 = vpop.trf.xlu0
    %v531 = vpop.trf.xlu0
    %v532 = vpop.trf.xlu0
    %v533 = vpop.trf.xlu0
    %v534 = vpop.trf.xlu0
    %v535 = vpop.trf.xlu0
    %v536 = vpop.trf.xlu0
    %v537 = vpop.trf.xlu0
    %v538 = vlaneseq
    %v539 = vshrl.u32 %v538, 7
    %v540 = vsub.s32 0, %v539
    %v541 = vrot.slane %v522, %v540
    %543 = vbcast.lane.b32.xlu0 %v541, 256
    %v544 = vpop.permute.xlu0 %543
    %s546 = sor.u32 256, 8
    %547 = vbcast.lane.b32.xlu0 %v541, %s546
    %v548 = vpop.permute.xlu0 %547
    %s550 = sor.u32 256, 16
    %551 = vbcast.lane.b32.xlu0 %v541, %s550
    %v552 = vpop.permute.xlu0 %551
    %v553 = vlaneseq
    %v554 = vshrl.u32 %v553, 7
    %v555 = vsub.s32 1, %v554
    %v556 = vrot.slane %v522, %v555
    %558 = vbcast.lane.b32.xlu0 %v556, 256
    %v559 = vpop.permute.xlu0 %558
    %s561 = sor.u32 256, 8
    %562 = vbcast.lane.b32.xlu0 %v556, %s561
    %v563 = vpop.permute.xlu0 %562
    %s565 = sor.u32 256, 16
    %566 = vbcast.lane.b32.xlu0 %v556, %s565
    %v567 = vpop.permute.xlu0 %566
    %v568 = vlaneseq
    %v569 = vshrl.u32 %v568, 7
    %v570 = vsub.s32 2, %v569
    %v571 = vrot.slane %v522, %v570
    %573 = vbcast.lane.b32.xlu0 %v571, 256
    %v574 = vpop.permute.xlu0 %573
    %s576 = sor.u32 256, 8
    %577 = vbcast.lane.b32.xlu0 %v571, %s576
    %v578 = vpop.permute.xlu0 %577
    %s580 = sor.u32 256, 16
    %581 = vbcast.lane.b32.xlu0 %v571, %s580
    %v582 = vpop.permute.xlu0 %581
    %v583 = vlaneseq
    %v584 = vshrl.u32 %v583, 7
    %v585 = vsub.s32 3, %v584
    %v586 = vrot.slane %v522, %v585
    %588 = vbcast.lane.b32.xlu0 %v586, 256
    %v589 = vpop.permute.xlu0 %588
    %s591 = sor.u32 256, 8
    %592 = vbcast.lane.b32.xlu0 %v586, %s591
    %v593 = vpop.permute.xlu0 %592
    %s595 = sor.u32 256, 16
    %596 = vbcast.lane.b32.xlu0 %v586, %s595
    %v597 = vpop.permute.xlu0 %596
    %v600 = vunpack.c.l.s4 1966171168
    %v601 = vunpack.c.0.s8 %v600
    %v602 = vlaneseq
    %v603 = vshrl.u32 %v602, 7
    %v604 = vsub.s32 %v601, %v603
    %v605 = vrot.slane %v478, %v604
    %v606 = vcombine.high %v605, %v605
    %v608 = vunpack.c.l.s4 1966171168
    %v609 = vunpack.c.0.s8 %v608
    %v610 = vlaneseq
    %v611 = vshrl.u32 %v610, 7
    %v612 = vsub.s32 %v609, %v611
    %v613 = vrot.slane %v605, %v612
    %v615 = vunpack.c.l.s4 1966171168
    %v616 = vunpack.c.0.s8 %v615
    %v617 = vlaneseq
    %v618 = vshrl.u32 %v617, 7
    %v619 = vsub.s32 %v616, %v618
    %v620 = vrot.slane %v606, %v619
    %v621 = vcombine.high %v613, %v613
    %v622 = vcombine.high %v620, %v620
    %v623 = vlaneseq
    %v624 = vshrl.u32 %v623, 7
    %v625 = vsub.s32 0, %v624
    %v626 = vrot.slane %v613, %v625
    %v627 = vlaneseq
    %v628 = vshrl.u32 %v627, 7
    %v629 = vsub.s32 0, %v628
    %v630 = vrot.slane %v620, %v629
    %v631 = vlaneseq
    %v632 = vshrl.u32 %v631, 7
    %v633 = vsub.s32 0, %v632
    %v634 = vrot.slane %v621, %v633
    %v635 = vlaneseq
    %v636 = vshrl.u32 %v635, 7
    %v637 = vsub.s32 0, %v636
    %v638 = vrot.slane %v622, %v637
    %v643 = vadd.f32 %v544, %v626
    %v644 = vadd.f32 %v548, %v626
    %v645 = vadd.f32 %v552, %v626
    %v646 = vadd.f32 %v559, %v630
    %v647 = vadd.f32 %v563, %v630
    %v648 = vadd.f32 %v567, %v630
    %v649 = vadd.f32 %v574, %v634
    %v650 = vadd.f32 %v578, %v634
    %v651 = vadd.f32 %v582, %v634
    %v652 = vadd.f32 %v589, %v638
    %v653 = vadd.f32 %v593, %v638
    %v654 = vadd.f32 %v597, %v638
    %vm655 = vcmp.ge.f32.partialorder %v643, 0.0
    %vm656 = vcmp.ge.f32.partialorder %v644, 0.0
    %vm657 = vcmp.ge.f32.partialorder %v645, 0.0
    %vm658 = vcmp.ge.f32.partialorder %v646, 0.0
    %vm659 = vcmp.ge.f32.partialorder %v647, 0.0
    %vm660 = vcmp.ge.f32.partialorder %v648, 0.0
    %vm661 = vcmp.ge.f32.partialorder %v649, 0.0
    %vm662 = vcmp.ge.f32.partialorder %v650, 0.0
    %vm663 = vcmp.ge.f32.partialorder %v651, 0.0
    %vm664 = vcmp.ge.f32.partialorder %v652, 0.0
    %vm665 = vcmp.ge.f32.partialorder %v653, 0.0
    %vm666 = vcmp.ge.f32.partialorder %v654, 0.0
    %v667 = vmul.f32 %v643, 0.2
    %v668 = vmul.f32 %v644, 0.2
    %v669 = vmul.f32 %v645, 0.2
    %v670 = vmul.f32 %v646, 0.2
    %v671 = vmul.f32 %v647, 0.2
    %v672 = vmul.f32 %v648, 0.2
    %v673 = vmul.f32 %v649, 0.2
    %v674 = vmul.f32 %v650, 0.2
    %v675 = vmul.f32 %v651, 0.2
    %v676 = vmul.f32 %v652, 0.2
    %v677 = vmul.f32 %v653, 0.2
    %v678 = vmul.f32 %v654, 0.2
    %v679 = vsel %vm655, %v643, %v667
    %v680 = vsel %vm656, %v644, %v668
    %v681 = vsel %vm657, %v645, %v669
    %v682 = vsel %vm658, %v646, %v670
    %v683 = vsel %vm659, %v647, %v671
    %v684 = vsel %vm660, %v648, %v672
    %v685 = vsel %vm661, %v649, %v673
    %v686 = vsel %vm662, %v650, %v674
    %v687 = vsel %vm663, %v651, %v675
    %v688 = vsel %vm664, %v652, %v676
    %v689 = vsel %vm665, %v653, %v677
    %v690 = vsel %vm666, %v654, %v678
    %v691 = vsel %vm223, 1, 0
    %v692 = vsel %vm224, 1, 0
    %v693 = vsel %vm225, 1, 0
    %vm694 = vcmp.eq.s32.totalorder %v691, 1
    %vm695 = vcmp.eq.s32.totalorder %v692, 1
    %vm696 = vcmp.eq.s32.totalorder %v693, 1
    %v697 = vsel %vm694, %v679, -1e+30
    %v698 = vsel %vm695, %v680, -1e+30
    %v699 = vsel %vm696, %v681, -1e+30
    %v700 = vsel %vm694, %v682, -1e+30
    %v701 = vsel %vm695, %v683, -1e+30
    %v702 = vsel %vm696, %v684, -1e+30
    %v703 = vsel %vm694, %v685, -1e+30
    %v704 = vsel %vm695, %v686, -1e+30
    %v705 = vsel %vm696, %v687, -1e+30
    %v706 = vsel %vm694, %v688, -1e+30
    %v707 = vsel %vm695, %v689, -1e+30
    %v708 = vsel %vm696, %v690, -1e+30
    %v709 = vsel %vm226, %v697, -inf
    %710 = vmax.xlane.f32.xlu0 %v709
    %v711 = vpop.xlane.xlu0 %710
    %v712 = vsel %vm226, %v698, -inf
    %713 = vmax.xlane.f32.xlu0 %v712
    %v714 = vpop.xlane.xlu0 %713
    %v715 = vsel %vm226, %v699, -inf
    %716 = vmax.xlane.f32.xlu0 %v715
    %v717 = vpop.xlane.xlu0 %716
    %v718 = vsel %vm226, %v700, -inf
    %719 = vmax.xlane.f32.xlu0 %v718
    %v720 = vpop.xlane.xlu0 %719
    %v721 = vsel %vm226, %v701, -inf
    %722 = vmax.xlane.f32.xlu0 %v721
    %v723 = vpop.xlane.xlu0 %722
    %v724 = vsel %vm226, %v702, -inf
    %725 = vmax.xlane.f32.xlu0 %v724
    %v726 = vpop.xlane.xlu0 %725
    %v727 = vsel %vm226, %v703, -inf
    %728 = vmax.xlane.f32.xlu0 %v727
    %v729 = vpop.xlane.xlu0 %728
    %v730 = vsel %vm226, %v704, -inf
    %731 = vmax.xlane.f32.xlu0 %v730
    %v732 = vpop.xlane.xlu0 %731
    %v733 = vsel %vm226, %v705, -inf
    %734 = vmax.xlane.f32.xlu0 %v733
    %v735 = vpop.xlane.xlu0 %734
    %v736 = vsel %vm226, %v706, -inf
    %737 = vmax.xlane.f32.xlu0 %v736
    %v738 = vpop.xlane.xlu0 %737
    %v739 = vsel %vm226, %v707, -inf
    %740 = vmax.xlane.f32.xlu0 %v739
    %v741 = vpop.xlane.xlu0 %740
    %v742 = vsel %vm226, %v708, -inf
    %743 = vmax.xlane.f32.xlu0 %v742
    %v744 = vpop.xlane.xlu0 %743
    %v745 = vsub.f32 %v697, %v711
    %v746 = vsub.f32 %v698, %v714
    %v747 = vsub.f32 %v699, %v717
    %v748 = vsub.f32 %v700, %v720
    %v749 = vsub.f32 %v701, %v723
    %v750 = vsub.f32 %v702, %v726
    %v751 = vsub.f32 %v703, %v729
    %v752 = vsub.f32 %v704, %v732
    %v753 = vsub.f32 %v705, %v735
    %v754 = vsub.f32 %v706, %v738
    %v755 = vsub.f32 %v707, %v741
    %v756 = vsub.f32 %v708, %v744
    %v757 = vmul.f32 %v745, 1.442695
    %v758 = vpow.pop %v757
    %v759 = vmul.f32 %v746, 1.442695
    %v760 = vpow.pop %v759
    %v761 = vmul.f32 %v747, 1.442695
    %v762 = vpow.pop %v761
    %v763 = vmul.f32 %v748, 1.442695
    %v764 = vpow.pop %v763
    %v765 = vmul.f32 %v749, 1.442695
    %v766 = vpow.pop %v765
    %v767 = vmul.f32 %v750, 1.442695
    %v768 = vpow.pop %v767
    %v769 = vmul.f32 %v751, 1.442695
    %v770 = vpow.pop %v769
    %v771 = vmul.f32 %v752, 1.442695
    %v772 = vpow.pop %v771
    %v773 = vmul.f32 %v753, 1.442695
    %v774 = vpow.pop %v773
    %v775 = vmul.f32 %v754, 1.442695
    %v776 = vpow.pop %v775
    %v777 = vmul.f32 %v755, 1.442695
    %v778 = vpow.pop %v777
    %v779 = vmul.f32 %v756, 1.442695
    %v780 = vpow.pop %v779
    %v781 = vsel %vm226, %v758, 0.0
    %782 = vadd.xlane.f32.xlu0 %v781
    %v783 = vpop.xlane.xlu0 %782
    %v784 = vsel %vm226, %v760, 0.0
    %785 = vadd.xlane.f32.xlu0 %v784
    %v786 = vpop.xlane.xlu0 %785
    %v787 = vsel %vm226, %v762, 0.0
    %788 = vadd.xlane.f32.xlu0 %v787
    %v789 = vpop.xlane.xlu0 %788
    %v790 = vsel %vm226, %v764, 0.0
    %791 = vadd.xlane.f32.xlu0 %v790
    %v792 = vpop.xlane.xlu0 %791
    %v793 = vsel %vm226, %v766, 0.0
    %794 = vadd.xlane.f32.xlu0 %v793
    %v795 = vpop.xlane.xlu0 %794
    %v796 = vsel %vm226, %v768, 0.0
    %797 = vadd.xlane.f32.xlu0 %v796
    %v798 = vpop.xlane.xlu0 %797
    %v799 = vsel %vm226, %v770, 0.0
    %800 = vadd.xlane.f32.xlu0 %v799
    %v801 = vpop.xlane.xlu0 %800
    %v802 = vsel %vm226, %v772, 0.0
    %803 = vadd.xlane.f32.xlu0 %v802
    %v804 = vpop.xlane.xlu0 %803
    %v805 = vsel %vm226, %v774, 0.0
    %806 = vadd.xlane.f32.xlu0 %v805
    %v807 = vpop.xlane.xlu0 %806
    %v808 = vsel %vm226, %v776, 0.0
    %809 = vadd.xlane.f32.xlu0 %v808
    %v810 = vpop.xlane.xlu0 %809
    %v811 = vsel %vm226, %v778, 0.0
    %812 = vadd.xlane.f32.xlu0 %v811
    %v813 = vpop.xlane.xlu0 %812
    %v814 = vsel %vm226, %v780, 0.0
    %815 = vadd.xlane.f32.xlu0 %v814
    %v816 = vpop.xlane.xlu0 %815
    %v817 = vmul.f32 %v758, %v242
    %v818 = vmul.f32 %v760, %v243
    %v819 = vmul.f32 %v762, %v244
    %v820 = vmul.f32 %v764, %v242
    %v821 = vmul.f32 %v766, %v243
    %v822 = vmul.f32 %v768, %v244
    %v823 = vmul.f32 %v770, %v242
    %v824 = vmul.f32 %v772, %v243
    %v825 = vmul.f32 %v774, %v244
    %v826 = vmul.f32 %v776, %v242
    %v827 = vmul.f32 %v778, %v243
    %v828 = vmul.f32 %v780, %v244
    %v829 = vrcp.pop %v783
    %v830 = vrcp.pop %v786
    %v831 = vrcp.pop %v789
    %v832 = vrcp.pop %v792
    %v833 = vrcp.pop %v795
    %v834 = vrcp.pop %v798
    %v835 = vrcp.pop %v801
    %v836 = vrcp.pop %v804
    %v837 = vrcp.pop %v807
    %v838 = vrcp.pop %v810
    %v839 = vrcp.pop %v813
    %v840 = vrcp.pop %v816
    %v841 = vpack.c.bf16 %v818, %v817
    %v842 = vpack.c.bf16 %v819, %v819
    %v843 = vpack.c.bf16 %v366, %v363
    %v845 = vsel %vm226, %v841, 0
    %v848 = vsel %vm226, %v842, 0
    %850 = vmatprep.subr.bf16.mxu0 0
    %851 = vmatpush1.bf16.msra.mxu0 0
    %852 = vmatprep.subr.bf16.mxu0 0
    %853 = vmatpush1.bf16.msra.mxu0 0
    %854 = vmatprep.subr.bf16.mxu0 0
    %855 = vmatpush1.bf16.msra.mxu0 0
    %856 = vmatprep.subr.bf16.mxu0 0
    %857 = vmatpush1.bf16.msra.mxu0 0
    %858 = vmatprep.subr.bf16.mxu0 0
    %859 = vmatpush1.bf16.msra.mxu0 0
    %860 = vmatprep.subr.bf16.mxu0 0
    %861 = vmatpush1.bf16.msra.mxu0 0
    %862 = vmatprep.subr.bf16.mxu0 0
    %863 = vmatpush1.bf16.msra.mxu0 0
    %864 = vmatprep.subr.bf16.mxu0 0
    %865 = vmatpush1.bf16.msra.mxu0 %v843
    %866 = vmatprep.subr.bf16.mxu0 0
    %867 = vmatpush2.bf16.msra.mxu0 0
    %868 = vmatprep.subr.bf16.mxu0 0
    %869 = vmatpush2.bf16.msra.mxu0 0
    %870 = vmatprep.subr.bf16.mxu0 0
    %871 = vmatpush2.bf16.msra.mxu0 0
    %872 = vmatprep.subr.bf16.mxu0 0
    %873 = vmatpush2.bf16.msra.mxu0 0
    %874 = vmatprep.subr.bf16.mxu0 0
    %875 = vmatpush2.bf16.msra.mxu0 0
    %876 = vmatprep.subr.bf16.mxu0 0
    %877 = vmatpush2.bf16.msra.mxu0 0
    %878 = vmatprep.subr.bf16.mxu0 0
    %879 = vmatpush2.bf16.msra.mxu0 0
    %880 = vmatprep.subr.bf16.mxu0 0
    %881 = vmatpush2.bf16.msra.mxu0 0
    %882 = vmatprep.mubr.bf16.mxu0 0
    %883 = vmatmul.mubr.bf16.gmra.mxu0 %v845
    %v884 = vpop.f32.mrf.mxu0
    %v885 = vadd.f32 0.0, %v884
    %v886 = vpop.f32.mrf.mxu0
    %v887 = vpop.f32.mrf.mxu0
    %v888 = vadd.f32 0.0, %v887
    %v889 = vpop.f32.mrf.mxu0
    %890 = vmatprep.mubr.bf16.mxu0 0
    %891 = vmatmul.mubr.bf16.gmra.mxu0 %v848
    %v892 = vpop.f32.mrf.mxu0
    %v893 = vadd.f32 0.0, %v892
    %v894 = vpop.f32.mrf.mxu0
    %v895 = vpop.f32.mrf.mxu0
    %v896 = vpop.f32.mrf.mxu0
    %897 = vdwg.mxu0
    %v898 = vmul.f32 %v885, %v829
    %v899 = vmul.f32 %v888, %v830
    %v900 = vmul.f32 %v893, %v831
    %v901 = vpack.c.bf16 %v821, %v820
    %v902 = vpack.c.bf16 %v822, %v822
    %904 = vrot.lane.b32.xlu0 %v843, 120
    %v905 = vpop.permute.xlu0 %904
    %v908 = vsel %vm226, %v901, 0
    %v911 = vsel %vm226, %v902, 0
    %913 = vmatprep.subr.bf16.mxu0 0
    %914 = vmatpush1.bf16.msra.mxu0 0
    %915 = vmatprep.subr.bf16.mxu0 0
    %916 = vmatpush1.bf16.msra.mxu0 0
    %917 = vmatprep.subr.bf16.mxu0 0
    %918 = vmatpush1.bf16.msra.mxu0 0
    %919 = vmatprep.subr.bf16.mxu0 0
    %920 = vmatpush1.bf16.msra.mxu0 0
    %921 = vmatprep.subr.bf16.mxu0 0
    %922 = vmatpush1.bf16.msra.mxu0 0
    %923 = vmatprep.subr.bf16.mxu0 0
    %924 = vmatpush1.bf16.msra.mxu0 0
    %925 = vmatprep.subr.bf16.mxu0 0
    %926 = vmatpush1.bf16.msra.mxu0 0
    %927 = vmatprep.subr.bf16.mxu0 0
    %928 = vmatpush1.bf16.msra.mxu0 %v905
    %929 = vmatprep.subr.bf16.mxu0 0
    %930 = vmatpush2.bf16.msra.mxu0 0
    %931 = vmatprep.subr.bf16.mxu0 0
    %932 = vmatpush2.bf16.msra.mxu0 0
    %933 = vmatprep.subr.bf16.mxu0 0
    %934 = vmatpush2.bf16.msra.mxu0 0
    %935 = vmatprep.subr.bf16.mxu0 0
    %936 = vmatpush2.bf16.msra.mxu0 0
    %937 = vmatprep.subr.bf16.mxu0 0
    %938 = vmatpush2.bf16.msra.mxu0 0
    %939 = vmatprep.subr.bf16.mxu0 0
    %940 = vmatpush2.bf16.msra.mxu0 0
    %941 = vmatprep.subr.bf16.mxu0 0
    %942 = vmatpush2.bf16.msra.mxu0 0
    %943 = vmatprep.subr.bf16.mxu0 0
    %944 = vmatpush2.bf16.msra.mxu0 0
    %945 = vmatprep.mubr.bf16.mxu0 0
    %946 = vmatmul.mubr.bf16.gmra.mxu0 %v908
    %v947 = vpop.f32.mrf.mxu0
    %v948 = vadd.f32 0.0, %v947
    %v949 = vpop.f32.mrf.mxu0
    %v950 = vpop.f32.mrf.mxu0
    %v951 = vadd.f32 0.0, %v950
    %v952 = vpop.f32.mrf.mxu0
    %953 = vmatprep.mubr.bf16.mxu0 0
    %954 = vmatmul.mubr.bf16.gmra.mxu0 %v911
    %v955 = vpop.f32.mrf.mxu0
    %v956 = vadd.f32 0.0, %v955
    %v957 = vpop.f32.mrf.mxu0
    %v958 = vpop.f32.mrf.mxu0
    %v959 = vpop.f32.mrf.mxu0
    %960 = vdwg.mxu0
    %v961 = vmul.f32 %v948, %v832
    %v962 = vmul.f32 %v951, %v833
    %v963 = vmul.f32 %v956, %v834
    %v964 = vpack.c.bf16 %v824, %v823
    %v965 = vpack.c.bf16 %v825, %v825
    %966 = vrot.lane.b32.xlu0 %v843, 112
    %v967 = vpop.permute.xlu0 %966
    %v970 = vsel %vm226, %v964, 0
    %v973 = vsel %vm226, %v965, 0
    %975 = vmatprep.subr.bf16.mxu0 0
    %976 = vmatpush1.bf16.msra.mxu0 0
    %977 = vmatprep.subr.bf16.mxu0 0
    %978 = vmatpush1.bf16.msra.mxu0 0
    %979 = vmatprep.subr.bf16.mxu0 0
    %980 = vmatpush1.bf16.msra.mxu0 0
    %981 = vmatprep.subr.bf16.mxu0 0
    %982 = vmatpush1.bf16.msra.mxu0 0
    %983 = vmatprep.subr.bf16.mxu0 0
    %984 = vmatpush1.bf16.msra.mxu0 0
    %985 = vmatprep.subr.bf16.mxu0 0
    %986 = vmatpush1.bf16.msra.mxu0 0
    %987 = vmatprep.subr.bf16.mxu0 0
    %988 = vmatpush1.bf16.msra.mxu0 0
    %989 = vmatprep.subr.bf16.mxu0 0
    %990 = vmatpush1.bf16.msra.mxu0 %v967
    %991 = vmatprep.subr.bf16.mxu0 0
    %992 = vmatpush2.bf16.msra.mxu0 0
    %993 = vmatprep.subr.bf16.mxu0 0
    %994 = vmatpush2.bf16.msra.mxu0 0
    %995 = vmatprep.subr.bf16.mxu0 0
    %996 = vmatpush2.bf16.msra.mxu0 0
    %997 = vmatprep.subr.bf16.mxu0 0
    %998 = vmatpush2.bf16.msra.mxu0 0
    %999 = vmatprep.subr.bf16.mxu0 0
    %1000 = vmatpush2.bf16.msra.mxu0 0
    %1001 = vmatprep.subr.bf16.mxu0 0
    %1002 = vmatpush2.bf16.msra.mxu0 0
    %1003 = vmatprep.subr.bf16.mxu0 0
    %1004 = vmatpush2.bf16.msra.mxu0 0
    %1005 = vmatprep.subr.bf16.mxu0 0
    %1006 = vmatpush2.bf16.msra.mxu0 0
    %1007 = vmatprep.mubr.bf16.mxu0 0
    %1008 = vmatmul.mubr.bf16.gmra.mxu0 %v970
    %v1009 = vpop.f32.mrf.mxu0
    %v1010 = vadd.f32 0.0, %v1009
    %v1011 = vpop.f32.mrf.mxu0
    %v1012 = vpop.f32.mrf.mxu0
    %v1013 = vadd.f32 0.0, %v1012
    %v1014 = vpop.f32.mrf.mxu0
    %1015 = vmatprep.mubr.bf16.mxu0 0
    %1016 = vmatmul.mubr.bf16.gmra.mxu0 %v973
    %v1017 = vpop.f32.mrf.mxu0
    %v1018 = vadd.f32 0.0, %v1017
    %v1019 = vpop.f32.mrf.mxu0
    %v1020 = vpop.f32.mrf.mxu0
    %v1021 = vpop.f32.mrf.mxu0
    %1022 = vdwg.mxu0
    %v1023 = vmul.f32 %v1010, %v835
    %v1024 = vmul.f32 %v1013, %v836
    %v1025 = vmul.f32 %v1018, %v837
    %v1026 = vpack.c.bf16 %v827, %v826
    %v1027 = vpack.c.bf16 %v828, %v828
    %1028 = vrot.lane.b32.xlu0 %v843, 104
    %v1029 = vpop.permute.xlu0 %1028
    %v1032 = vsel %vm226, %v1026, 0
    %v1035 = vsel %vm226, %v1027, 0
    %1037 = vmatprep.subr.bf16.mxu0 0
    %1038 = vmatpush1.bf16.msra.mxu0 0
    %1039 = vmatprep.subr.bf16.mxu0 0
    %1040 = vmatpush1.bf16.msra.mxu0 0
    %1041 = vmatprep.subr.bf16.mxu0 0
    %1042 = vmatpush1.bf16.msra.mxu0 0
    %1043 = vmatprep.subr.bf16.mxu0 0
    %1044 = vmatpush1.bf16.msra.mxu0 0
    %1045 = vmatprep.subr.bf16.mxu0 0
    %1046 = vmatpush1.bf16.msra.mxu0 0
    %1047 = vmatprep.subr.bf16.mxu0 0
    %1048 = vmatpush1.bf16.msra.mxu0 0
    %1049 = vmatprep.subr.bf16.mxu0 0
    %1050 = vmatpush1.bf16.msra.mxu0 0
    %1051 = vmatprep.subr.bf16.mxu0 0
    %1052 = vmatpush1.bf16.msra.mxu0 %v1029
    %1053 = vmatprep.subr.bf16.mxu0 0
    %1054 = vmatpush2.bf16.msra.mxu0 0
    %1055 = vmatprep.subr.bf16.mxu0 0
    %1056 = vmatpush2.bf16.msra.mxu0 0
    %1057 = vmatprep.subr.bf16.mxu0 0
    %1058 = vmatpush2.bf16.msra.mxu0 0
    %1059 = vmatprep.subr.bf16.mxu0 0
    %1060 = vmatpush2.bf16.msra.mxu0 0
    %1061 = vmatprep.subr.bf16.mxu0 0
    %1062 = vmatpush2.bf16.msra.mxu0 0
    %1063 = vmatprep.subr.bf16.mxu0 0
    %1064 = vmatpush2.bf16.msra.mxu0 0
    %1065 = vmatprep.subr.bf16.mxu0 0
    %1066 = vmatpush2.bf16.msra.mxu0 0
    %1067 = vmatprep.subr.bf16.mxu0 0
    %1068 = vmatpush2.bf16.msra.mxu0 0
    %1069 = vmatprep.mubr.bf16.mxu0 0
    %1070 = vmatmul.mubr.bf16.gmra.mxu0 %v1032
    %v1071 = vpop.f32.mrf.mxu0
    %v1072 = vadd.f32 0.0, %v1071
    %v1073 = vpop.f32.mrf.mxu0
    %v1074 = vpop.f32.mrf.mxu0
    %v1075 = vadd.f32 0.0, %v1074
    %v1076 = vpop.f32.mrf.mxu0
    %1077 = vmatprep.mubr.bf16.mxu0 0
    %1078 = vmatmul.mubr.bf16.gmra.mxu0 %v1035
    %v1079 = vpop.f32.mrf.mxu0
    %v1080 = vadd.f32 0.0, %v1079
    %v1081 = vpop.f32.mrf.mxu0
    %v1082 = vpop.f32.mrf.mxu0
    %v1083 = vpop.f32.mrf.mxu0
    %1084 = vdwg.mxu0
    %v1085 = vmul.f32 %v1072, %v838
    %v1086 = vmul.f32 %v1075, %v839
    %v1087 = vmul.f32 %v1080, %v840
    %1091 = vrot.lane.b32.xlu0 %v961, 8
    %v1092 = vpop.permute.xlu0 %1091
    %1093 = vrot.lane.b32.xlu0 %v962, 8
    %v1094 = vpop.permute.xlu0 %1093
    %1095 = vrot.lane.b32.xlu0 %v963, 8
    %v1096 = vpop.permute.xlu0 %1095
    %1103 = vrot.lane.b32.xlu0 %v1023, 16
    %v1104 = vpop.permute.xlu0 %1103
    %1105 = vrot.lane.b32.xlu0 %v1024, 16
    %v1106 = vpop.permute.xlu0 %1105
    %1107 = vrot.lane.b32.xlu0 %v1025, 16
    %v1108 = vpop.permute.xlu0 %1107
    %1115 = vrot.lane.b32.xlu0 %v1085, 24
    %v1116 = vpop.permute.xlu0 %1115
    %1117 = vrot.lane.b32.xlu0 %v1086, 24
    %v1118 = vpop.permute.xlu0 %1117
    %1119 = vrot.lane.b32.xlu0 %v1087, 24
    %v1120 = vpop.permute.xlu0 %1119
    %vm1124 = vcmask 64512
    %v1125 = vsel %vm1124, %v898, %v1092
    %v1126 = vsel %vm1124, %v899, %v1094
    %v1127 = vsel %vm1124, %v900, %v1096
    %v1128 = vsel %vm226, %v1125, %v1104
    %v1129 = vsel %vm226, %v1126, %v1106
    %v1130 = vsel %vm226, %v1127, %v1108
    %v1131 = vsel %vm251, %v1128, %v1116
    %v1132 = vsel %vm251, %v1129, %v1118
    %v1133 = vsel %vm251, %v1130, %v1120
    %v1134 = vmax.f32 %v1131, 0.0
    %v1135 = vmax.f32 %v1132, 0.0
    %v1136 = vmax.f32 %v1133, 0.0
    %1137 = vrot.lane.b32.xlu0 %v441, 92
    %v1138 = vpop.permute.xlu0 %1137
    %1139 = vrot.lane.b32.xlu0 %v444, 92
    %v1140 = vpop.permute.xlu0 %1139
    %1141 = vrot.lane.b32.xlu0 %v449, 92
    %v1142 = vpop.permute.xlu0 %1141
    %1146 = vxpose.xlu0.b32.start [1/16] %v1138, 128
    %1147 = vxpose.xlu0.b32.cont [2/16] %v1140, 128
    %1148 = vxpose.xlu0.b32.cont [3/16] %v1142, 128
    %1149 = vxpose.xlu0.b32.cont [4/16] 0.0, 128
    %1150 = vxpose.xlu0.b32.cont [5/16] 0.0, 128
    %1151 = vxpose.xlu0.b32.cont [6/16] 0.0, 128
    %1152 = vxpose.xlu0.b32.cont [7/16] 0.0, 128
    %1153 = vxpose.xlu0.b32.cont [8/16] 0.0, 128
    %1154 = vxpose.xlu0.b32.cont [9/16] 0.0, 128
    %1155 = vxpose.xlu0.b32.cont [10/16] 0.0, 128
    %1156 = vxpose.xlu0.b32.cont [11/16] 0.0, 128
    %1157 = vxpose.xlu0.b32.cont [12/16] 0.0, 128
    %1158 = vxpose.xlu0.b32.cont [13/16] 0.0, 128
    %1159 = vxpose.xlu0.b32.cont [14/16] 0.0, 128
    %1160 = vxpose.xlu0.b32.cont [15/16] 0.0, 128
    %1161 = vxpose.xlu0.b32.end [16/16] 0.0, 128
    %v1162 = vpop.trf.xlu0
    %v1163 = vpop.trf.xlu0
    %v1164 = vpop.trf.xlu0
    %v1165 = vpop.trf.xlu0
    %v1166 = vpop.trf.xlu0
    %v1167 = vpop.trf.xlu0
    %v1168 = vpop.trf.xlu0
    %v1169 = vpop.trf.xlu0
    %v1170 = vpop.trf.xlu0
    %v1171 = vpop.trf.xlu0
    %v1172 = vpop.trf.xlu0
    %v1173 = vpop.trf.xlu0
    %v1174 = vpop.trf.xlu0
    %v1175 = vpop.trf.xlu0
    %v1176 = vpop.trf.xlu0
    %v1177 = vpop.trf.xlu0
    %1178 = vrot.lane.b32.xlu0 %v363, 80
    %v1179 = vpop.permute.xlu0 %1178
    %1180 = vrot.lane.b32.xlu0 %v366, 80
    %v1181 = vpop.permute.xlu0 %1180
    %1184 = vxpose.xlu0.b32.start [1/16] %v1179, 128
    %1185 = vxpose.xlu0.b32.cont [2/16] %v1181, 128
    %1186 = vxpose.xlu0.b32.cont [3/16] 0.0, 128
    %1187 = vxpose.xlu0.b32.cont [4/16] 0.0, 128
    %1188 = vxpose.xlu0.b32.cont [5/16] 0.0, 128
    %1189 = vxpose.xlu0.b32.cont [6/16] 0.0, 128
    %1190 = vxpose.xlu0.b32.cont [7/16] 0.0, 128
    %1191 = vxpose.xlu0.b32.cont [8/16] 0.0, 128
    %1192 = vxpose.xlu0.b32.cont [9/16] 0.0, 128
    %1193 = vxpose.xlu0.b32.cont [10/16] 0.0, 128
    %1194 = vxpose.xlu0.b32.cont [11/16] 0.0, 128
    %1195 = vxpose.xlu0.b32.cont [12/16] 0.0, 128
    %1196 = vxpose.xlu0.b32.cont [13/16] 0.0, 128
    %1197 = vxpose.xlu0.b32.cont [14/16] 0.0, 128
    %1198 = vxpose.xlu0.b32.cont [15/16] 0.0, 128
    %1199 = vxpose.xlu0.b32.end [16/16] 0.0, 128
    %v1200 = vpop.trf.xlu0
    %v1201 = vpop.trf.xlu0
    %v1202 = vpop.trf.xlu0
    %v1203 = vpop.trf.xlu0
    %v1204 = vpop.trf.xlu0
    %v1205 = vpop.trf.xlu0
    %v1206 = vpop.trf.xlu0
    %v1207 = vpop.trf.xlu0
    %v1208 = vpop.trf.xlu0
    %v1209 = vpop.trf.xlu0
    %v1210 = vpop.trf.xlu0
    %v1211 = vpop.trf.xlu0
    %v1212 = vpop.trf.xlu0
    %v1213 = vpop.trf.xlu0
    %v1214 = vpop.trf.xlu0
    %v1215 = vpop.trf.xlu0
    %v1216 = vlaneseq
    %v1217 = vshrl.u32 %v1216, 7
    %v1218 = vsub.s32 0, %v1217
    %v1219 = vrot.slane %v1200, %v1218
    %1221 = vbcast.lane.b32.xlu0 %v1219, 256
    %v1222 = vpop.permute.xlu0 %1221
    %s1224 = sor.u32 256, 8
    %1225 = vbcast.lane.b32.xlu0 %v1219, %s1224
    %v1226 = vpop.permute.xlu0 %1225
    %v1227 = vlaneseq
    %v1228 = vshrl.u32 %v1227, 7
    %v1229 = vsub.s32 1, %v1228
    %v1230 = vrot.slane %v1200, %v1229
    %1232 = vbcast.lane.b32.xlu0 %v1230, 256
    %v1233 = vpop.permute.xlu0 %1232
    %s1235 = sor.u32 256, 8
    %1236 = vbcast.lane.b32.xlu0 %v1230, %s1235
    %v1237 = vpop.permute.xlu0 %1236
    %v1238 = vlaneseq
    %v1239 = vshrl.u32 %v1238, 7
    %v1240 = vsub.s32 2, %v1239
    %v1241 = vrot.slane %v1200, %v1240
    %1243 = vbcast.lane.b32.xlu0 %v1241, 256
    %v1244 = vpop.permute.xlu0 %1243
    %s1246 = sor.u32 256, 8
    %1247 = vbcast.lane.b32.xlu0 %v1241, %s1246
    %v1248 = vpop.permute.xlu0 %1247
    %v1249 = vlaneseq
    %v1250 = vshrl.u32 %v1249, 7
    %v1251 = vsub.s32 3, %v1250
    %v1252 = vrot.slane %v1200, %v1251
    %1254 = vbcast.lane.b32.xlu0 %v1252, 256
    %v1255 = vpop.permute.xlu0 %1254
    %s1257 = sor.u32 256, 8
    %1258 = vbcast.lane.b32.xlu0 %v1252, %s1257
    %v1259 = vpop.permute.xlu0 %1258
    %v1262 = vunpack.c.l.s4 1966171168
    %v1263 = vunpack.c.0.s8 %v1262
    %v1264 = vlaneseq
    %v1265 = vshrl.u32 %v1264, 7
    %v1266 = vsub.s32 %v1263, %v1265
    %v1267 = vrot.slane %v1162, %v1266
    %v1268 = vcombine.high %v1267, %v1267
    %v1270 = vunpack.c.l.s4 1966171168
    %v1271 = vunpack.c.0.s8 %v1270
    %v1272 = vlaneseq
    %v1273 = vshrl.u32 %v1272, 7
    %v1274 = vsub.s32 %v1271, %v1273
    %v1275 = vrot.slane %v1267, %v1274
    %v1277 = vunpack.c.l.s4 1966171168
    %v1278 = vunpack.c.0.s8 %v1277
    %v1279 = vlaneseq
    %v1280 = vshrl.u32 %v1279, 7
    %v1281 = vsub.s32 %v1278, %v1280
    %v1282 = vrot.slane %v1268, %v1281
    %v1283 = vcombine.high %v1275, %v1275
    %v1284 = vcombine.high %v1282, %v1282
    %v1285 = vlaneseq
    %v1286 = vshrl.u32 %v1285, 7
    %v1287 = vsub.s32 0, %v1286
    %v1288 = vrot.slane %v1275, %v1287
    %v1289 = vlaneseq
    %v1290 = vshrl.u32 %v1289, 7
    %v1291 = vsub.s32 0, %v1290
    %v1292 = vrot.slane %v1282, %v1291
    %v1293 = vlaneseq
    %v1294 = vshrl.u32 %v1293, 7
    %v1295 = vsub.s32 0, %v1294
    %v1296 = vrot.slane %v1283, %v1295
    %v1297 = vlaneseq
    %v1298 = vshrl.u32 %v1297, 7
    %v1299 = vsub.s32 0, %v1298
    %v1300 = vrot.slane %v1284, %v1299
    %v1305 = vadd.f32 %v1222, %v1288
    %v1306 = vadd.f32 %v1226, %v1288
    %v1307 = vadd.f32 %v1233, %v1292
    %v1308 = vadd.f32 %v1237, %v1292
    %v1309 = vadd.f32 %v1244, %v1296
    %v1310 = vadd.f32 %v1248, %v1296
    %v1311 = vadd.f32 %v1255, %v1300
    %v1312 = vadd.f32 %v1259, %v1300
    %vm1313 = vcmp.ge.f32.partialorder %v1305, 0.0
    %vm1314 = vcmp.ge.f32.partialorder %v1306, 0.0
    %vm1315 = vcmp.ge.f32.partialorder %v1307, 0.0
    %vm1316 = vcmp.ge.f32.partialorder %v1308, 0.0
    %vm1317 = vcmp.ge.f32.partialorder %v1309, 0.0
    %vm1318 = vcmp.ge.f32.partialorder %v1310, 0.0
    %vm1319 = vcmp.ge.f32.partialorder %v1311, 0.0
    %vm1320 = vcmp.ge.f32.partialorder %v1312, 0.0
    %v1321 = vmul.f32 %v1305, 0.2
    %v1322 = vmul.f32 %v1306, 0.2
    %v1323 = vmul.f32 %v1307, 0.2
    %v1324 = vmul.f32 %v1308, 0.2
    %v1325 = vmul.f32 %v1309, 0.2
    %v1326 = vmul.f32 %v1310, 0.2
    %v1327 = vmul.f32 %v1311, 0.2
    %v1328 = vmul.f32 %v1312, 0.2
    %v1329 = vsel %vm1313, %v1305, %v1321
    %v1330 = vsel %vm1314, %v1306, %v1322
    %v1331 = vsel %vm1315, %v1307, %v1323
    %v1332 = vsel %vm1316, %v1308, %v1324
    %v1333 = vsel %vm1317, %v1309, %v1325
    %v1334 = vsel %vm1318, %v1310, %v1326
    %v1335 = vsel %vm1319, %v1311, %v1327
    %v1336 = vsel %vm1320, %v1312, %v1328
    %v1337 = vsel %vm249, 1, 0
    %v1338 = vsel %vm250, 1, 0
    %vm1339 = vcmp.eq.s32.totalorder %v1337, 1
    %vm1340 = vcmp.eq.s32.totalorder %v1338, 1
    %v1341 = vsel %vm1339, %v1329, -1e+30
    %v1342 = vsel %vm1340, %v1330, -1e+30
    %v1343 = vsel %vm1339, %v1331, -1e+30
    %v1344 = vsel %vm1340, %v1332, -1e+30
    %v1345 = vsel %vm1339, %v1333, -1e+30
    %v1346 = vsel %vm1340, %v1334, -1e+30
    %v1347 = vsel %vm1339, %v1335, -1e+30
    %v1348 = vsel %vm1340, %v1336, -1e+30
    %v1349 = vsel %vm251, %v1341, -inf
    %1350 = vmax.xlane.f32.xlu0 %v1349
    %v1351 = vpop.xlane.xlu0 %1350
    %v1352 = vsel %vm251, %v1342, -inf
    %1353 = vmax.xlane.f32.xlu0 %v1352
    %v1354 = vpop.xlane.xlu0 %1353
    %v1355 = vsel %vm251, %v1343, -inf
    %1356 = vmax.xlane.f32.xlu0 %v1355
    %v1357 = vpop.xlane.xlu0 %1356
    %v1358 = vsel %vm251, %v1344, -inf
    %1359 = vmax.xlane.f32.xlu0 %v1358
    %v1360 = vpop.xlane.xlu0 %1359
    %v1361 = vsel %vm251, %v1345, -inf
    %1362 = vmax.xlane.f32.xlu0 %v1361
    %v1363 = vpop.xlane.xlu0 %1362
    %v1364 = vsel %vm251, %v1346, -inf
    %1365 = vmax.xlane.f32.xlu0 %v1364
    %v1366 = vpop.xlane.xlu0 %1365
    %v1367 = vsel %vm251, %v1347, -inf
    %1368 = vmax.xlane.f32.xlu0 %v1367
    %v1369 = vpop.xlane.xlu0 %1368
    %v1370 = vsel %vm251, %v1348, -inf
    %1371 = vmax.xlane.f32.xlu0 %v1370
    %v1372 = vpop.xlane.xlu0 %1371
    %v1373 = vsub.f32 %v1341, %v1351
    %v1374 = vsub.f32 %v1342, %v1354
    %v1375 = vsub.f32 %v1343, %v1357
    %v1376 = vsub.f32 %v1344, %v1360
    %v1377 = vsub.f32 %v1345, %v1363
    %v1378 = vsub.f32 %v1346, %v1366
    %v1379 = vsub.f32 %v1347, %v1369
    %v1380 = vsub.f32 %v1348, %v1372
    %v1381 = vmul.f32 %v1373, 1.442695
    %v1382 = vpow.pop %v1381
    %v1383 = vmul.f32 %v1374, 1.442695
    %v1384 = vpow.pop %v1383
    %v1385 = vmul.f32 %v1375, 1.442695
    %v1386 = vpow.pop %v1385
    %v1387 = vmul.f32 %v1376, 1.442695
    %v1388 = vpow.pop %v1387
    %v1389 = vmul.f32 %v1377, 1.442695
    %v1390 = vpow.pop %v1389
    %v1391 = vmul.f32 %v1378, 1.442695
    %v1392 = vpow.pop %v1391
    %v1393 = vmul.f32 %v1379, 1.442695
    %v1394 = vpow.pop %v1393
    %v1395 = vmul.f32 %v1380, 1.442695
    %v1396 = vpow.pop %v1395
    %v1397 = vsel %vm251, %v1382, 0.0
    %1398 = vadd.xlane.f32.xlu0 %v1397
    %v1399 = vpop.xlane.xlu0 %1398
    %v1400 = vsel %vm251, %v1384, 0.0
    %1401 = vadd.xlane.f32.xlu0 %v1400
    %v1402 = vpop.xlane.xlu0 %1401
    %v1403 = vsel %vm251, %v1386, 0.0
    %1404 = vadd.xlane.f32.xlu0 %v1403
    %v1405 = vpop.xlane.xlu0 %1404
    %v1406 = vsel %vm251, %v1388, 0.0
    %1407 = vadd.xlane.f32.xlu0 %v1406
    %v1408 = vpop.xlane.xlu0 %1407
    %v1409 = vsel %vm251, %v1390, 0.0
    %1410 = vadd.xlane.f32.xlu0 %v1409
    %v1411 = vpop.xlane.xlu0 %1410
    %v1412 = vsel %vm251, %v1392, 0.0
    %1413 = vadd.xlane.f32.xlu0 %v1412
    %v1414 = vpop.xlane.xlu0 %1413
    %v1415 = vsel %vm251, %v1394, 0.0
    %1416 = vadd.xlane.f32.xlu0 %v1415
    %v1417 = vpop.xlane.xlu0 %1416
    %v1418 = vsel %vm251, %v1396, 0.0
    %1419 = vadd.xlane.f32.xlu0 %v1418
    %v1420 = vpop.xlane.xlu0 %1419
    %v1421 = vmul.f32 %v1382, %v262
    %v1422 = vmul.f32 %v1384, %v263
    %v1423 = vmul.f32 %v1386, %v262
    %v1424 = vmul.f32 %v1388, %v263
    %v1425 = vmul.f32 %v1390, %v262
    %v1426 = vmul.f32 %v1392, %v263
    %v1427 = vmul.f32 %v1394, %v262
    %v1428 = vmul.f32 %v1396, %v263
    %v1429 = vrcp.pop %v1399
    %v1430 = vrcp.pop %v1402
    %v1431 = vrcp.pop %v1405
    %v1432 = vrcp.pop %v1408
    %v1433 = vrcp.pop %v1411
    %v1434 = vrcp.pop %v1414
    %v1435 = vrcp.pop %v1417
    %v1436 = vrcp.pop %v1420
    %v1437 = vpack.c.bf16 %v1422, %v1421
    %v1438 = vpack.c.bf16 %v444, %v441
    %v1439 = vpack.c.bf16 %v449, %v449
    %v1441 = vsel %vm251, %v1437, 0
    %vm1443 = vcmask 1043456
    %v1445 = vsel %vm1443, %v1439, 0
    %1447 = vmatprep.subr.bf16.mxu0 0
    %1448 = vmatpush1.bf16.msra.mxu0 0
    %1449 = vmatprep.subr.bf16.mxu0 0
    %1450 = vmatpush1.bf16.msra.mxu0 0
    %1451 = vmatprep.subr.bf16.mxu0 0
    %1452 = vmatpush1.bf16.msra.mxu0 0
    %1453 = vmatprep.subr.bf16.mxu0 0
    %1454 = vmatpush1.bf16.msra.mxu0 0
    %1455 = vmatprep.subr.bf16.mxu0 0
    %1456 = vmatpush1.bf16.msra.mxu0 0
    %1457 = vmatprep.subr.bf16.mxu0 0
    %1458 = vmatpush1.bf16.msra.mxu0 0
    %1459 = vmatprep.subr.bf16.mxu0 0
    %1460 = vmatpush1.bf16.msra.mxu0 %v1445
    %1461 = vmatprep.subr.bf16.mxu0 0
    %1462 = vmatpush1.bf16.msra.mxu0 %v1438
    %1463 = vmatprep.subr.bf16.mxu0 0
    %1464 = vmatpush2.bf16.msra.mxu0 0
    %1465 = vmatprep.subr.bf16.mxu0 0
    %1466 = vmatpush2.bf16.msra.mxu0 0
    %1467 = vmatprep.subr.bf16.mxu0 0
    %1468 = vmatpush2.bf16.msra.mxu0 0
    %1469 = vmatprep.subr.bf16.mxu0 0
    %1470 = vmatpush2.bf16.msra.mxu0 0
    %1471 = vmatprep.subr.bf16.mxu0 0
    %1472 = vmatpush2.bf16.msra.mxu0 0
    %1473 = vmatprep.subr.bf16.mxu0 0
    %1474 = vmatpush2.bf16.msra.mxu0 0
    %1475 = vmatprep.subr.bf16.mxu0 0
    %1476 = vmatpush2.bf16.msra.mxu0 0
    %1477 = vmatprep.subr.bf16.mxu0 0
    %1478 = vmatpush2.bf16.msra.mxu0 0
    %1479 = vmatprep.mubr.bf16.mxu0 0
    %1480 = vmatmul.mubr.bf16.gmra.mxu0 %v1441
    %v1481 = vpop.f32.mrf.mxu0
    %v1482 = vadd.f32 0.0, %v1481
    %v1483 = vpop.f32.mrf.mxu0
    %v1484 = vpop.f32.mrf.mxu0
    %v1485 = vadd.f32 0.0, %v1484
    %v1486 = vpop.f32.mrf.mxu0
    %1487 = vdwg.mxu0
    %v1488 = vmul.f32 %v1482, %v1429
    %v1489 = vmul.f32 %v1485, %v1430
    %v1490 = vpack.c.bf16 %v1424, %v1423
    %1493 = vrot.lane.b32.xlu0 %v1438, 120
    %v1494 = vpop.permute.xlu0 %1493
    %1495 = vrot.lane.b32.xlu0 %v1439, 120
    %v1496 = vpop.permute.xlu0 %1495
    %v1499 = vsel %vm251, %v1490, 0
    %v1502 = vsel %vm1443, %v1496, 0
    %1504 = vmatprep.subr.bf16.mxu0 0
    %1505 = vmatpush1.bf16.msra.mxu0 0
    %1506 = vmatprep.subr.bf16.mxu0 0
    %1507 = vmatpush1.bf16.msra.mxu0 0
    %1508 = vmatprep.subr.bf16.mxu0 0
    %1509 = vmatpush1.bf16.msra.mxu0 0
    %1510 = vmatprep.subr.bf16.mxu0 0
    %1511 = vmatpush1.bf16.msra.mxu0 0
    %1512 = vmatprep.subr.bf16.mxu0 0
    %1513 = vmatpush1.bf16.msra.mxu0 0
    %1514 = vmatprep.subr.bf16.mxu0 0
    %1515 = vmatpush1.bf16.msra.mxu0 0
    %1516 = vmatprep.subr.bf16.mxu0 0
    %1517 = vmatpush1.bf16.msra.mxu0 %v1502
    %1518 = vmatprep.subr.bf16.mxu0 0
    %1519 = vmatpush1.bf16.msra.mxu0 %v1494
    %1520 = vmatprep.subr.bf16.mxu0 0
    %1521 = vmatpush2.bf16.msra.mxu0 0
    %1522 = vmatprep.subr.bf16.mxu0 0
    %1523 = vmatpush2.bf16.msra.mxu0 0
    %1524 = vmatprep.subr.bf16.mxu0 0
    %1525 = vmatpush2.bf16.msra.mxu0 0
    %1526 = vmatprep.subr.bf16.mxu0 0
    %1527 = vmatpush2.bf16.msra.mxu0 0
    %1528 = vmatprep.subr.bf16.mxu0 0
    %1529 = vmatpush2.bf16.msra.mxu0 0
    %1530 = vmatprep.subr.bf16.mxu0 0
    %1531 = vmatpush2.bf16.msra.mxu0 0
    %1532 = vmatprep.subr.bf16.mxu0 0
    %1533 = vmatpush2.bf16.msra.mxu0 0
    %1534 = vmatprep.subr.bf16.mxu0 0
    %1535 = vmatpush2.bf16.msra.mxu0 0
    %1536 = vmatprep.mubr.bf16.mxu0 0
    %1537 = vmatmul.mubr.bf16.gmra.mxu0 %v1499
    %v1538 = vpop.f32.mrf.mxu0
    %v1539 = vadd.f32 0.0, %v1538
    %v1540 = vpop.f32.mrf.mxu0
    %v1541 = vpop.f32.mrf.mxu0
    %v1542 = vadd.f32 0.0, %v1541
    %v1543 = vpop.f32.mrf.mxu0
    %1544 = vdwg.mxu0
    %v1545 = vmul.f32 %v1539, %v1431
    %v1546 = vmul.f32 %v1542, %v1432
    %v1547 = vpack.c.bf16 %v1426, %v1425
    %1548 = vrot.lane.b32.xlu0 %v1438, 112
    %v1549 = vpop.permute.xlu0 %1548
    %1550 = vrot.lane.b32.xlu0 %v1439, 112
    %v1551 = vpop.permute.xlu0 %1550
    %v1554 = vsel %vm251, %v1547, 0
    %v1557 = vsel %vm1443, %v1551, 0
    %1559 = vmatprep.subr.bf16.mxu0 0
    %1560 = vmatpush1.bf16.msra.mxu0 0
    %1561 = vmatprep.subr.bf16.mxu0 0
    %1562 = vmatpush1.bf16.msra.mxu0 0
    %1563 = vmatprep.subr.bf16.mxu0 0
    %1564 = vmatpush1.bf16.msra.mxu0 0
    %1565 = vmatprep.subr.bf16.mxu0 0
    %1566 = vmatpush1.bf16.msra.mxu0 0
    %1567 = vmatprep.subr.bf16.mxu0 0
    %1568 = vmatpush1.bf16.msra.mxu0 0
    %1569 = vmatprep.subr.bf16.mxu0 0
    %1570 = vmatpush1.bf16.msra.mxu0 0
    %1571 = vmatprep.subr.bf16.mxu0 0
    %1572 = vmatpush1.bf16.msra.mxu0 %v1557
    %1573 = vmatprep.subr.bf16.mxu0 0
    %1574 = vmatpush1.bf16.msra.mxu0 %v1549
    %1575 = vmatprep.subr.bf16.mxu0 0
    %1576 = vmatpush2.bf16.msra.mxu0 0
    %1577 = vmatprep.subr.bf16.mxu0 0
    %1578 = vmatpush2.bf16.msra.mxu0 0
    %1579 = vmatprep.subr.bf16.mxu0 0
    %1580 = vmatpush2.bf16.msra.mxu0 0
    %1581 = vmatprep.subr.bf16.mxu0 0
    %1582 = vmatpush2.bf16.msra.mxu0 0
    %1583 = vmatprep.subr.bf16.mxu0 0
    %1584 = vmatpush2.bf16.msra.mxu0 0
    %1585 = vmatprep.subr.bf16.mxu0 0
    %1586 = vmatpush2.bf16.msra.mxu0 0
    %1587 = vmatprep.subr.bf16.mxu0 0
    %1588 = vmatpush2.bf16.msra.mxu0 0
    %1589 = vmatprep.subr.bf16.mxu0 0
    %1590 = vmatpush2.bf16.msra.mxu0 0
    %1591 = vmatprep.mubr.bf16.mxu0 0
    %1592 = vmatmul.mubr.bf16.gmra.mxu0 %v1554
    %v1593 = vpop.f32.mrf.mxu0
    %v1594 = vadd.f32 0.0, %v1593
    %v1595 = vpop.f32.mrf.mxu0
    %v1596 = vpop.f32.mrf.mxu0
    %v1597 = vadd.f32 0.0, %v1596
    %v1598 = vpop.f32.mrf.mxu0
    %1599 = vdwg.mxu0
    %v1600 = vmul.f32 %v1594, %v1433
    %v1601 = vmul.f32 %v1597, %v1434
    %v1602 = vpack.c.bf16 %v1428, %v1427
    %1603 = vrot.lane.b32.xlu0 %v1438, 104
    %v1604 = vpop.permute.xlu0 %1603
    %1605 = vrot.lane.b32.xlu0 %v1439, 104
    %v1606 = vpop.permute.xlu0 %1605
    %v1609 = vsel %vm251, %v1602, 0
    %v1612 = vsel %vm1443, %v1606, 0
    %1614 = vmatprep.subr.bf16.mxu0 0
    %1615 = vmatpush1.bf16.msra.mxu0 0
    %1616 = vmatprep.subr.bf16.mxu0 0
    %1617 = vmatpush1.bf16.msra.mxu0 0
    %1618 = vmatprep.subr.bf16.mxu0 0
    %1619 = vmatpush1.bf16.msra.mxu0 0
    %1620 = vmatprep.subr.bf16.mxu0 0
    %1621 = vmatpush1.bf16.msra.mxu0 0
    %1622 = vmatprep.subr.bf16.mxu0 0
    %1623 = vmatpush1.bf16.msra.mxu0 0
    %1624 = vmatprep.subr.bf16.mxu0 0
    %1625 = vmatpush1.bf16.msra.mxu0 0
    %1626 = vmatprep.subr.bf16.mxu0 0
    %1627 = vmatpush1.bf16.msra.mxu0 %v1612
    %1628 = vmatprep.subr.bf16.mxu0 0
    %1629 = vmatpush1.bf16.msra.mxu0 %v1604
    %1630 = vmatprep.subr.bf16.mxu0 0
    %1631 = vmatpush2.bf16.msra.mxu0 0
    %1632 = vmatprep.subr.bf16.mxu0 0
    %1633 = vmatpush2.bf16.msra.mxu0 0
    %1634 = vmatprep.subr.bf16.mxu0 0
    %1635 = vmatpush2.bf16.msra.mxu0 0
    %1636 = vmatprep.subr.bf16.mxu0 0
    %1637 = vmatpush2.bf16.msra.mxu0 0
    %1638 = vmatprep.subr.bf16.mxu0 0
    %1639 = vmatpush2.bf16.msra.mxu0 0
    %1640 = vmatprep.subr.bf16.mxu0 0
    %1641 = vmatpush2.bf16.msra.mxu0 0
    %1642 = vmatprep.subr.bf16.mxu0 0
    %1643 = vmatpush2.bf16.msra.mxu0 0
    %1644 = vmatprep.subr.bf16.mxu0 0
    %1645 = vmatpush2.bf16.msra.mxu0 0
    %1646 = vmatprep.mubr.bf16.mxu0 0
    %1647 = vmatmul.mubr.bf16.gmra.mxu0 %v1609
    %v1648 = vpop.f32.mrf.mxu0
    %v1649 = vadd.f32 0.0, %v1648
    %v1650 = vpop.f32.mrf.mxu0
    %v1651 = vpop.f32.mrf.mxu0
    %v1652 = vadd.f32 0.0, %v1651
    %v1653 = vpop.f32.mrf.mxu0
    %1654 = vdwg.mxu0
    %v1655 = vmul.f32 %v1649, %v1435
    %v1656 = vmul.f32 %v1652, %v1436
    %1659 = vrot.lane.b32.xlu0 %v1545, 8
    %v1660 = vpop.permute.xlu0 %1659
    %1661 = vrot.lane.b32.xlu0 %v1546, 8
    %v1662 = vpop.permute.xlu0 %1661
    %1667 = vrot.lane.b32.xlu0 %v1600, 16
    %v1668 = vpop.permute.xlu0 %1667
    %1669 = vrot.lane.b32.xlu0 %v1601, 16
    %v1670 = vpop.permute.xlu0 %1669
    %1675 = vrot.lane.b32.xlu0 %v1655, 24
    %v1676 = vpop.permute.xlu0 %1675
    %1677 = vrot.lane.b32.xlu0 %v1656, 24
    %v1678 = vpop.permute.xlu0 %1677
    %v1681 = vsel %vm1124, %v1488, %v1660
    %v1682 = vsel %vm1124, %v1489, %v1662
    %v1683 = vsel %vm226, %v1681, %v1668
    %v1684 = vsel %vm226, %v1682, %v1670
    %v1685 = vsel %vm251, %v1683, %v1676
    %v1686 = vsel %vm251, %v1684, %v1678
    %v1687 = vmax.f32 %v1685, 0.0
    %v1688 = vmax.f32 %v1686, 0.0
    %1689 = vrot.lane.b32.xlu0 %v441, 88
    %v1690 = vpop.permute.xlu0 %1689
    %1691 = vrot.lane.b32.xlu0 %v444, 88
    %v1692 = vpop.permute.xlu0 %1691
    %1693 = vrot.lane.b32.xlu0 %v449, 88
    %v1694 = vpop.permute.xlu0 %1693
    %1698 = vxpose.xlu0.b32.start [1/16] %v1690, 128
    %1699 = vxpose.xlu0.b32.cont [2/16] %v1692, 128
    %1700 = vxpose.xlu0.b32.cont [3/16] %v1694, 128
    %1701 = vxpose.xlu0.b32.cont [4/16] 0.0, 128
    %1702 = vxpose.xlu0.b32.cont [5/16] 0.0, 128
    %1703 = vxpose.xlu0.b32.cont [6/16] 0.0, 128
    %1704 = vxpose.xlu0.b32.cont [7/16] 0.0, 128
    %1705 = vxpose.xlu0.b32.cont [8/16] 0.0, 128
    %1706 = vxpose.xlu0.b32.cont [9/16] 0.0, 128
    %1707 = vxpose.xlu0.b32.cont [10/16] 0.0, 128
    %1708 = vxpose.xlu0.b32.cont [11/16] 0.0, 128
    %1709 = vxpose.xlu0.b32.cont [12/16] 0.0, 128
    %1710 = vxpose.xlu0.b32.cont [13/16] 0.0, 128
    %1711 = vxpose.xlu0.b32.cont [14/16] 0.0, 128
    %1712 = vxpose.xlu0.b32.cont [15/16] 0.0, 128
    %1713 = vxpose.xlu0.b32.end [16/16] 0.0, 128
    %v1714 = vpop.trf.xlu0
    %v1715 = vpop.trf.xlu0
    %v1716 = vpop.trf.xlu0
    %v1717 = vpop.trf.xlu0
    %v1718 = vpop.trf.xlu0
    %v1719 = vpop.trf.xlu0
    %v1720 = vpop.trf.xlu0
    %v1721 = vpop.trf.xlu0
    %v1722 = vpop.trf.xlu0
    %v1723 = vpop.trf.xlu0
    %v1724 = vpop.trf.xlu0
    %v1725 = vpop.trf.xlu0
    %v1726 = vpop.trf.xlu0
    %v1727 = vpop.trf.xlu0
    %v1728 = vpop.trf.xlu0
    %v1729 = vpop.trf.xlu0
    %1730 = vrot.lane.b32.xlu0 %v441, 76
    %v1731 = vpop.permute.xlu0 %1730
    %1732 = vrot.lane.b32.xlu0 %v444, 76
    %v1733 = vpop.permute.xlu0 %1732
    %1734 = vrot.lane.b32.xlu0 %v449, 76
    %v1735 = vpop.permute.xlu0 %1734
    %1739 = vxpose.xlu0.b32.start [1/16] %v1731, 128
    %1740 = vxpose.xlu0.b32.cont [2/16] %v1733, 128
    %1741 = vxpose.xlu0.b32.cont [3/16] %v1735, 128
    %1742 = vxpose.xlu0.b32.cont [4/16] 0.0, 128
    %1743 = vxpose.xlu0.b32.cont [5/16] 0.0, 128
    %1744 = vxpose.xlu0.b32.cont [6/16] 0.0, 128
    %1745 = vxpose.xlu0.b32.cont [7/16] 0.0, 128
    %1746 = vxpose.xlu0.b32.cont [8/16] 0.0, 128
    %1747 = vxpose.xlu0.b32.cont [9/16] 0.0, 128
    %1748 = vxpose.xlu0.b32.cont [10/16] 0.0, 128
    %1749 = vxpose.xlu0.b32.cont [11/16] 0.0, 128
    %1750 = vxpose.xlu0.b32.cont [12/16] 0.0, 128
    %1751 = vxpose.xlu0.b32.cont [13/16] 0.0, 128
    %1752 = vxpose.xlu0.b32.cont [14/16] 0.0, 128
    %1753 = vxpose.xlu0.b32.cont [15/16] 0.0, 128
    %1754 = vxpose.xlu0.b32.end [16/16] 0.0, 128
    %v1755 = vpop.trf.xlu0
    %v1756 = vpop.trf.xlu0
    %v1757 = vpop.trf.xlu0
    %v1758 = vpop.trf.xlu0
    %v1759 = vpop.trf.xlu0
    %v1760 = vpop.trf.xlu0
    %v1761 = vpop.trf.xlu0
    %v1762 = vpop.trf.xlu0
    %v1763 = vpop.trf.xlu0
    %v1764 = vpop.trf.xlu0
    %v1765 = vpop.trf.xlu0
    %v1766 = vpop.trf.xlu0
    %v1767 = vpop.trf.xlu0
    %v1768 = vpop.trf.xlu0
    %v1769 = vpop.trf.xlu0
    %v1770 = vpop.trf.xlu0
    %v1771 = vlaneseq
    %v1772 = vshrl.u32 %v1771, 7
    %v1773 = vsub.s32 0, %v1772
    %v1774 = vrot.slane %v1755, %v1773
    %1776 = vbcast.lane.b32.xlu0 %v1774, 256
    %v1777 = vpop.permute.xlu0 %1776
    %s1779 = sor.u32 256, 8
    %1780 = vbcast.lane.b32.xlu0 %v1774, %s1779
    %v1781 = vpop.permute.xlu0 %1780
    %s1783 = sor.u32 256, 16
    %1784 = vbcast.lane.b32.xlu0 %v1774, %s1783
    %v1785 = vpop.permute.xlu0 %1784
    %v1786 = vlaneseq
    %v1787 = vshrl.u32 %v1786, 7
    %v1788 = vsub.s32 1, %v1787
    %v1789 = vrot.slane %v1755, %v1788
    %1791 = vbcast.lane.b32.xlu0 %v1789, 256
    %v1792 = vpop.permute.xlu0 %1791
    %s1794 = sor.u32 256, 8
    %1795 = vbcast.lane.b32.xlu0 %v1789, %s1794
    %v1796 = vpop.permute.xlu0 %1795
    %s1798 = sor.u32 256, 16
    %1799 = vbcast.lane.b32.xlu0 %v1789, %s1798
    %v1800 = vpop.permute.xlu0 %1799
    %v1801 = vlaneseq
    %v1802 = vshrl.u32 %v1801, 7
    %v1803 = vsub.s32 2, %v1802
    %v1804 = vrot.slane %v1755, %v1803
    %1806 = vbcast.lane.b32.xlu0 %v1804, 256
    %v1807 = vpop.permute.xlu0 %1806
    %s1809 = sor.u32 256, 8
    %1810 = vbcast.lane.b32.xlu0 %v1804, %s1809
    %v1811 = vpop.permute.xlu0 %1810
    %s1813 = sor.u32 256, 16
    %1814 = vbcast.lane.b32.xlu0 %v1804, %s1813
    %v1815 = vpop.permute.xlu0 %1814
    %v1816 = vlaneseq
    %v1817 = vshrl.u32 %v1816, 7
    %v1818 = vsub.s32 3, %v1817
    %v1819 = vrot.slane %v1755, %v1818
    %1821 = vbcast.lane.b32.xlu0 %v1819, 256
    %v1822 = vpop.permute.xlu0 %1821
    %s1824 = sor.u32 256, 8
    %1825 = vbcast.lane.b32.xlu0 %v1819, %s1824
    %v1826 = vpop.permute.xlu0 %1825
    %s1828 = sor.u32 256, 16
    %1829 = vbcast.lane.b32.xlu0 %v1819, %s1828
    %v1830 = vpop.permute.xlu0 %1829
    %v1833 = vunpack.c.l.s4 1966171168
    %v1834 = vunpack.c.0.s8 %v1833
    %v1835 = vlaneseq
    %v1836 = vshrl.u32 %v1835, 7
    %v1837 = vsub.s32 %v1834, %v1836
    %v1838 = vrot.slane %v1714, %v1837
    %v1839 = vcombine.high %v1838, %v1838
    %v1841 = vunpack.c.l.s4 1966171168
    %v1842 = vunpack.c.0.s8 %v1841
    %v1843 = vlaneseq
    %v1844 = vshrl.u32 %v1843, 7
    %v1845 = vsub.s32 %v1842, %v1844
    %v1846 = vrot.slane %v1838, %v1845
    %v1848 = vunpack.c.l.s4 1966171168
    %v1849 = vunpack.c.0.s8 %v1848
    %v1850 = vlaneseq
    %v1851 = vshrl.u32 %v1850, 7
    %v1852 = vsub.s32 %v1849, %v1851
    %v1853 = vrot.slane %v1839, %v1852
    %v1854 = vcombine.high %v1846, %v1846
    %v1855 = vcombine.high %v1853, %v1853
    %v1856 = vlaneseq
    %v1857 = vshrl.u32 %v1856, 7
    %v1858 = vsub.s32 0, %v1857
    %v1859 = vrot.slane %v1846, %v1858
    %v1860 = vlaneseq
    %v1861 = vshrl.u32 %v1860, 7
    %v1862 = vsub.s32 0, %v1861
    %v1863 = vrot.slane %v1853, %v1862
    %v1864 = vlaneseq
    %v1865 = vshrl.u32 %v1864, 7
    %v1866 = vsub.s32 0, %v1865
    %v1867 = vrot.slane %v1854, %v1866
    %v1868 = vlaneseq
    %v1869 = vshrl.u32 %v1868, 7
    %v1870 = vsub.s32 0, %v1869
    %v1871 = vrot.slane %v1855, %v1870
    %v1876 = vadd.f32 %v1777, %v1859
    %v1877 = vadd.f32 %v1781, %v1859
    %v1878 = vadd.f32 %v1785, %v1859
    %v1879 = vadd.f32 %v1792, %v1863
    %v1880 = vadd.f32 %v1796, %v1863
    %v1881 = vadd.f32 %v1800, %v1863
    %v1882 = vadd.f32 %v1807, %v1867
    %v1883 = vadd.f32 %v1811, %v1867
    %v1884 = vadd.f32 %v1815, %v1867
    %v1885 = vadd.f32 %v1822, %v1871
    %v1886 = vadd.f32 %v1826, %v1871
    %v1887 = vadd.f32 %v1830, %v1871
    %vm1888 = vcmp.ge.f32.partialorder %v1876, 0.0
    %vm1889 = vcmp.ge.f32.partialorder %v1877, 0.0
    %vm1890 = vcmp.ge.f32.partialorder %v1878, 0.0
    %vm1891 = vcmp.ge.f32.partialorder %v1879, 0.0
    %vm1892 = vcmp.ge.f32.partialorder %v1880, 0.0
    %vm1893 = vcmp.ge.f32.partialorder %v1881, 0.0
    %vm1894 = vcmp.ge.f32.partialorder %v1882, 0.0
    %vm1895 = vcmp.ge.f32.partialorder %v1883, 0.0
    %vm1896 = vcmp.ge.f32.partialorder %v1884, 0.0
    %vm1897 = vcmp.ge.f32.partialorder %v1885, 0.0
    %vm1898 = vcmp.ge.f32.partialorder %v1886, 0.0
    %vm1899 = vcmp.ge.f32.partialorder %v1887, 0.0
    %v1900 = vmul.f32 %v1876, 0.2
    %v1901 = vmul.f32 %v1877, 0.2
    %v1902 = vmul.f32 %v1878, 0.2
    %v1903 = vmul.f32 %v1879, 0.2
    %v1904 = vmul.f32 %v1880, 0.2
    %v1905 = vmul.f32 %v1881, 0.2
    %v1906 = vmul.f32 %v1882, 0.2
    %v1907 = vmul.f32 %v1883, 0.2
    %v1908 = vmul.f32 %v1884, 0.2
    %v1909 = vmul.f32 %v1885, 0.2
    %v1910 = vmul.f32 %v1886, 0.2
    %v1911 = vmul.f32 %v1887, 0.2
    %v1912 = vsel %vm1888, %v1876, %v1900
    %v1913 = vsel %vm1889, %v1877, %v1901
    %v1914 = vsel %vm1890, %v1878, %v1902
    %v1915 = vsel %vm1891, %v1879, %v1903
    %v1916 = vsel %vm1892, %v1880, %v1904
    %v1917 = vsel %vm1893, %v1881, %v1905
    %v1918 = vsel %vm1894, %v1882, %v1906
    %v1919 = vsel %vm1895, %v1883, %v1907
    %v1920 = vsel %vm1896, %v1884, %v1908
    %v1921 = vsel %vm1897, %v1885, %v1909
    %v1922 = vsel %vm1898, %v1886, %v1910
    %v1923 = vsel %vm1899, %v1887, %v1911
    %v1924 = vsel %vm270, 1, 0
    %v1925 = vsel %vm271, 1, 0
    %v1926 = vsel %vm272, 1, 0
    %vm1927 = vcmp.eq.s32.totalorder %v1924, 1
    %vm1928 = vcmp.eq.s32.totalorder %v1925, 1
    %vm1929 = vcmp.eq.s32.totalorder %v1926, 1
    %v1930 = vsel %vm1927, %v1912, -1e+30
    %v1931 = vsel %vm1928, %v1913, -1e+30
    %v1932 = vsel %vm1929, %v1914, -1e+30
    %v1933 = vsel %vm1927, %v1915, -1e+30
    %v1934 = vsel %vm1928, %v1916, -1e+30
    %v1935 = vsel %vm1929, %v1917, -1e+30
    %v1936 = vsel %vm1927, %v1918, -1e+30
    %v1937 = vsel %vm1928, %v1919, -1e+30
    %v1938 = vsel %vm1929, %v1920, -1e+30
    %v1939 = vsel %vm1927, %v1921, -1e+30
    %v1940 = vsel %vm1928, %v1922, -1e+30
    %v1941 = vsel %vm1929, %v1923, -1e+30
    %v1942 = vsel %vm251, %v1930, -inf
    %1943 = vmax.xlane.f32.xlu0 %v1942
    %v1944 = vpop.xlane.xlu0 %1943
    %v1945 = vsel %vm251, %v1931, -inf
    %1946 = vmax.xlane.f32.xlu0 %v1945
    %v1947 = vpop.xlane.xlu0 %1946
    %v1948 = vsel %vm251, %v1932, -inf
    %1949 = vmax.xlane.f32.xlu0 %v1948
    %v1950 = vpop.xlane.xlu0 %1949
    %v1951 = vsel %vm251, %v1933, -inf
    %1952 = vmax.xlane.f32.xlu0 %v1951
    %v1953 = vpop.xlane.xlu0 %1952
    %v1954 = vsel %vm251, %v1934, -inf
    %1955 = vmax.xlane.f32.xlu0 %v1954
    %v1956 = vpop.xlane.xlu0 %1955
    %v1957 = vsel %vm251, %v1935, -inf
    %1958 = vmax.xlane.f32.xlu0 %v1957
    %v1959 = vpop.xlane.xlu0 %1958
    %v1960 = vsel %vm251, %v1936, -inf
    %1961 = vmax.xlane.f32.xlu0 %v1960
    %v1962 = vpop.xlane.xlu0 %1961
    %v1963 = vsel %vm251, %v1937, -inf
    %1964 = vmax.xlane.f32.xlu0 %v1963
    %v1965 = vpop.xlane.xlu0 %1964
    %v1966 = vsel %vm251, %v1938, -inf
    %1967 = vmax.xlane.f32.xlu0 %v1966
    %v1968 = vpop.xlane.xlu0 %1967
    %v1969 = vsel %vm251, %v1939, -inf
    %1970 = vmax.xlane.f32.xlu0 %v1969
    %v1971 = vpop.xlane.xlu0 %1970
    %v1972 = vsel %vm251, %v1940, -inf
    %1973 = vmax.xlane.f32.xlu0 %v1972
    %v1974 = vpop.xlane.xlu0 %1973
    %v1975 = vsel %vm251, %v1941, -inf
    %1976 = vmax.xlane.f32.xlu0 %v1975
    %v1977 = vpop.xlane.xlu0 %1976
    %v1978 = vsub.f32 %v1930, %v1944
    %v1979 = vsub.f32 %v1931, %v1947
    %v1980 = vsub.f32 %v1932, %v1950
    %v1981 = vsub.f32 %v1933, %v1953
    %v1982 = vsub.f32 %v1934, %v1956
    %v1983 = vsub.f32 %v1935, %v1959
    %v1984 = vsub.f32 %v1936, %v1962
    %v1985 = vsub.f32 %v1937, %v1965
    %v1986 = vsub.f32 %v1938, %v1968
    %v1987 = vsub.f32 %v1939, %v1971
    %v1988 = vsub.f32 %v1940, %v1974
    %v1989 = vsub.f32 %v1941, %v1977
    %v1990 = vmul.f32 %v1978, 1.442695
    %v1991 = vpow.pop %v1990
    %v1992 = vmul.f32 %v1979, 1.442695
    %v1993 = vpow.pop %v1992
    %v1994 = vmul.f32 %v1980, 1.442695
    %v1995 = vpow.pop %v1994
    %v1996 = vmul.f32 %v1981, 1.442695
    %v1997 = vpow.pop %v1996
    %v1998 = vmul.f32 %v1982, 1.442695
    %v1999 = vpow.pop %v1998
    %v2000 = vmul.f32 %v1983, 1.442695
    %v2001 = vpow.pop %v2000
    %v2002 = vmul.f32 %v1984, 1.442695
    %v2003 = vpow.pop %v2002
    %v2004 = vmul.f32 %v1985, 1.442695
    %v2005 = vpow.pop %v2004
    %v2006 = vmul.f32 %v1986, 1.442695
    %v2007 = vpow.pop %v2006
    %v2008 = vmul.f32 %v1987, 1.442695
    %v2009 = vpow.pop %v2008
    %v2010 = vmul.f32 %v1988, 1.442695
    %v2011 = vpow.pop %v2010
    %v2012 = vmul.f32 %v1989, 1.442695
    %v2013 = vpow.pop %v2012
    %v2014 = vsel %vm251, %v1991, 0.0
    %2015 = vadd.xlane.f32.xlu0 %v2014
    %v2016 = vpop.xlane.xlu0 %2015
    %v2017 = vsel %vm251, %v1993, 0.0
    %2018 = vadd.xlane.f32.xlu0 %v2017
    %v2019 = vpop.xlane.xlu0 %2018
    %v2020 = vsel %vm251, %v1995, 0.0
    %2021 = vadd.xlane.f32.xlu0 %v2020
    %v2022 = vpop.xlane.xlu0 %2021
    %v2023 = vsel %vm251, %v1997, 0.0
    %2024 = vadd.xlane.f32.xlu0 %v2023
    %v2025 = vpop.xlane.xlu0 %2024
    %v2026 = vsel %vm251, %v1999, 0.0
    %2027 = vadd.xlane.f32.xlu0 %v2026
    %v2028 = vpop.xlane.xlu0 %2027
    %v2029 = vsel %vm251, %v2001, 0.0
    %2030 = vadd.xlane.f32.xlu0 %v2029
    %v2031 = vpop.xlane.xlu0 %2030
    %v2032 = vsel %vm251, %v2003, 0.0
    %2033 = vadd.xlane.f32.xlu0 %v2032
    %v2034 = vpop.xlane.xlu0 %2033
    %v2035 = vsel %vm251, %v2005, 0.0
    %2036 = vadd.xlane.f32.xlu0 %v2035
    %v2037 = vpop.xlane.xlu0 %2036
    %v2038 = vsel %vm251, %v2007, 0.0
    %2039 = vadd.xlane.f32.xlu0 %v2038
    %v2040 = vpop.xlane.xlu0 %2039
    %v2041 = vsel %vm251, %v2009, 0.0
    %2042 = vadd.xlane.f32.xlu0 %v2041
    %v2043 = vpop.xlane.xlu0 %2042
    %v2044 = vsel %vm251, %v2011, 0.0
    %2045 = vadd.xlane.f32.xlu0 %v2044
    %v2046 = vpop.xlane.xlu0 %2045
    %v2047 = vsel %vm251, %v2013, 0.0
    %2048 = vadd.xlane.f32.xlu0 %v2047
    %v2049 = vpop.xlane.xlu0 %2048
    %v2050 = vmul.f32 %v1991, %v288
    %v2051 = vmul.f32 %v1993, %v289
    %v2052 = vmul.f32 %v1995, %v290
    %v2053 = vmul.f32 %v1997, %v288
    %v2054 = vmul.f32 %v1999, %v289
    %v2055 = vmul.f32 %v2001, %v290
    %v2056 = vmul.f32 %v2003, %v288
    %v2057 = vmul.f32 %v2005, %v289
    %v2058 = vmul.f32 %v2007, %v290
    %v2059 = vmul.f32 %v2009, %v288
    %v2060 = vmul.f32 %v2011, %v289
    %v2061 = vmul.f32 %v2013, %v290
    %v2062 = vrcp.pop %v2016
    %v2063 = vrcp.pop %v2019
    %v2064 = vrcp.pop %v2022
    %v2065 = vrcp.pop %v2025
    %v2066 = vrcp.pop %v2028
    %v2067 = vrcp.pop %v2031
    %v2068 = vrcp.pop %v2034
    %v2069 = vrcp.pop %v2037
    %v2070 = vrcp.pop %v2040
    %v2071 = vrcp.pop %v2043
    %v2072 = vrcp.pop %v2046
    %v2073 = vrcp.pop %v2049
    %v2074 = vpack.c.bf16 %v2051, %v2050
    %v2075 = vpack.c.bf16 %v2052, %v2052
    %v2077 = vsel %vm251, %v2074, 0
    %v2080 = vsel %vm251, %v2075, 0
    %2082 = vmatprep.subr.bf16.mxu0 0
    %2083 = vmatpush1.bf16.msra.mxu0 0
    %2084 = vmatprep.subr.bf16.mxu0 0
    %2085 = vmatpush1.bf16.msra.mxu0 0
    %2086 = vmatprep.subr.bf16.mxu0 0
    %2087 = vmatpush1.bf16.msra.mxu0 0
    %2088 = vmatprep.subr.bf16.mxu0 0
    %2089 = vmatpush1.bf16.msra.mxu0 0
    %2090 = vmatprep.subr.bf16.mxu0 0
    %2091 = vmatpush1.bf16.msra.mxu0 0
    %2092 = vmatprep.subr.bf16.mxu0 0
    %2093 = vmatpush1.bf16.msra.mxu0 0
    %2094 = vmatprep.subr.bf16.mxu0 0
    %2095 = vmatpush1.bf16.msra.mxu0 %v1445
    %2096 = vmatprep.subr.bf16.mxu0 0
    %2097 = vmatpush1.bf16.msra.mxu0 %v1438
    %2098 = vmatprep.subr.bf16.mxu0 0
    %2099 = vmatpush2.bf16.msra.mxu0 0
    %2100 = vmatprep.subr.bf16.mxu0 0
    %2101 = vmatpush2.bf16.msra.mxu0 0
    %2102 = vmatprep.subr.bf16.mxu0 0
    %2103 = vmatpush2.bf16.msra.mxu0 0
    %2104 = vmatprep.subr.bf16.mxu0 0
    %2105 = vmatpush2.bf16.msra.mxu0 0
    %2106 = vmatprep.subr.bf16.mxu0 0
    %2107 = vmatpush2.bf16.msra.mxu0 0
    %2108 = vmatprep.subr.bf16.mxu0 0
    %2109 = vmatpush2.bf16.msra.mxu0 0
    %2110 = vmatprep.subr.bf16.mxu0 0
    %2111 = vmatpush2.bf16.msra.mxu0 0
    %2112 = vmatprep.subr.bf16.mxu0 0
    %2113 = vmatpush2.bf16.msra.mxu0 0
    %2114 = vmatprep.mubr.bf16.mxu0 0
    %2115 = vmatmul.mubr.bf16.gmra.mxu0 %v2077
    %v2116 = vpop.f32.mrf.mxu0
    %v2117 = vadd.f32 0.0, %v2116
    %v2118 = vpop.f32.mrf.mxu0
    %v2119 = vpop.f32.mrf.mxu0
    %v2120 = vadd.f32 0.0, %v2119
    %v2121 = vpop.f32.mrf.mxu0
    %2122 = vmatprep.mubr.bf16.mxu0 0
    %2123 = vmatmul.mubr.bf16.gmra.mxu0 %v2080
    %v2124 = vpop.f32.mrf.mxu0
    %v2125 = vadd.f32 0.0, %v2124
    %v2126 = vpop.f32.mrf.mxu0
    %v2127 = vpop.f32.mrf.mxu0
    %v2128 = vpop.f32.mrf.mxu0
    %2129 = vdwg.mxu0
    %v2130 = vmul.f32 %v2117, %v2062
    %v2131 = vmul.f32 %v2120, %v2063
    %v2132 = vmul.f32 %v2125, %v2064
    %v2133 = vpack.c.bf16 %v2054, %v2053
    %v2134 = vpack.c.bf16 %v2055, %v2055
    %v2136 = vsel %vm251, %v2133, 0
    %v2139 = vsel %vm251, %v2134, 0
    %2141 = vmatprep.subr.bf16.mxu0 0
    %2142 = vmatpush1.bf16.msra.mxu0 0
    %2143 = vmatprep.subr.bf16.mxu0 0
    %2144 = vmatpush1.bf16.msra.mxu0 0
    %2145 = vmatprep.subr.bf16.mxu0 0
    %2146 = vmatpush1.bf16.msra.mxu0 0
    %2147 = vmatprep.subr.bf16.mxu0 0
    %2148 = vmatpush1.bf16.msra.mxu0 0
    %2149 = vmatprep.subr.bf16.mxu0 0
    %2150 = vmatpush1.bf16.msra.mxu0 0
    %2151 = vmatprep.subr.bf16.mxu0 0
    %2152 = vmatpush1.bf16.msra.mxu0 0
    %2153 = vmatprep.subr.bf16.mxu0 0
    %2154 = vmatpush1.bf16.msra.mxu0 %v1502
    %2155 = vmatprep.subr.bf16.mxu0 0
    %2156 = vmatpush1.bf16.msra.mxu0 %v1494
    %2157 = vmatprep.subr.bf16.mxu0 0
    %2158 = vmatpush2.bf16.msra.mxu0 0
    %2159 = vmatprep.subr.bf16.mxu0 0
    %2160 = vmatpush2.bf16.msra.mxu0 0
    %2161 = vmatprep.subr.bf16.mxu0 0
    %2162 = vmatpush2.bf16.msra.mxu0 0
    %2163 = vmatprep.subr.bf16.mxu0 0
    %2164 = vmatpush2.bf16.msra.mxu0 0
    %2165 = vmatprep.subr.bf16.mxu0 0
    %2166 = vmatpush2.bf16.msra.mxu0 0
    %2167 = vmatprep.subr.bf16.mxu0 0
    %2168 = vmatpush2.bf16.msra.mxu0 0
    %2169 = vmatprep.subr.bf16.mxu0 0
    %2170 = vmatpush2.bf16.msra.mxu0 0
    %2171 = vmatprep.subr.bf16.mxu0 0
    %2172 = vmatpush2.bf16.msra.mxu0 0
    %2173 = vmatprep.mubr.bf16.mxu0 0
    %2174 = vmatmul.mubr.bf16.gmra.mxu0 %v2136
    %v2175 = vpop.f32.mrf.mxu0
    %v2176 = vadd.f32 0.0, %v2175
    %v2177 = vpop.f32.mrf.mxu0
    %v2178 = vpop.f32.mrf.mxu0
    %v2179 = vadd.f32 0.0, %v2178
    %v2180 = vpop.f32.mrf.mxu0
    %2181 = vmatprep.mubr.bf16.mxu0 0
    %2182 = vmatmul.mubr.bf16.gmra.mxu0 %v2139
    %v2183 = vpop.f32.mrf.mxu0
    %v2184 = vadd.f32 0.0, %v2183
    %v2185 = vpop.f32.mrf.mxu0
    %v2186 = vpop.f32.mrf.mxu0
    %v2187 = vpop.f32.mrf.mxu0
    %2188 = vdwg.mxu0
    %v2189 = vmul.f32 %v2176, %v2065
    %v2190 = vmul.f32 %v2179, %v2066
    %v2191 = vmul.f32 %v2184, %v2067
    %v2192 = vpack.c.bf16 %v2057, %v2056
    %v2193 = vpack.c.bf16 %v2058, %v2058
    %v2195 = vsel %vm251, %v2192, 0
    %v2198 = vsel %vm251, %v2193, 0
    %2200 = vmatprep.subr.bf16.mxu0 0
    %2201 = vmatpush1.bf16.msra.mxu0 0
    %2202 = vmatprep.subr.bf16.mxu0 0
    %2203 = vmatpush1.bf16.msra.mxu0 0
    %2204 = vmatprep.subr.bf16.mxu0 0
    %2205 = vmatpush1.bf16.msra.mxu0 0
    %2206 = vmatprep.subr.bf16.mxu0 0
    %2207 = vmatpush1.bf16.msra.mxu0 0
    %2208 = vmatprep.subr.bf16.mxu0 0
    %2209 = vmatpush1.bf16.msra.mxu0 0
    %2210 = vmatprep.subr.bf16.mxu0 0
    %2211 = vmatpush1.bf16.msra.mxu0 0
    %2212 = vmatprep.subr.bf16.mxu0 0
    %2213 = vmatpush1.bf16.msra.mxu0 %v1557
    %2214 = vmatprep.subr.bf16.mxu0 0
    %2215 = vmatpush1.bf16.msra.mxu0 %v1549
    %2216 = vmatprep.subr.bf16.mxu0 0
    %2217 = vmatpush2.bf16.msra.mxu0 0
    %2218 = vmatprep.subr.bf16.mxu0 0
    %2219 = vmatpush2.bf16.msra.mxu0 0
    %2220 = vmatprep.subr.bf16.mxu0 0
    %2221 = vmatpush2.bf16.msra.mxu0 0
    %2222 = vmatprep.subr.bf16.mxu0 0
    %2223 = vmatpush2.bf16.msra.mxu0 0
    %2224 = vmatprep.subr.bf16.mxu0 0
    %2225 = vmatpush2.bf16.msra.mxu0 0
    %2226 = vmatprep.subr.bf16.mxu0 0
    %2227 = vmatpush2.bf16.msra.mxu0 0
    %2228 = vmatprep.subr.bf16.mxu0 0
    %2229 = vmatpush2.bf16.msra.mxu0 0
    %2230 = vmatprep.subr.bf16.mxu0 0
    %2231 = vmatpush2.bf16.msra.mxu0 0
    %2232 = vmatprep.mubr.bf16.mxu0 0
    %2233 = vmatmul.mubr.bf16.gmra.mxu0 %v2195
    %v2234 = vpop.f32.mrf.mxu0
    %v2235 = vadd.f32 0.0, %v2234
    %v2236 = vpop.f32.mrf.mxu0
    %v2237 = vpop.f32.mrf.mxu0
    %v2238 = vadd.f32 0.0, %v2237
    %v2239 = vpop.f32.mrf.mxu0
    %2240 = vmatprep.mubr.bf16.mxu0 0
    %2241 = vmatmul.mubr.bf16.gmra.mxu0 %v2198
    %v2242 = vpop.f32.mrf.mxu0
    %v2243 = vadd.f32 0.0, %v2242
    %v2244 = vpop.f32.mrf.mxu0
    %v2245 = vpop.f32.mrf.mxu0
    %v2246 = vpop.f32.mrf.mxu0
    %2247 = vdwg.mxu0
    %v2248 = vmul.f32 %v2235, %v2068
    %v2249 = vmul.f32 %v2238, %v2069
    %v2250 = vmul.f32 %v2243, %v2070
    %v2251 = vpack.c.bf16 %v2060, %v2059
    %v2252 = vpack.c.bf16 %v2061, %v2061
    %v2254 = vsel %vm251, %v2251, 0
    %v2257 = vsel %vm251, %v2252, 0
    %2259 = vmatprep.subr.bf16.mxu0 0
    %2260 = vmatpush1.bf16.msra.mxu0 0
    %2261 = vmatprep.subr.bf16.mxu0 0
    %2262 = vmatpush1.bf16.msra.mxu0 0
    %2263 = vmatprep.subr.bf16.mxu0 0
    %2264 = vmatpush1.bf16.msra.mxu0 0
    %2265 = vmatprep.subr.bf16.mxu0 0
    %2266 = vmatpush1.bf16.msra.mxu0 0
    %2267 = vmatprep.subr.bf16.mxu0 0
    %2268 = vmatpush1.bf16.msra.mxu0 0
    %2269 = vmatprep.subr.bf16.mxu0 0
    %2270 = vmatpush1.bf16.msra.mxu0 0
    %2271 = vmatprep.subr.bf16.mxu0 0
    %2272 = vmatpush1.bf16.msra.mxu0 %v1612
    %2273 = vmatprep.subr.bf16.mxu0 0
    %2274 = vmatpush1.bf16.msra.mxu0 %v1604
    %2275 = vmatprep.subr.bf16.mxu0 0
    %2276 = vmatpush2.bf16.msra.mxu0 0
    %2277 = vmatprep.subr.bf16.mxu0 0
    %2278 = vmatpush2.bf16.msra.mxu0 0
    %2279 = vmatprep.subr.bf16.mxu0 0
    %2280 = vmatpush2.bf16.msra.mxu0 0
    %2281 = vmatprep.subr.bf16.mxu0 0
    %2282 = vmatpush2.bf16.msra.mxu0 0
    %2283 = vmatprep.subr.bf16.mxu0 0
    %2284 = vmatpush2.bf16.msra.mxu0 0
    %2285 = vmatprep.subr.bf16.mxu0 0
    %2286 = vmatpush2.bf16.msra.mxu0 0
    %2287 = vmatprep.subr.bf16.mxu0 0
    %2288 = vmatpush2.bf16.msra.mxu0 0
    %2289 = vmatprep.subr.bf16.mxu0 0
    %2290 = vmatpush2.bf16.msra.mxu0 0
    %2291 = vmatprep.mubr.bf16.mxu0 0
    %2292 = vmatmul.mubr.bf16.gmra.mxu0 %v2254
    %v2293 = vpop.f32.mrf.mxu0
    %v2294 = vadd.f32 0.0, %v2293
    %v2295 = vpop.f32.mrf.mxu0
    %v2296 = vpop.f32.mrf.mxu0
    %v2297 = vadd.f32 0.0, %v2296
    %v2298 = vpop.f32.mrf.mxu0
    %2299 = vmatprep.mubr.bf16.mxu0 0
    %2300 = vmatmul.mubr.bf16.gmra.mxu0 %v2257
    %v2301 = vpop.f32.mrf.mxu0
    %v2302 = vadd.f32 0.0, %v2301
    %v2303 = vpop.f32.mrf.mxu0
    %v2304 = vpop.f32.mrf.mxu0
    %v2305 = vpop.f32.mrf.mxu0
    %2306 = vdwg.mxu0
    %v2307 = vmul.f32 %v2294, %v2071
    %v2308 = vmul.f32 %v2297, %v2072
    %v2309 = vmul.f32 %v2302, %v2073
    %2313 = vrot.lane.b32.xlu0 %v2189, 8
    %v2314 = vpop.permute.xlu0 %2313
    %2315 = vrot.lane.b32.xlu0 %v2190, 8
    %v2316 = vpop.permute.xlu0 %2315
    %2317 = vrot.lane.b32.xlu0 %v2191, 8
    %v2318 = vpop.permute.xlu0 %2317
    %2325 = vrot.lane.b32.xlu0 %v2248, 16
    %v2326 = vpop.permute.xlu0 %2325
    %2327 = vrot.lane.b32.xlu0 %v2249, 16
    %v2328 = vpop.permute.xlu0 %2327
    %2329 = vrot.lane.b32.xlu0 %v2250, 16
    %v2330 = vpop.permute.xlu0 %2329
    %2337 = vrot.lane.b32.xlu0 %v2307, 24
    %v2338 = vpop.permute.xlu0 %2337
    %2339 = vrot.lane.b32.xlu0 %v2308, 24
    %v2340 = vpop.permute.xlu0 %2339
    %2341 = vrot.lane.b32.xlu0 %v2309, 24
    %v2342 = vpop.permute.xlu0 %2341
    %v2346 = vsel %vm1124, %v2130, %v2314
    %v2347 = vsel %vm1124, %v2131, %v2316
    %v2348 = vsel %vm1124, %v2132, %v2318
    %v2349 = vsel %vm226, %v2346, %v2326
    %v2350 = vsel %vm226, %v2347, %v2328
    %v2351 = vsel %vm226, %v2348, %v2330
    %v2352 = vsel %vm251, %v2349, %v2338
    %v2353 = vsel %vm251, %v2350, %v2340
    %v2354 = vsel %vm251, %v2351, %v2342
    %v2355 = vmax.f32 %v2352, 0.0
    %v2356 = vmax.f32 %v2353, 0.0
    %v2357 = vmax.f32 %v2354, 0.0
    %v2358 = vld [vmem:[%s9] sm:$0xf]
    %v2359 = vld [vmem:[%s9 + $0x4] sm:$0xf]
    %v2360 = vld [vmem:[%s9 + $0x8] sm:$0xf]
    %v2361 = vld [vmem:[%s9 + $0xc] sm:$0xf]
    %v2362 = vld [vmem:[#allocation13] sm:$0x1]
    %v2363 = vld [vmem:[#allocation14] sm:$0x1]
    %v2364 = vpack.c.bf16 %v1688, %v1687
    %v2366 = vlaneseq
    %v2367 = vshrl.u32 %v2366, 7
    %v2368 = vsub.s32 0, %v2367
    %v2369 = vrot.slane %v2362, %v2368
    %v2375 = vunpack.c.l.b16 %v2358
    %v2376 = vunpack.c.l.b16 %v2359
    %v2377 = vunpack.c.l.b16 %v2360
    %v2378 = vunpack.c.l.b16 %v2361
    %v2379 = vpack.c.b16 %v2376, %v2375
    %v2380 = vpack.c.b16 %v2378, %v2377
    %v2384 = vsel %vm324, %v2364, 0
    %2386 = vmatprep.subr.bf16.mxu0 0
    %2387 = vmatpush1.bf16.msra.mxu0 0
    %2388 = vmatprep.subr.bf16.mxu0 0
    %2389 = vmatpush1.bf16.msra.mxu0 0
    %2390 = vmatprep.subr.bf16.mxu0 0
    %2391 = vmatpush1.bf16.msra.mxu0 0
    %2392 = vmatprep.subr.bf16.mxu0 0
    %2393 = vmatpush1.bf16.msra.mxu0 0
    %2394 = vmatprep.subr.bf16.mxu0 0
    %2395 = vmatpush1.bf16.msra.mxu0 0
    %2396 = vmatprep.subr.bf16.mxu0 0
    %2397 = vmatpush1.bf16.msra.mxu0 0
    %2398 = vmatprep.subr.bf16.mxu0 0
    %2399 = vmatpush1.bf16.msra.mxu0 %v2380
    %2400 = vmatprep.subr.bf16.mxu0 0
    %2401 = vmatpush1.bf16.msra.mxu0 %v2379
    %2402 = vmatprep.subr.bf16.mxu0 0
    %2403 = vmatpush2.bf16.msra.mxu0 0
    %2404 = vmatprep.subr.bf16.mxu0 0
    %2405 = vmatpush2.bf16.msra.mxu0 0
    %2406 = vmatprep.subr.bf16.mxu0 0
    %2407 = vmatpush2.bf16.msra.mxu0 0
    %2408 = vmatprep.subr.bf16.mxu0 0
    %2409 = vmatpush2.bf16.msra.mxu0 0
    %2410 = vmatprep.subr.bf16.mxu0 0
    %2411 = vmatpush2.bf16.msra.mxu0 0
    %2412 = vmatprep.subr.bf16.mxu0 0
    %2413 = vmatpush2.bf16.msra.mxu0 0
    %2414 = vmatprep.subr.bf16.mxu0 0
    %2415 = vmatpush2.bf16.msra.mxu0 0
    %2416 = vmatprep.subr.bf16.mxu0 0
    %2417 = vmatpush2.bf16.msra.mxu0 0
    %2418 = vmatprep.mubr.bf16.mxu0 0
    %2419 = vmatmul.mubr.bf16.gmra.mxu0 %v2384
    %v2420 = vpop.f32.mrf.mxu0
    %v2421 = vadd.f32 %v2369, %v2420
    %v2422 = vpop.f32.mrf.mxu0
    %v2423 = vpop.f32.mrf.mxu0
    %v2424 = vadd.f32 %v2369, %v2423
    %v2425 = vpop.f32.mrf.mxu0
    %2426 = vdwg.mxu0
    %v2427 = vtanh.pop %v2421
    %v2428 = vtanh.pop %v2424
    %v2429 = vlaneseq
    %v2430 = vshrl.u32 %v2429, 7
    %v2431 = vadd.s32 %v2430, 8
    %vm2432 = vcmp.lt.s32.totalorder %v2430, 16
    %vm2433 = vcmp.lt.s32.totalorder %v2431, 16
    %v2434 = vsel %vm2432, 1, 0
    %v2435 = vsel %vm2433, 1, 0
    %v2436 = vcvt.s32.f32 %v2434
    %v2437 = vcvt.s32.f32 %v2435
    %v2438 = vmul.f32 %v2427, %v2436
    %v2439 = vmul.f32 %v2428, %v2437
    %v2440 = vsel %vm324, %v2438, 0.0
    %v2441 = vsel %vm324, %v2439, 0.0
    %v2442 = vadd.f32 %v2440, %v2441
    %v2443 = vrot.slane %v2442, 4
    %v2444 = vadd.f32 %v2442, %v2443
    %v2445 = vrot.slane %v2444, 2
    %v2446 = vadd.f32 %v2444, %v2445
    %v2447 = vrot.slane %v2446, 1
    %v2448 = vadd.f32 %v2446, %v2447
    %v2449 = vmul.f32 %v2448, 0.0625
    %v2450 = vmul.f32 %v2363, %v2449
    %vm2451 = vcmask 253952
    %v2452 = vsel %vm2451, %v2450, 0.0
    %2453 = vadd.xlane.f32.xlu0 %v2452
    %v2454 = vpop.xlane.xlu0 %2453
    %v2455 = vrot.slane %v2454, 4
    %v2456 = vadd.f32 %v2454, %v2455
    %v2457 = vrot.slane %v2456, 2
    %v2458 = vadd.f32 %v2456, %v2457
    %v2459 = vrot.slane %v2458, 1
    %v2460 = vadd.f32 %v2458, %v2459
    %s2461 = vtos %v2460
    %v2462 = vstv %s2461
    %v2463 = vsub.f32 %v2462, %v2462
    %v2464 = vmul.f32 %v2463, 1.442695
    %v2465 = vpow.pop %v2464
    %v2466 = vrcp.pop %v2465
    %v2467 = vmul.f32 %v2465, %v2466
    %v2468 = vmul.f32 %v2467, %v1687
    %v2469 = vmul.f32 %v2467, %v1688
    %v2470 = vpack.c.bf16 %v1135, %v1134
    %v2471 = vpack.c.bf16 %v2355, %v1136
    %v2472 = vpack.c.bf16 %v2357, %v2356
    %v2474 = vsel %vm324, %v2470, 0
    %v2477 = vsel %vm324, %v2471, 0
    %v2480 = vsel %vm324, %v2472, 0
    %2482 = vmatprep.subr.bf16.mxu0 0
    %2483 = vmatpush1.bf16.msra.mxu0 0
    %2484 = vmatprep.subr.bf16.mxu0 0
    %2485 = vmatpush1.bf16.msra.mxu0 0
    %2486 = vmatprep.subr.bf16.mxu0 0
    %2487 = vmatpush1.bf16.msra.mxu0 0
    %2488 = vmatprep.subr.bf16.mxu0 0
    %2489 = vmatpush1.bf16.msra.mxu0 0
    %2490 = vmatprep.subr.bf16.mxu0 0
    %2491 = vmatpush1.bf16.msra.mxu0 0
    %2492 = vmatprep.subr.bf16.mxu0 0
    %2493 = vmatpush1.bf16.msra.mxu0 0
    %2494 = vmatprep.subr.bf16.mxu0 0
    %2495 = vmatpush1.bf16.msra.mxu0 %v2380
    %2496 = vmatprep.subr.bf16.mxu0 0
    %2497 = vmatpush1.bf16.msra.mxu0 %v2379
    %2498 = vmatprep.subr.bf16.mxu0 0
    %2499 = vmatpush2.bf16.msra.mxu0 0
    %2500 = vmatprep.subr.bf16.mxu0 0
    %2501 = vmatpush2.bf16.msra.mxu0 0
    %2502 = vmatprep.subr.bf16.mxu0 0
    %2503 = vmatpush2.bf16.msra.mxu0 0
    %2504 = vmatprep.subr.bf16.mxu0 0
    %2505 = vmatpush2.bf16.msra.mxu0 0
    %2506 = vmatprep.subr.bf16.mxu0 0
    %2507 = vmatpush2.bf16.msra.mxu0 0
    %2508 = vmatprep.subr.bf16.mxu0 0
    %2509 = vmatpush2.bf16.msra.mxu0 0
    %2510 = vmatprep.subr.bf16.mxu0 0
    %2511 = vmatpush2.bf16.msra.mxu0 0
    %2512 = vmatprep.subr.bf16.mxu0 0
    %2513 = vmatpush2.bf16.msra.mxu0 0
    %2514 = vmatprep.mubr.bf16.mxu0 0
    %2515 = vmatmul.mubr.bf16.gmra.mxu0 %v2474
    %v2516 = vpop.f32.mrf.mxu0
    %v2517 = vadd.f32 %v2369, %v2516
    %v2518 = vpop.f32.mrf.mxu0
    %v2519 = vpop.f32.mrf.mxu0
    %v2520 = vadd.f32 %v2369, %v2519
    %v2521 = vpop.f32.mrf.mxu0
    %2522 = vmatprep.mubr.bf16.mxu0 0
    %2523 = vmatmul.mubr.bf16.gmra.mxu0 %v2477
    %v2524 = vpop.f32.mrf.mxu0
    %v2525 = vadd.f32 %v2369, %v2524
    %v2526 = vpop.f32.mrf.mxu0
    %v2527 = vpop.f32.mrf.mxu0
    %v2528 = vadd.f32 %v2369, %v2527
    %v2529 = vpop.f32.mrf.mxu0
    %2530 = vmatprep.mubr.bf16.mxu0 0
    %2531 = vmatmul.mubr.bf16.gmra.mxu0 %v2480
    %v2532 = vpop.f32.mrf.mxu0
    %v2533 = vadd.f32 %v2369, %v2532
    %v2534 = vpop.f32.mrf.mxu0
    %v2535 = vpop.f32.mrf.mxu0
    %v2536 = vadd.f32 %v2369, %v2535
    %v2537 = vpop.f32.mrf.mxu0
    %2538 = vdwg.mxu0
    %v2539 = vtanh.pop %v2517
    %v2540 = vtanh.pop %v2520
    %v2541 = vtanh.pop %v2525
    %v2542 = vtanh.pop %v2528
    %v2543 = vtanh.pop %v2533
    %v2544 = vtanh.pop %v2536
    %v2545 = vadd.s32 %v2430, 16
    %vm2546 = vcmp.lt.s32.totalorder %v2430, 24
    %vm2547 = vcmp.lt.s32.totalorder %v2431, 24
    %vm2548 = vcmp.lt.s32.totalorder %v2545, 24
    %v2549 = vsel %vm2546, 1, 0
    %v2550 = vsel %vm2547, 1, 0
    %v2551 = vsel %vm2548, 1, 0
    %v2552 = vcvt.s32.f32 %v2549
    %v2553 = vcvt.s32.f32 %v2550
    %v2554 = vcvt.s32.f32 %v2551
    %v2555 = vmul.f32 %v2539, %v2552
    %v2556 = vmul.f32 %v2540, %v2553
    %v2557 = vmul.f32 %v2541, %v2554
    %v2558 = vsel %vm324, %v2555, 0.0
    %v2559 = vsel %vm324, %v2556, 0.0
    %v2560 = vadd.f32 %v2558, %v2559
    %v2561 = vsel %vm324, %v2557, 0.0
    %v2562 = vadd.f32 %v2560, %v2561
    %v2563 = vrot.slane %v2562, 4
    %v2564 = vadd.f32 %v2562, %v2563
    %v2565 = vrot.slane %v2564, 2
    %v2566 = vadd.f32 %v2564, %v2565
    %v2567 = vrot.slane %v2566, 1
    %v2568 = vadd.f32 %v2566, %v2567
    %v2569 = vmul.f32 %v2568, 0.041666668
    %v2570 = vmul.f32 %v2363, %v2569
    %v2571 = vsel %vm2451, %v2570, 0.0
    %2572 = vadd.xlane.f32.xlu0 %v2571
    %v2573 = vpop.xlane.xlu0 %2572
    %v2574 = vrot.slane %v2573, 4
    %v2575 = vadd.f32 %v2573, %v2574
    %v2576 = vrot.slane %v2575, 2
    %v2577 = vadd.f32 %v2575, %v2576
    %v2578 = vrot.slane %v2577, 1
    %v2579 = vadd.f32 %v2577, %v2578
    %s2580 = vtos %v2579
    %v2581 = vstv %s2580
    %v2582 = vmul.f32 %v2542, %v2552
    %v2583 = vmul.f32 %v2543, %v2553
    %v2584 = vmul.f32 %v2544, %v2554
    %v2585 = vsel %vm324, %v2582, 0.0
    %v2586 = vsel %vm324, %v2583, 0.0
    %v2587 = vadd.f32 %v2585, %v2586
    %v2588 = vsel %vm324, %v2584, 0.0
    %v2589 = vadd.f32 %v2587, %v2588
    %v2590 = vrot.slane %v2589, 4
    %v2591 = vadd.f32 %v2589, %v2590
    %v2592 = vrot.slane %v2591, 2
    %v2593 = vadd.f32 %v2591, %v2592
    %v2594 = vrot.slane %v2593, 1
    %v2595 = vadd.f32 %v2593, %v2594
    %v2596 = vmul.f32 %v2595, 0.041666668
    %v2597 = vmul.f32 %v2363, %v2596
    %v2598 = vsel %vm2451, %v2597, 0.0
    %2599 = vadd.xlane.f32.xlu0 %v2598
    %v2600 = vpop.xlane.xlu0 %2599
    %v2601 = vrot.slane %v2600, 4
    %v2602 = vadd.f32 %v2600, %v2601
    %v2603 = vrot.slane %v2602, 2
    %v2604 = vadd.f32 %v2602, %v2603
    %v2605 = vrot.slane %v2604, 1
    %v2606 = vadd.f32 %v2604, %v2605
    %s2607 = vtos %v2606
    %v2608 = vstv %s2607
    %v2609 = vmax.f32 %v2581, %v2608
    %v2610 = vsub.f32 %v2581, %v2609
    %v2611 = vmul.f32 %v2610, 1.442695
    %v2612 = vpow.pop %v2611
    %v2613 = vsub.f32 %v2608, %v2609
    %v2614 = vmul.f32 %v2613, 1.442695
    %v2615 = vpow.pop %v2614
    %v2616 = vadd.f32 %v2612, %v2615
    %v2617 = vrcp.pop %v2616
    %v2618 = vmul.f32 %v2612, %v2617
    %v2619 = vmul.f32 %v2618, %v1134
    %v2620 = vmul.f32 %v2618, %v1135
    %v2621 = vmul.f32 %v2618, %v1136
    %v2622 = vmul.f32 %v2615, %v2617
    %v2623 = vmul.f32 %v2622, %v2355
    %v2624 = vmul.f32 %v2622, %v2356
    %v2625 = vmul.f32 %v2622, %v2357
    %v2626 = vadd.f32 %v2619, %v2623
    %v2627 = vadd.f32 %v2620, %v2624
    %v2628 = vadd.f32 %v2621, %v2625
    %v2629 = vpack.c.bf16 %v2469, %v2468
    %v2630 = vpack.c.bf16 %v2627, %v2626
    %v2631 = vpack.c.bf16 %v2628, %v2628
    %v2632 = vld [vmem:[#allocation16] sm:$0xf]
    %v2633 = vld [vmem:[#allocation16 + $0x4] sm:$0xf]
    %v2634 = vld [vmem:[#allocation16 + $0x8] sm:$0xf]
    %v2635 = vld [vmem:[#allocation16 + $0xc] sm:$0xf]
    %v2636 = vld [vmem:[#allocation19] sm:$0x1]
    %v2638 = vlaneseq
    %v2639 = vshrl.u32 %v2638, 7
    %v2640 = vsub.s32 0, %v2639
    %v2641 = vrot.slane %v2636, %v2640
    %v2647 = vunpack.c.l.b16 %v2632
    %v2648 = vunpack.c.l.b16 %v2633
    %v2649 = vunpack.c.l.b16 %v2634
    %v2650 = vunpack.c.l.b16 %v2635
    %v2651 = vpack.c.b16 %v2648, %v2647
    %v2652 = vpack.c.b16 %v2650, %v2649
    %v2656 = vsel %vm324, %v2629, 0
    %2658 = vmatprep.subr.bf16.mxu0 0
    %2659 = vmatpush1.bf16.msra.mxu0 0
    %2660 = vmatprep.subr.bf16.mxu0 0
    %2661 = vmatpush1.bf16.msra.mxu0 0
    %2662 = vmatprep.subr.bf16.mxu0 0
    %2663 = vmatpush1.bf16.msra.mxu0 0
    %2664 = vmatprep.subr.bf16.mxu0 0
    %2665 = vmatpush1.bf16.msra.mxu0 0
    %2666 = vmatprep.subr.bf16.mxu0 0
    %2667 = vmatpush1.bf16.msra.mxu0 0
    %2668 = vmatprep.subr.bf16.mxu0 0
    %2669 = vmatpush1.bf16.msra.mxu0 0
    %2670 = vmatprep.subr.bf16.mxu0 0
    %2671 = vmatpush1.bf16.msra.mxu0 %v2652
    %2672 = vmatprep.subr.bf16.mxu0 0
    %2673 = vmatpush1.bf16.msra.mxu0 %v2651
    %2674 = vmatprep.subr.bf16.mxu0 0
    %2675 = vmatpush2.bf16.msra.mxu0 0
    %2676 = vmatprep.subr.bf16.mxu0 0
    %2677 = vmatpush2.bf16.msra.mxu0 0
    %2678 = vmatprep.subr.bf16.mxu0 0
    %2679 = vmatpush2.bf16.msra.mxu0 0
    %2680 = vmatprep.subr.bf16.mxu0 0
    %2681 = vmatpush2.bf16.msra.mxu0 0
    %2682 = vmatprep.subr.bf16.mxu0 0
    %2683 = vmatpush2.bf16.msra.mxu0 0
    %2684 = vmatprep.subr.bf16.mxu0 0
    %2685 = vmatpush2.bf16.msra.mxu0 0
    %2686 = vmatprep.subr.bf16.mxu0 0
    %2687 = vmatpush2.bf16.msra.mxu0 0
    %2688 = vmatprep.subr.bf16.mxu0 0
    %2689 = vmatpush2.bf16.msra.mxu0 0
    %2690 = vmatprep.mubr.bf16.mxu0 0
    %2691 = vmatmul.mubr.bf16.gmra.mxu0 %v2656
    %v2692 = vpop.f32.mrf.mxu0
    %v2693 = vadd.f32 %v2641, %v2692
    %v2694 = vpop.f32.mrf.mxu0
    %v2695 = vpop.f32.mrf.mxu0
    %v2696 = vadd.f32 %v2641, %v2695
    %v2697 = vpop.f32.mrf.mxu0
    %2698 = vdwg.mxu0
    %v2699 = vld [vmem:[#allocation17] sm:$0xf]
    %v2700 = vld [vmem:[#allocation17 + $0x4] sm:$0xf]
    %v2701 = vld [vmem:[#allocation17 + $0x8] sm:$0xf]
    %v2702 = vld [vmem:[#allocation17 + $0xc] sm:$0xf]
    %v2703 = vld [vmem:[#allocation20] sm:$0x1]
    %v2705 = vlaneseq
    %v2706 = vshrl.u32 %v2705, 7
    %v2707 = vsub.s32 0, %v2706
    %v2708 = vrot.slane %v2703, %v2707
    %v2714 = vunpack.c.l.b16 %v2699
    %v2715 = vunpack.c.l.b16 %v2700
    %v2716 = vunpack.c.l.b16 %v2701
    %v2717 = vunpack.c.l.b16 %v2702
    %v2718 = vpack.c.b16 %v2715, %v2714
    %v2719 = vpack.c.b16 %v2717, %v2716
    %v2723 = vsel %vm324, %v2630, 0
    %v2726 = vsel %vm324, %v2631, 0
    %2728 = vmatprep.subr.bf16.mxu0 0
    %2729 = vmatpush1.bf16.msra.mxu0 0
    %2730 = vmatprep.subr.bf16.mxu0 0
    %2731 = vmatpush1.bf16.msra.mxu0 0
    %2732 = vmatprep.subr.bf16.mxu0 0
    %2733 = vmatpush1.bf16.msra.mxu0 0
    %2734 = vmatprep.subr.bf16.mxu0 0
    %2735 = vmatpush1.bf16.msra.mxu0 0
    %2736 = vmatprep.subr.bf16.mxu0 0
    %2737 = vmatpush1.bf16.msra.mxu0 0
    %2738 = vmatprep.subr.bf16.mxu0 0
    %2739 = vmatpush1.bf16.msra.mxu0 0
    %2740 = vmatprep.subr.bf16.mxu0 0
    %2741 = vmatpush1.bf16.msra.mxu0 %v2719
    %2742 = vmatprep.subr.bf16.mxu0 0
    %2743 = vmatpush1.bf16.msra.mxu0 %v2718
    %2744 = vmatprep.subr.bf16.mxu0 0
    %2745 = vmatpush2.bf16.msra.mxu0 0
    %2746 = vmatprep.subr.bf16.mxu0 0
    %2747 = vmatpush2.bf16.msra.mxu0 0
    %2748 = vmatprep.subr.bf16.mxu0 0
    %2749 = vmatpush2.bf16.msra.mxu0 0
    %2750 = vmatprep.subr.bf16.mxu0 0
    %2751 = vmatpush2.bf16.msra.mxu0 0
    %2752 = vmatprep.subr.bf16.mxu0 0
    %2753 = vmatpush2.bf16.msra.mxu0 0
    %2754 = vmatprep.subr.bf16.mxu0 0
    %2755 = vmatpush2.bf16.msra.mxu0 0
    %2756 = vmatprep.subr.bf16.mxu0 0
    %2757 = vmatpush2.bf16.msra.mxu0 0
    %2758 = vmatprep.subr.bf16.mxu0 0
    %2759 = vmatpush2.bf16.msra.mxu0 0
    %2760 = vmatprep.mubr.bf16.mxu0 0
    %2761 = vmatmul.mubr.bf16.gmra.mxu0 %v2723
    %v2762 = vpop.f32.mrf.mxu0
    %v2763 = vadd.f32 %v2708, %v2762
    %v2764 = vpop.f32.mrf.mxu0
    %v2765 = vpop.f32.mrf.mxu0
    %v2766 = vadd.f32 %v2708, %v2765
    %v2767 = vpop.f32.mrf.mxu0
    %2768 = vmatprep.mubr.bf16.mxu0 0
    %2769 = vmatmul.mubr.bf16.gmra.mxu0 %v2726
    %v2770 = vpop.f32.mrf.mxu0
    %v2771 = vadd.f32 %v2708, %v2770
    %v2772 = vpop.f32.mrf.mxu0
    %v2773 = vpop.f32.mrf.mxu0
    %v2774 = vpop.f32.mrf.mxu0
    %2775 = vdwg.mxu0
    %2778 = vrot.lane.b32.xlu0 %v2693, 96
    %v2779 = vpop.permute.xlu0 %2778
    %2780 = vrot.lane.b32.xlu0 %v2696, 96
    %v2781 = vpop.permute.xlu0 %2780
    %2784 = vxpose.xlu0.b32.start [1/16] %v2779, 128
    %2785 = vxpose.xlu0.b32.cont [2/16] %v2781, 128
    %2786 = vxpose.xlu0.b32.cont [3/16] 0.0, 128
    %2787 = vxpose.xlu0.b32.cont [4/16] 0.0, 128
    %2788 = vxpose.xlu0.b32.cont [5/16] 0.0, 128
    %2789 = vxpose.xlu0.b32.cont [6/16] 0.0, 128
    %2790 = vxpose.xlu0.b32.cont [7/16] 0.0, 128
    %2791 = vxpose.xlu0.b32.cont [8/16] 0.0, 128
    %2792 = vxpose.xlu0.b32.cont [9/16] 0.0, 128
    %2793 = vxpose.xlu0.b32.cont [10/16] 0.0, 128
    %2794 = vxpose.xlu0.b32.cont [11/16] 0.0, 128
    %2795 = vxpose.xlu0.b32.cont [12/16] 0.0, 128
    %2796 = vxpose.xlu0.b32.cont [13/16] 0.0, 128
    %2797 = vxpose.xlu0.b32.cont [14/16] 0.0, 128
    %2798 = vxpose.xlu0.b32.cont [15/16] 0.0, 128
    %2799 = vxpose.xlu0.b32.end [16/16] 0.0, 128
    %v2800 = vpop.trf.xlu0
    %v2801 = vpop.trf.xlu0
    %v2802 = vpop.trf.xlu0
    %v2803 = vpop.trf.xlu0
    %v2804 = vpop.trf.xlu0
    %v2805 = vpop.trf.xlu0
    %v2806 = vpop.trf.xlu0
    %v2807 = vpop.trf.xlu0
    %v2808 = vpop.trf.xlu0
    %v2809 = vpop.trf.xlu0
    %v2810 = vpop.trf.xlu0
    %v2811 = vpop.trf.xlu0
    %v2812 = vpop.trf.xlu0
    %v2813 = vpop.trf.xlu0
    %v2814 = vpop.trf.xlu0
    %v2815 = vpop.trf.xlu0
    %2819 = vrot.lane.b32.xlu0 %v2763, 84
    %v2820 = vpop.permute.xlu0 %2819
    %2821 = vrot.lane.b32.xlu0 %v2766, 84
    %v2822 = vpop.permute.xlu0 %2821
    %2823 = vrot.lane.b32.xlu0 %v2771, 84
    %v2824 = vpop.permute.xlu0 %2823
    %2828 = vxpose.xlu0.b32.start [1/16] %v2820, 128
    %2829 = vxpose.xlu0.b32.cont [2/16] %v2822, 128
    %2830 = vxpose.xlu0.b32.cont [3/16] %v2824, 128
    %2831 = vxpose.xlu0.b32.cont [4/16] 0.0, 128
    %2832 = vxpose.xlu0.b32.cont [5/16] 0.0, 128
    %2833 = vxpose.xlu0.b32.cont [6/16] 0.0, 128
    %2834 = vxpose.xlu0.b32.cont [7/16] 0.0, 128
    %2835 = vxpose.xlu0.b32.cont [8/16] 0.0, 128
    %2836 = vxpose.xlu0.b32.cont [9/16] 0.0, 128
    %2837 = vxpose.xlu0.b32.cont [10/16] 0.0, 128
    %2838 = vxpose.xlu0.b32.cont [11/16] 0.0, 128
    %2839 = vxpose.xlu0.b32.cont [12/16] 0.0, 128
    %2840 = vxpose.xlu0.b32.cont [13/16] 0.0, 128
    %2841 = vxpose.xlu0.b32.cont [14/16] 0.0, 128
    %2842 = vxpose.xlu0.b32.cont [15/16] 0.0, 128
    %2843 = vxpose.xlu0.b32.end [16/16] 0.0, 128
    %v2844 = vpop.trf.xlu0
    %v2845 = vpop.trf.xlu0
    %v2846 = vpop.trf.xlu0
    %v2847 = vpop.trf.xlu0
    %v2848 = vpop.trf.xlu0
    %v2849 = vpop.trf.xlu0
    %v2850 = vpop.trf.xlu0
    %v2851 = vpop.trf.xlu0
    %v2852 = vpop.trf.xlu0
    %v2853 = vpop.trf.xlu0
    %v2854 = vpop.trf.xlu0
    %v2855 = vpop.trf.xlu0
    %v2856 = vpop.trf.xlu0
    %v2857 = vpop.trf.xlu0
    %v2858 = vpop.trf.xlu0
    %v2859 = vpop.trf.xlu0
    %v2860 = vlaneseq
    %v2861 = vshrl.u32 %v2860, 7
    %v2862 = vsub.s32 0, %v2861
    %v2863 = vrot.slane %v2844, %v2862
    %2865 = vbcast.lane.b32.xlu0 %v2863, 256
    %v2866 = vpop.permute.xlu0 %2865
    %s2868 = sor.u32 256, 8
    %2869 = vbcast.lane.b32.xlu0 %v2863, %s2868
    %v2870 = vpop.permute.xlu0 %2869
    %s2872 = sor.u32 256, 16
    %2873 = vbcast.lane.b32.xlu0 %v2863, %s2872
    %v2874 = vpop.permute.xlu0 %2873
    %v2875 = vlaneseq
    %v2876 = vshrl.u32 %v2875, 7
    %v2877 = vsub.s32 1, %v2876
    %v2878 = vrot.slane %v2844, %v2877
    %2880 = vbcast.lane.b32.xlu0 %v2878, 256
    %v2881 = vpop.permute.xlu0 %2880
    %s2883 = sor.u32 256, 8
    %2884 = vbcast.lane.b32.xlu0 %v2878, %s2883
    %v2885 = vpop.permute.xlu0 %2884
    %s2887 = sor.u32 256, 16
    %2888 = vbcast.lane.b32.xlu0 %v2878, %s2887
    %v2889 = vpop.permute.xlu0 %2888
    %v2890 = vlaneseq
    %v2891 = vshrl.u32 %v2890, 7
    %v2892 = vsub.s32 2, %v2891
    %v2893 = vrot.slane %v2844, %v2892
    %2895 = vbcast.lane.b32.xlu0 %v2893, 256
    %v2896 = vpop.permute.xlu0 %2895
    %s2898 = sor.u32 256, 8
    %2899 = vbcast.lane.b32.xlu0 %v2893, %s2898
    %v2900 = vpop.permute.xlu0 %2899
    %s2902 = sor.u32 256, 16
    %2903 = vbcast.lane.b32.xlu0 %v2893, %s2902
    %v2904 = vpop.permute.xlu0 %2903
    %v2905 = vlaneseq
    %v2906 = vshrl.u32 %v2905, 7
    %v2907 = vsub.s32 3, %v2906
    %v2908 = vrot.slane %v2844, %v2907
    %2910 = vbcast.lane.b32.xlu0 %v2908, 256
    %v2911 = vpop.permute.xlu0 %2910
    %s2913 = sor.u32 256, 8
    %2914 = vbcast.lane.b32.xlu0 %v2908, %s2913
    %v2915 = vpop.permute.xlu0 %2914
    %s2917 = sor.u32 256, 16
    %2918 = vbcast.lane.b32.xlu0 %v2908, %s2917
    %v2919 = vpop.permute.xlu0 %2918
    %v2922 = vunpack.c.l.s4 1966171168
    %v2923 = vunpack.c.0.s8 %v2922
    %v2924 = vlaneseq
    %v2925 = vshrl.u32 %v2924, 7
    %v2926 = vsub.s32 %v2923, %v2925
    %v2927 = vrot.slane %v2800, %v2926
    %v2928 = vcombine.high %v2927, %v2927
    %v2930 = vunpack.c.l.s4 1966171168
    %v2931 = vunpack.c.0.s8 %v2930
    %v2932 = vlaneseq
    %v2933 = vshrl.u32 %v2932, 7
    %v2934 = vsub.s32 %v2931, %v2933
    %v2935 = vrot.slane %v2927, %v2934
    %v2937 = vunpack.c.l.s4 1966171168
    %v2938 = vunpack.c.0.s8 %v2937
    %v2939 = vlaneseq
    %v2940 = vshrl.u32 %v2939, 7
    %v2941 = vsub.s32 %v2938, %v2940
    %v2942 = vrot.slane %v2928, %v2941
    %v2943 = vcombine.high %v2935, %v2935
    %v2944 = vcombine.high %v2942, %v2942
    %v2945 = vlaneseq
    %v2946 = vshrl.u32 %v2945, 7
    %v2947 = vsub.s32 0, %v2946
    %v2948 = vrot.slane %v2935, %v2947
    %v2949 = vlaneseq
    %v2950 = vshrl.u32 %v2949, 7
    %v2951 = vsub.s32 0, %v2950
    %v2952 = vrot.slane %v2942, %v2951
    %v2953 = vlaneseq
    %v2954 = vshrl.u32 %v2953, 7
    %v2955 = vsub.s32 0, %v2954
    %v2956 = vrot.slane %v2943, %v2955
    %v2957 = vlaneseq
    %v2958 = vshrl.u32 %v2957, 7
    %v2959 = vsub.s32 0, %v2958
    %v2960 = vrot.slane %v2944, %v2959
    %v2965 = vadd.f32 %v2866, %v2948
    %v2966 = vadd.f32 %v2870, %v2948
    %v2967 = vadd.f32 %v2874, %v2948
    %v2968 = vadd.f32 %v2881, %v2952
    %v2969 = vadd.f32 %v2885, %v2952
    %v2970 = vadd.f32 %v2889, %v2952
    %v2971 = vadd.f32 %v2896, %v2956
    %v2972 = vadd.f32 %v2900, %v2956
    %v2973 = vadd.f32 %v2904, %v2956
    %v2974 = vadd.f32 %v2911, %v2960
    %v2975 = vadd.f32 %v2915, %v2960
    %v2976 = vadd.f32 %v2919, %v2960
    %vm2977 = vcmp.ge.f32.partialorder %v2965, 0.0
    %vm2978 = vcmp.ge.f32.partialorder %v2966, 0.0
    %vm2979 = vcmp.ge.f32.partialorder %v2967, 0.0
    %vm2980 = vcmp.ge.f32.partialorder %v2968, 0.0
    %vm2981 = vcmp.ge.f32.partialorder %v2969, 0.0
    %vm2982 = vcmp.ge.f32.partialorder %v2970, 0.0
    %vm2983 = vcmp.ge.f32.partialorder %v2971, 0.0
    %vm2984 = vcmp.ge.f32.partialorder %v2972, 0.0
    %vm2985 = vcmp.ge.f32.partialorder %v2973, 0.0
    %vm2986 = vcmp.ge.f32.partialorder %v2974, 0.0
    %vm2987 = vcmp.ge.f32.partialorder %v2975, 0.0
    %vm2988 = vcmp.ge.f32.partialorder %v2976, 0.0
    %v2989 = vmul.f32 %v2965, 0.2
    %v2990 = vmul.f32 %v2966, 0.2
    %v2991 = vmul.f32 %v2967, 0.2
    %v2992 = vmul.f32 %v2968, 0.2
    %v2993 = vmul.f32 %v2969, 0.2
    %v2994 = vmul.f32 %v2970, 0.2
    %v2995 = vmul.f32 %v2971, 0.2
    %v2996 = vmul.f32 %v2972, 0.2
    %v2997 = vmul.f32 %v2973, 0.2
    %v2998 = vmul.f32 %v2974, 0.2
    %v2999 = vmul.f32 %v2975, 0.2
    %v3000 = vmul.f32 %v2976, 0.2
    %v3001 = vsel %vm2977, %v2965, %v2989
    %v3002 = vsel %vm2978, %v2966, %v2990
    %v3003 = vsel %vm2979, %v2967, %v2991
    %v3004 = vsel %vm2980, %v2968, %v2992
    %v3005 = vsel %vm2981, %v2969, %v2993
    %v3006 = vsel %vm2982, %v2970, %v2994
    %v3007 = vsel %vm2983, %v2971, %v2995
    %v3008 = vsel %vm2984, %v2972, %v2996
    %v3009 = vsel %vm2985, %v2973, %v2997
    %v3010 = vsel %vm2986, %v2974, %v2998
    %v3011 = vsel %vm2987, %v2975, %v2999
    %v3012 = vsel %vm2988, %v2976, %v3000
    %v3013 = vsel %vm694, %v3001, -1e+30
    %v3014 = vsel %vm695, %v3002, -1e+30
    %v3015 = vsel %vm696, %v3003, -1e+30
    %v3016 = vsel %vm694, %v3004, -1e+30
    %v3017 = vsel %vm695, %v3005, -1e+30
    %v3018 = vsel %vm696, %v3006, -1e+30
    %v3019 = vsel %vm694, %v3007, -1e+30
    %v3020 = vsel %vm695, %v3008, -1e+30
    %v3021 = vsel %vm696, %v3009, -1e+30
    %v3022 = vsel %vm694, %v3010, -1e+30
    %v3023 = vsel %vm695, %v3011, -1e+30
    %v3024 = vsel %vm696, %v3012, -1e+30
    %v3025 = vsel %vm226, %v3013, -inf
    %3026 = vmax.xlane.f32.xlu0 %v3025
    %v3027 = vpop.xlane.xlu0 %3026
    %v3028 = vsel %vm226, %v3014, -inf
    %3029 = vmax.xlane.f32.xlu0 %v3028
    %v3030 = vpop.xlane.xlu0 %3029
    %v3031 = vsel %vm226, %v3015, -inf
    %3032 = vmax.xlane.f32.xlu0 %v3031
    %v3033 = vpop.xlane.xlu0 %3032
    %v3034 = vsel %vm226, %v3016, -inf
    %3035 = vmax.xlane.f32.xlu0 %v3034
    %v3036 = vpop.xlane.xlu0 %3035
    %v3037 = vsel %vm226, %v3017, -inf
    %3038 = vmax.xlane.f32.xlu0 %v3037
    %v3039 = vpop.xlane.xlu0 %3038
    %v3040 = vsel %vm226, %v3018, -inf
    %3041 = vmax.xlane.f32.xlu0 %v3040
    %v3042 = vpop.xlane.xlu0 %3041
    %v3043 = vsel %vm226, %v3019, -inf
    %3044 = vmax.xlane.f32.xlu0 %v3043
    %v3045 = vpop.xlane.xlu0 %3044
    %v3046 = vsel %vm226, %v3020, -inf
    %3047 = vmax.xlane.f32.xlu0 %v3046
    %v3048 = vpop.xlane.xlu0 %3047
    %v3049 = vsel %vm226, %v3021, -inf
    %3050 = vmax.xlane.f32.xlu0 %v3049
    %v3051 = vpop.xlane.xlu0 %3050
    %v3052 = vsel %vm226, %v3022, -inf
    %3053 = vmax.xlane.f32.xlu0 %v3052
    %v3054 = vpop.xlane.xlu0 %3053
    %v3055 = vsel %vm226, %v3023, -inf
    %3056 = vmax.xlane.f32.xlu0 %v3055
    %v3057 = vpop.xlane.xlu0 %3056
    %v3058 = vsel %vm226, %v3024, -inf
    %3059 = vmax.xlane.f32.xlu0 %v3058
    %v3060 = vpop.xlane.xlu0 %3059
    %v3061 = vsub.f32 %v3013, %v3027
    %v3062 = vsub.f32 %v3014, %v3030
    %v3063 = vsub.f32 %v3015, %v3033
    %v3064 = vsub.f32 %v3016, %v3036
    %v3065 = vsub.f32 %v3017, %v3039
    %v3066 = vsub.f32 %v3018, %v3042
    %v3067 = vsub.f32 %v3019, %v3045
    %v3068 = vsub.f32 %v3020, %v3048
    %v3069 = vsub.f32 %v3021, %v3051
    %v3070 = vsub.f32 %v3022, %v3054
    %v3071 = vsub.f32 %v3023, %v3057
    %v3072 = vsub.f32 %v3024, %v3060
    %v3073 = vmul.f32 %v3061, 1.442695
    %v3074 = vpow.pop %v3073
    %v3075 = vmul.f32 %v3062, 1.442695
    %v3076 = vpow.pop %v3075
    %v3077 = vmul.f32 %v3063, 1.442695
    %v3078 = vpow.pop %v3077
    %v3079 = vmul.f32 %v3064, 1.442695
    %v3080 = vpow.pop %v3079
    %v3081 = vmul.f32 %v3065, 1.442695
    %v3082 = vpow.pop %v3081
    %v3083 = vmul.f32 %v3066, 1.442695
    %v3084 = vpow.pop %v3083
    %v3085 = vmul.f32 %v3067, 1.442695
    %v3086 = vpow.pop %v3085
    %v3087 = vmul.f32 %v3068, 1.442695
    %v3088 = vpow.pop %v3087
    %v3089 = vmul.f32 %v3069, 1.442695
    %v3090 = vpow.pop %v3089
    %v3091 = vmul.f32 %v3070, 1.442695
    %v3092 = vpow.pop %v3091
    %v3093 = vmul.f32 %v3071, 1.442695
    %v3094 = vpow.pop %v3093
    %v3095 = vmul.f32 %v3072, 1.442695
    %v3096 = vpow.pop %v3095
    %v3097 = vsel %vm226, %v3074, 0.0
    %3098 = vadd.xlane.f32.xlu0 %v3097
    %v3099 = vpop.xlane.xlu0 %3098
    %v3100 = vsel %vm226, %v3076, 0.0
    %3101 = vadd.xlane.f32.xlu0 %v3100
    %v3102 = vpop.xlane.xlu0 %3101
    %v3103 = vsel %vm226, %v3078, 0.0
    %3104 = vadd.xlane.f32.xlu0 %v3103
    %v3105 = vpop.xlane.xlu0 %3104
    %v3106 = vsel %vm226, %v3080, 0.0
    %3107 = vadd.xlane.f32.xlu0 %v3106
    %v3108 = vpop.xlane.xlu0 %3107
    %v3109 = vsel %vm226, %v3082, 0.0
    %3110 = vadd.xlane.f32.xlu0 %v3109
    %v3111 = vpop.xlane.xlu0 %3110
    %v3112 = vsel %vm226, %v3084, 0.0
    %3113 = vadd.xlane.f32.xlu0 %v3112
    %v3114 = vpop.xlane.xlu0 %3113
    %v3115 = vsel %vm226, %v3086, 0.0
    %3116 = vadd.xlane.f32.xlu0 %v3115
    %v3117 = vpop.xlane.xlu0 %3116
    %v3118 = vsel %vm226, %v3088, 0.0
    %3119 = vadd.xlane.f32.xlu0 %v3118
    %v3120 = vpop.xlane.xlu0 %3119
    %v3121 = vsel %vm226, %v3090, 0.0
    %3122 = vadd.xlane.f32.xlu0 %v3121
    %v3123 = vpop.xlane.xlu0 %3122
    %v3124 = vsel %vm226, %v3092, 0.0
    %3125 = vadd.xlane.f32.xlu0 %v3124
    %v3126 = vpop.xlane.xlu0 %3125
    %v3127 = vsel %vm226, %v3094, 0.0
    %3128 = vadd.xlane.f32.xlu0 %v3127
    %v3129 = vpop.xlane.xlu0 %3128
    %v3130 = vsel %vm226, %v3096, 0.0
    %3131 = vadd.xlane.f32.xlu0 %v3130
    %v3132 = vpop.xlane.xlu0 %3131
    %v3133 = vmul.f32 %v3074, %v242
    %v3134 = vmul.f32 %v3076, %v243
    %v3135 = vmul.f32 %v3078, %v244
    %v3136 = vmul.f32 %v3080, %v242
    %v3137 = vmul.f32 %v3082, %v243
    %v3138 = vmul.f32 %v3084, %v244
    %v3139 = vmul.f32 %v3086, %v242
    %v3140 = vmul.f32 %v3088, %v243
    %v3141 = vmul.f32 %v3090, %v244
    %v3142 = vmul.f32 %v3092, %v242
    %v3143 = vmul.f32 %v3094, %v243
    %v3144 = vmul.f32 %v3096, %v244
    %v3145 = vrcp.pop %v3099
    %v3146 = vrcp.pop %v3102
    %v3147 = vrcp.pop %v3105
    %v3148 = vrcp.pop %v3108
    %v3149 = vrcp.pop %v3111
    %v3150 = vrcp.pop %v3114
    %v3151 = vrcp.pop %v3117
    %v3152 = vrcp.pop %v3120
    %v3153 = vrcp.pop %v3123
    %v3154 = vrcp.pop %v3126
    %v3155 = vrcp.pop %v3129
    %v3156 = vrcp.pop %v3132
    %v3157 = vpack.c.bf16 %v3134, %v3133
    %v3158 = vpack.c.bf16 %v3135, %v3135
    %v3159 = vpack.c.bf16 %v2696, %v2693
    %v3161 = vsel %vm226, %v3157, 0
    %v3164 = vsel %vm226, %v3158, 0
    %3166 = vmatprep.subr.bf16.mxu0 0
    %3167 = vmatpush1.bf16.msra.mxu0 0
    %3168 = vmatprep.subr.bf16.mxu0 0
    %3169 = vmatpush1.bf16.msra.mxu0 0
    %3170 = vmatprep.subr.bf16.mxu0 0
    %3171 = vmatpush1.bf16.msra.mxu0 0
    %3172 = vmatprep.subr.bf16.mxu0 0
    %3173 = vmatpush1.bf16.msra.mxu0 0
    %3174 = vmatprep.subr.bf16.mxu0 0
    %3175 = vmatpush1.bf16.msra.mxu0 0
    %3176 = vmatprep.subr.bf16.mxu0 0
    %3177 = vmatpush1.bf16.msra.mxu0 0
    %3178 = vmatprep.subr.bf16.mxu0 0
    %3179 = vmatpush1.bf16.msra.mxu0 0
    %3180 = vmatprep.subr.bf16.mxu0 0
    %3181 = vmatpush1.bf16.msra.mxu0 %v3159
    %3182 = vmatprep.subr.bf16.mxu0 0
    %3183 = vmatpush2.bf16.msra.mxu0 0
    %3184 = vmatprep.subr.bf16.mxu0 0
    %3185 = vmatpush2.bf16.msra.mxu0 0
    %3186 = vmatprep.subr.bf16.mxu0 0
    %3187 = vmatpush2.bf16.msra.mxu0 0
    %3188 = vmatprep.subr.bf16.mxu0 0
    %3189 = vmatpush2.bf16.msra.mxu0 0
    %3190 = vmatprep.subr.bf16.mxu0 0
    %3191 = vmatpush2.bf16.msra.mxu0 0
    %3192 = vmatprep.subr.bf16.mxu0 0
    %3193 = vmatpush2.bf16.msra.mxu0 0
    %3194 = vmatprep.subr.bf16.mxu0 0
    %3195 = vmatpush2.bf16.msra.mxu0 0
    %3196 = vmatprep.subr.bf16.mxu0 0
    %3197 = vmatpush2.bf16.msra.mxu0 0
    %3198 = vmatprep.mubr.bf16.mxu0 0
    %3199 = vmatmul.mubr.bf16.gmra.mxu0 %v3161
    %v3200 = vpop.f32.mrf.mxu0
    %v3201 = vadd.f32 0.0, %v3200
    %v3202 = vpop.f32.mrf.mxu0
    %v3203 = vpop.f32.mrf.mxu0
    %v3204 = vadd.f32 0.0, %v3203
    %v3205 = vpop.f32.mrf.mxu0
    %3206 = vmatprep.mubr.bf16.mxu0 0
    %3207 = vmatmul.mubr.bf16.gmra.mxu0 %v3164
    %v3208 = vpop.f32.mrf.mxu0
    %v3209 = vadd.f32 0.0, %v3208
    %v3210 = vpop.f32.mrf.mxu0
    %v3211 = vpop.f32.mrf.mxu0
    %v3212 = vpop.f32.mrf.mxu0
    %3213 = vdwg.mxu0
    %v3214 = vmul.f32 %v3201, %v3145
    %v3215 = vmul.f32 %v3204, %v3146
    %v3216 = vmul.f32 %v3209, %v3147
    %v3217 = vpack.c.bf16 %v3137, %v3136
    %v3218 = vpack.c.bf16 %v3138, %v3138
    %3220 = vrot.lane.b32.xlu0 %v3159, 120
    %v3221 = vpop.permute.xlu0 %3220
    %v3224 = vsel %vm226, %v3217, 0
    %v3227 = vsel %vm226, %v3218, 0
    %3229 = vmatprep.subr.bf16.mxu0 0
    %3230 = vmatpush1.bf16.msra.mxu0 0
    %3231 = vmatprep.subr.bf16.mxu0 0
    %3232 = vmatpush1.bf16.msra.mxu0 0
    %3233 = vmatprep.subr.bf16.mxu0 0
    %3234 = vmatpush1.bf16.msra.mxu0 0
    %3235 = vmatprep.subr.bf16.mxu0 0
    %3236 = vmatpush1.bf16.msra.mxu0 0
    %3237 = vmatprep.subr.bf16.mxu0 0
    %3238 = vmatpush1.bf16.msra.mxu0 0
    %3239 = vmatprep.subr.bf16.mxu0 0
    %3240 = vmatpush1.bf16.msra.mxu0 0
    %3241 = vmatprep.subr.bf16.mxu0 0
    %3242 = vmatpush1.bf16.msra.mxu0 0
    %3243 = vmatprep.subr.bf16.mxu0 0
    %3244 = vmatpush1.bf16.msra.mxu0 %v3221
    %3245 = vmatprep.subr.bf16.mxu0 0
    %3246 = vmatpush2.bf16.msra.mxu0 0
    %3247 = vmatprep.subr.bf16.mxu0 0
    %3248 = vmatpush2.bf16.msra.mxu0 0
    %3249 = vmatprep.subr.bf16.mxu0 0
    %3250 = vmatpush2.bf16.msra.mxu0 0
    %3251 = vmatprep.subr.bf16.mxu0 0
    %3252 = vmatpush2.bf16.msra.mxu0 0
    %3253 = vmatprep.subr.bf16.mxu0 0
    %3254 = vmatpush2.bf16.msra.mxu0 0
    %3255 = vmatprep.subr.bf16.mxu0 0
    %3256 = vmatpush2.bf16.msra.mxu0 0
    %3257 = vmatprep.subr.bf16.mxu0 0
    %3258 = vmatpush2.bf16.msra.mxu0 0
    %3259 = vmatprep.subr.bf16.mxu0 0
    %3260 = vmatpush2.bf16.msra.mxu0 0
    %3261 = vmatprep.mubr.bf16.mxu0 0
    %3262 = vmatmul.mubr.bf16.gmra.mxu0 %v3224
    %v3263 = vpop.f32.mrf.mxu0
    %v3264 = vadd.f32 0.0, %v3263
    %v3265 = vpop.f32.mrf.mxu0
    %v3266 = vpop.f32.mrf.mxu0
    %v3267 = vadd.f32 0.0, %v3266
    %v3268 = vpop.f32.mrf.mxu0
    %3269 = vmatprep.mubr.bf16.mxu0 0
    %3270 = vmatmul.mubr.bf16.gmra.mxu0 %v3227
    %v3271 = vpop.f32.mrf.mxu0
    %v3272 = vadd.f32 0.0, %v3271
    %v3273 = vpop.f32.mrf.mxu0
    %v3274 = vpop.f32.mrf.mxu0
    %v3275 = vpop.f32.mrf.mxu0
    %3276 = vdwg.mxu0
    %v3277 = vmul.f32 %v3264, %v3148
    %v3278 = vmul.f32 %v3267, %v3149
    %v3279 = vmul.f32 %v3272, %v3150
    %v3280 = vpack.c.bf16 %v3140, %v3139
    %v3281 = vpack.c.bf16 %v3141, %v3141
    %3282 = vrot.lane.b32.xlu0 %v3159, 112
    %v3283 = vpop.permute.xlu0 %3282
    %v3286 = vsel %vm226, %v3280, 0
    %v3289 = vsel %vm226, %v3281, 0
    %3291 = vmatprep.subr.bf16.mxu0 0
    %3292 = vmatpush1.bf16.msra.mxu0 0
    %3293 = vmatprep.subr.bf16.mxu0 0
    %3294 = vmatpush1.bf16.msra.mxu0 0
    %3295 = vmatprep.subr.bf16.mxu0 0
    %3296 = vmatpush1.bf16.msra.mxu0 0
    %3297 = vmatprep.subr.bf16.mxu0 0
    %3298 = vmatpush1.bf16.msra.mxu0 0
    %3299 = vmatprep.subr.bf16.mxu0 0
    %3300 = vmatpush1.bf16.msra.mxu0 0
    %3301 = vmatprep.subr.bf16.mxu0 0
    %3302 = vmatpush1.bf16.msra.mxu0 0
    %3303 = vmatprep.subr.bf16.mxu0 0
    %3304 = vmatpush1.bf16.msra.mxu0 0
    %3305 = vmatprep.subr.bf16.mxu0 0
    %3306 = vmatpush1.bf16.msra.mxu0 %v3283
    %3307 = vmatprep.subr.bf16.mxu0 0
    %3308 = vmatpush2.bf16.msra.mxu0 0
    %3309 = vmatprep.subr.bf16.mxu0 0
    %3310 = vmatpush2.bf16.msra.mxu0 0
    %3311 = vmatprep.subr.bf16.mxu0 0
    %3312 = vmatpush2.bf16.msra.mxu0 0
    %3313 = vmatprep.subr.bf16.mxu0 0
    %3314 = vmatpush2.bf16.msra.mxu0 0
    %3315 = vmatprep.subr.bf16.mxu0 0
    %3316 = vmatpush2.bf16.msra.mxu0 0
    %3317 = vmatprep.subr.bf16.mxu0 0
    %3318 = vmatpush2.bf16.msra.mxu0 0
    %3319 = vmatprep.subr.bf16.mxu0 0
    %3320 = vmatpush2.bf16.msra.mxu0 0
    %3321 = vmatprep.subr.bf16.mxu0 0
    %3322 = vmatpush2.bf16.msra.mxu0 0
    %3323 = vmatprep.mubr.bf16.mxu0 0
    %3324 = vmatmul.mubr.bf16.gmra.mxu0 %v3286
    %v3325 = vpop.f32.mrf.mxu0
    %v3326 = vadd.f32 0.0, %v3325
    %v3327 = vpop.f32.mrf.mxu0
    %v3328 = vpop.f32.mrf.mxu0
    %v3329 = vadd.f32 0.0, %v3328
    %v3330 = vpop.f32.mrf.mxu0
    %3331 = vmatprep.mubr.bf16.mxu0 0
    %3332 = vmatmul.mubr.bf16.gmra.mxu0 %v3289
    %v3333 = vpop.f32.mrf.mxu0
    %v3334 = vadd.f32 0.0, %v3333
    %v3335 = vpop.f32.mrf.mxu0
    %v3336 = vpop.f32.mrf.mxu0
    %v3337 = vpop.f32.mrf.mxu0
    %3338 = vdwg.mxu0
    %v3339 = vmul.f32 %v3326, %v3151
    %v3340 = vmul.f32 %v3329, %v3152
    %v3341 = vmul.f32 %v3334, %v3153
    %v3342 = vpack.c.bf16 %v3143, %v3142
    %v3343 = vpack.c.bf16 %v3144, %v3144
    %3344 = vrot.lane.b32.xlu0 %v3159, 104
    %v3345 = vpop.permute.xlu0 %3344
    %v3348 = vsel %vm226, %v3342, 0
    %v3351 = vsel %vm226, %v3343, 0
    %3353 = vmatprep.subr.bf16.mxu0 0
    %3354 = vmatpush1.bf16.msra.mxu0 0
    %3355 = vmatprep.subr.bf16.mxu0 0
    %3356 = vmatpush1.bf16.msra.mxu0 0
    %3357 = vmatprep.subr.bf16.mxu0 0
    %3358 = vmatpush1.bf16.msra.mxu0 0
    %3359 = vmatprep.subr.bf16.mxu0 0
    %3360 = vmatpush1.bf16.msra.mxu0 0
    %3361 = vmatprep.subr.bf16.mxu0 0
    %3362 = vmatpush1.bf16.msra.mxu0 0
    %3363 = vmatprep.subr.bf16.mxu0 0
    %3364 = vmatpush1.bf16.msra.mxu0 0
    %3365 = vmatprep.subr.bf16.mxu0 0
    %3366 = vmatpush1.bf16.msra.mxu0 0
    %3367 = vmatprep.subr.bf16.mxu0 0
    %3368 = vmatpush1.bf16.msra.mxu0 %v3345
    %3369 = vmatprep.subr.bf16.mxu0 0
    %3370 = vmatpush2.bf16.msra.mxu0 0
    %3371 = vmatprep.subr.bf16.mxu0 0
    %3372 = vmatpush2.bf16.msra.mxu0 0
    %3373 = vmatprep.subr.bf16.mxu0 0
    %3374 = vmatpush2.bf16.msra.mxu0 0
    %3375 = vmatprep.subr.bf16.mxu0 0
    %3376 = vmatpush2.bf16.msra.mxu0 0
    %3377 = vmatprep.subr.bf16.mxu0 0
    %3378 = vmatpush2.bf16.msra.mxu0 0
    %3379 = vmatprep.subr.bf16.mxu0 0
    %3380 = vmatpush2.bf16.msra.mxu0 0
    %3381 = vmatprep.subr.bf16.mxu0 0
    %3382 = vmatpush2.bf16.msra.mxu0 0
    %3383 = vmatprep.subr.bf16.mxu0 0
    %3384 = vmatpush2.bf16.msra.mxu0 0
    %3385 = vmatprep.mubr.bf16.mxu0 0
    %3386 = vmatmul.mubr.bf16.gmra.mxu0 %v3348
    %v3387 = vpop.f32.mrf.mxu0
    %v3388 = vadd.f32 0.0, %v3387
    %v3389 = vpop.f32.mrf.mxu0
    %v3390 = vpop.f32.mrf.mxu0
    %v3391 = vadd.f32 0.0, %v3390
    %v3392 = vpop.f32.mrf.mxu0
    %3393 = vmatprep.mubr.bf16.mxu0 0
    %3394 = vmatmul.mubr.bf16.gmra.mxu0 %v3351
    %v3395 = vpop.f32.mrf.mxu0
    %v3396 = vadd.f32 0.0, %v3395
    %v3397 = vpop.f32.mrf.mxu0
    %v3398 = vpop.f32.mrf.mxu0
    %v3399 = vpop.f32.mrf.mxu0
    %3400 = vdwg.mxu0
    %v3401 = vmul.f32 %v3388, %v3154
    %v3402 = vmul.f32 %v3391, %v3155
    %v3403 = vmul.f32 %v3396, %v3156
    %3407 = vrot.lane.b32.xlu0 %v3277, 8
    %v3408 = vpop.permute.xlu0 %3407
    %3409 = vrot.lane.b32.xlu0 %v3278, 8
    %v3410 = vpop.permute.xlu0 %3409
    %3411 = vrot.lane.b32.xlu0 %v3279, 8
    %v3412 = vpop.permute.xlu0 %3411
    %3419 = vrot.lane.b32.xlu0 %v3339, 16
    %v3420 = vpop.permute.xlu0 %3419
    %3421 = vrot.lane.b32.xlu0 %v3340, 16
    %v3422 = vpop.permute.xlu0 %3421
    %3423 = vrot.lane.b32.xlu0 %v3341, 16
    %v3424 = vpop.permute.xlu0 %3423
    %3431 = vrot.lane.b32.xlu0 %v3401, 24
    %v3432 = vpop.permute.xlu0 %3431
    %3433 = vrot.lane.b32.xlu0 %v3402, 24
    %v3434 = vpop.permute.xlu0 %3433
    %3435 = vrot.lane.b32.xlu0 %v3403, 24
    %v3436 = vpop.permute.xlu0 %3435
    %v3440 = vsel %vm1124, %v3214, %v3408
    %v3441 = vsel %vm1124, %v3215, %v3410
    %v3442 = vsel %vm1124, %v3216, %v3412
    %v3443 = vsel %vm226, %v3440, %v3420
    %v3444 = vsel %vm226, %v3441, %v3422
    %v3445 = vsel %vm226, %v3442, %v3424
    %v3446 = vsel %vm251, %v3443, %v3432
    %v3447 = vsel %vm251, %v3444, %v3434
    %v3448 = vsel %vm251, %v3445, %v3436
    %v3449 = vmax.f32 %v3446, 0.0
    %v3450 = vmax.f32 %v3447, 0.0
    %v3451 = vmax.f32 %v3448, 0.0
    %3452 = vrot.lane.b32.xlu0 %v2763, 92
    %v3453 = vpop.permute.xlu0 %3452
    %3454 = vrot.lane.b32.xlu0 %v2766, 92
    %v3455 = vpop.permute.xlu0 %3454
    %3456 = vrot.lane.b32.xlu0 %v2771, 92
    %v3457 = vpop.permute.xlu0 %3456
    %3461 = vxpose.xlu0.b32.start [1/16] %v3453, 128
    %3462 = vxpose.xlu0.b32.cont [2/16] %v3455, 128
    %3463 = vxpose.xlu0.b32.cont [3/16] %v3457, 128
    %3464 = vxpose.xlu0.b32.cont [4/16] 0.0, 128
    %3465 = vxpose.xlu0.b32.cont [5/16] 0.0, 128
    %3466 = vxpose.xlu0.b32.cont [6/16] 0.0, 128
    %3467 = vxpose.xlu0.b32.cont [7/16] 0.0, 128
    %3468 = vxpose.xlu0.b32.cont [8/16] 0.0, 128
    %3469 = vxpose.xlu0.b32.cont [9/16] 0.0, 128
    %3470 = vxpose.xlu0.b32.cont [10/16] 0.0, 128
    %3471 = vxpose.xlu0.b32.cont [11/16] 0.0, 128
    %3472 = vxpose.xlu0.b32.cont [12/16] 0.0, 128
    %3473 = vxpose.xlu0.b32.cont [13/16] 0.0, 128
    %3474 = vxpose.xlu0.b32.cont [14/16] 0.0, 128
    %3475 = vxpose.xlu0.b32.cont [15/16] 0.0, 128
    %3476 = vxpose.xlu0.b32.end [16/16] 0.0, 128
    %v3477 = vpop.trf.xlu0
    %v3478 = vpop.trf.xlu0
    %v3479 = vpop.trf.xlu0
    %v3480 = vpop.trf.xlu0
    %v3481 = vpop.trf.xlu0
    %v3482 = vpop.trf.xlu0
    %v3483 = vpop.trf.xlu0
    %v3484 = vpop.trf.xlu0
    %v3485 = vpop.trf.xlu0
    %v3486 = vpop.trf.xlu0
    %v3487 = vpop.trf.xlu0
    %v3488 = vpop.trf.xlu0
    %v3489 = vpop.trf.xlu0
    %v3490 = vpop.trf.xlu0
    %v3491 = vpop.trf.xlu0
    %v3492 = vpop.trf.xlu0
    %3493 = vrot.lane.b32.xlu0 %v2693, 80
    %v3494 = vpop.permute.xlu0 %3493
    %3495 = vrot.lane.b32.xlu0 %v2696, 80
    %v3496 = vpop.permute.xlu0 %3495
    %3499 = vxpose.xlu0.b32.start [1/16] %v3494, 128
    %3500 = vxpose.xlu0.b32.cont [2/16] %v3496, 128
    %3501 = vxpose.xlu0.b32.cont [3/16] 0.0, 128
    %3502 = vxpose.xlu0.b32.cont [4/16] 0.0, 128
    %3503 = vxpose.xlu0.b32.cont [5/16] 0.0, 128
    %3504 = vxpose.xlu0.b32.cont [6/16] 0.0, 128
    %3505 = vxpose.xlu0.b32.cont [7/16] 0.0, 128
    %3506 = vxpose.xlu0.b32.cont [8/16] 0.0, 128
    %3507 = vxpose.xlu0.b32.cont [9/16] 0.0, 128
    %3508 = vxpose.xlu0.b32.cont [10/16] 0.0, 128
    %3509 = vxpose.xlu0.b32.cont [11/16] 0.0, 128
    %3510 = vxpose.xlu0.b32.cont [12/16] 0.0, 128
    %3511 = vxpose.xlu0.b32.cont [13/16] 0.0, 128
    %3512 = vxpose.xlu0.b32.cont [14/16] 0.0, 128
    %3513 = vxpose.xlu0.b32.cont [15/16] 0.0, 128
    %3514 = vxpose.xlu0.b32.end [16/16] 0.0, 128
    %v3515 = vpop.trf.xlu0
    %v3516 = vpop.trf.xlu0
    %v3517 = vpop.trf.xlu0
    %v3518 = vpop.trf.xlu0
    %v3519 = vpop.trf.xlu0
    %v3520 = vpop.trf.xlu0
    %v3521 = vpop.trf.xlu0
    %v3522 = vpop.trf.xlu0
    %v3523 = vpop.trf.xlu0
    %v3524 = vpop.trf.xlu0
    %v3525 = vpop.trf.xlu0
    %v3526 = vpop.trf.xlu0
    %v3527 = vpop.trf.xlu0
    %v3528 = vpop.trf.xlu0
    %v3529 = vpop.trf.xlu0
    %v3530 = vpop.trf.xlu0
    %v3531 = vlaneseq
    %v3532 = vshrl.u32 %v3531, 7
    %v3533 = vsub.s32 0, %v3532
    %v3534 = vrot.slane %v3515, %v3533
    %3536 = vbcast.lane.b32.xlu0 %v3534, 256
    %v3537 = vpop.permute.xlu0 %3536
    %s3539 = sor.u32 256, 8
    %3540 = vbcast.lane.b32.xlu0 %v3534, %s3539
    %v3541 = vpop.permute.xlu0 %3540
    %v3542 = vlaneseq
    %v3543 = vshrl.u32 %v3542, 7
    %v3544 = vsub.s32 1, %v3543
    %v3545 = vrot.slane %v3515, %v3544
    %3547 = vbcast.lane.b32.xlu0 %v3545, 256
    %v3548 = vpop.permute.xlu0 %3547
    %s3550 = sor.u32 256, 8
    %3551 = vbcast.lane.b32.xlu0 %v3545, %s3550
    %v3552 = vpop.permute.xlu0 %3551
    %v3553 = vlaneseq
    %v3554 = vshrl.u32 %v3553, 7
    %v3555 = vsub.s32 2, %v3554
    %v3556 = vrot.slane %v3515, %v3555
    %3558 = vbcast.lane.b32.xlu0 %v3556, 256
    %v3559 = vpop.permute.xlu0 %3558
    %s3561 = sor.u32 256, 8
    %3562 = vbcast.lane.b32.xlu0 %v3556, %s3561
    %v3563 = vpop.permute.xlu0 %3562
    %v3564 = vlaneseq
    %v3565 = vshrl.u32 %v3564, 7
    %v3566 = vsub.s32 3, %v3565
    %v3567 = vrot.slane %v3515, %v3566
    %3569 = vbcast.lane.b32.xlu0 %v3567, 256
    %v3570 = vpop.permute.xlu0 %3569
    %s3572 = sor.u32 256, 8
    %3573 = vbcast.lane.b32.xlu0 %v3567, %s3572
    %v3574 = vpop.permute.xlu0 %3573
    %v3577 = vunpack.c.l.s4 1966171168
    %v3578 = vunpack.c.0.s8 %v3577
    %v3579 = vlaneseq
    %v3580 = vshrl.u32 %v3579, 7
    %v3581 = vsub.s32 %v3578, %v3580
    %v3582 = vrot.slane %v3477, %v3581
    %v3583 = vcombine.high %v3582, %v3582
    %v3585 = vunpack.c.l.s4 1966171168
    %v3586 = vunpack.c.0.s8 %v3585
    %v3587 = vlaneseq
    %v3588 = vshrl.u32 %v3587, 7
    %v3589 = vsub.s32 %v3586, %v3588
    %v3590 = vrot.slane %v3582, %v3589
    %v3592 = vunpack.c.l.s4 1966171168
    %v3593 = vunpack.c.0.s8 %v3592
    %v3594 = vlaneseq
    %v3595 = vshrl.u32 %v3594, 7
    %v3596 = vsub.s32 %v3593, %v3595
    %v3597 = vrot.slane %v3583, %v3596
    %v3598 = vcombine.high %v3590, %v3590
    %v3599 = vcombine.high %v3597, %v3597
    %v3600 = vlaneseq
    %v3601 = vshrl.u32 %v3600, 7
    %v3602 = vsub.s32 0, %v3601
    %v3603 = vrot.slane %v3590, %v3602
    %v3604 = vlaneseq
    %v3605 = vshrl.u32 %v3604, 7
    %v3606 = vsub.s32 0, %v3605
    %v3607 = vrot.slane %v3597, %v3606
    %v3608 = vlaneseq
    %v3609 = vshrl.u32 %v3608, 7
    %v3610 = vsub.s32 0, %v3609
    %v3611 = vrot.slane %v3598, %v3610
    %v3612 = vlaneseq
    %v3613 = vshrl.u32 %v3612, 7
    %v3614 = vsub.s32 0, %v3613
    %v3615 = vrot.slane %v3599, %v3614
    %v3620 = vadd.f32 %v3537, %v3603
    %v3621 = vadd.f32 %v3541, %v3603
    %v3622 = vadd.f32 %v3548, %v3607
    %v3623 = vadd.f32 %v3552, %v3607
    %v3624 = vadd.f32 %v3559, %v3611
    %v3625 = vadd.f32 %v3563, %v3611
    %v3626 = vadd.f32 %v3570, %v3615
    %v3627 = vadd.f32 %v3574, %v3615
    %vm3628 = vcmp.ge.f32.partialorder %v3620, 0.0
    %vm3629 = vcmp.ge.f32.partialorder %v3621, 0.0
    %vm3630 = vcmp.ge.f32.partialorder %v3622, 0.0
    %vm3631 = vcmp.ge.f32.partialorder %v3623, 0.0
    %vm3632 = vcmp.ge.f32.partialorder %v3624, 0.0
    %vm3633 = vcmp.ge.f32.partialorder %v3625, 0.0
    %vm3634 = vcmp.ge.f32.partialorder %v3626, 0.0
    %vm3635 = vcmp.ge.f32.partialorder %v3627, 0.0
    %v3636 = vmul.f32 %v3620, 0.2
    %v3637 = vmul.f32 %v3621, 0.2
    %v3638 = vmul.f32 %v3622, 0.2
    %v3639 = vmul.f32 %v3623, 0.2
    %v3640 = vmul.f32 %v3624, 0.2
    %v3641 = vmul.f32 %v3625, 0.2
    %v3642 = vmul.f32 %v3626, 0.2
    %v3643 = vmul.f32 %v3627, 0.2
    %v3644 = vsel %vm3628, %v3620, %v3636
    %v3645 = vsel %vm3629, %v3621, %v3637
    %v3646 = vsel %vm3630, %v3622, %v3638
    %v3647 = vsel %vm3631, %v3623, %v3639
    %v3648 = vsel %vm3632, %v3624, %v3640
    %v3649 = vsel %vm3633, %v3625, %v3641
    %v3650 = vsel %vm3634, %v3626, %v3642
    %v3651 = vsel %vm3635, %v3627, %v3643
    %v3652 = vsel %vm1339, %v3644, -1e+30
    %v3653 = vsel %vm1340, %v3645, -1e+30
    %v3654 = vsel %vm1339, %v3646, -1e+30
    %v3655 = vsel %vm1340, %v3647, -1e+30
    %v3656 = vsel %vm1339, %v3648, -1e+30
    %v3657 = vsel %vm1340, %v3649, -1e+30
    %v3658 = vsel %vm1339, %v3650, -1e+30
    %v3659 = vsel %vm1340, %v3651, -1e+30
    %v3660 = vsel %vm251, %v3652, -inf
    %3661 = vmax.xlane.f32.xlu0 %v3660
    %v3662 = vpop.xlane.xlu0 %3661
    %v3663 = vsel %vm251, %v3653, -inf
    %3664 = vmax.xlane.f32.xlu0 %v3663
    %v3665 = vpop.xlane.xlu0 %3664
    %v3666 = vsel %vm251, %v3654, -inf
    %3667 = vmax.xlane.f32.xlu0 %v3666
    %v3668 = vpop.xlane.xlu0 %3667
    %v3669 = vsel %vm251, %v3655, -inf
    %3670 = vmax.xlane.f32.xlu0 %v3669
    %v3671 = vpop.xlane.xlu0 %3670
    %v3672 = vsel %vm251, %v3656, -inf
    %3673 = vmax.xlane.f32.xlu0 %v3672
    %v3674 = vpop.xlane.xlu0 %3673
    %v3675 = vsel %vm251, %v3657, -inf
    %3676 = vmax.xlane.f32.xlu0 %v3675
    %v3677 = vpop.xlane.xlu0 %3676
    %v3678 = vsel %vm251, %v3658, -inf
    %3679 = vmax.xlane.f32.xlu0 %v3678
    %v3680 = vpop.xlane.xlu0 %3679
    %v3681 = vsel %vm251, %v3659, -inf
    %3682 = vmax.xlane.f32.xlu0 %v3681
    %v3683 = vpop.xlane.xlu0 %3682
    %v3684 = vsub.f32 %v3652, %v3662
    %v3685 = vsub.f32 %v3653, %v3665
    %v3686 = vsub.f32 %v3654, %v3668
    %v3687 = vsub.f32 %v3655, %v3671
    %v3688 = vsub.f32 %v3656, %v3674
    %v3689 = vsub.f32 %v3657, %v3677
    %v3690 = vsub.f32 %v3658, %v3680
    %v3691 = vsub.f32 %v3659, %v3683
    %v3692 = vmul.f32 %v3684, 1.442695
    %v3693 = vpow.pop %v3692
    %v3694 = vmul.f32 %v3685, 1.442695
    %v3695 = vpow.pop %v3694
    %v3696 = vmul.f32 %v3686, 1.442695
    %v3697 = vpow.pop %v3696
    %v3698 = vmul.f32 %v3687, 1.442695
    %v3699 = vpow.pop %v3698
    %v3700 = vmul.f32 %v3688, 1.442695
    %v3701 = vpow.pop %v3700
    %v3702 = vmul.f32 %v3689, 1.442695
    %v3703 = vpow.pop %v3702
    %v3704 = vmul.f32 %v3690, 1.442695
    %v3705 = vpow.pop %v3704
    %v3706 = vmul.f32 %v3691, 1.442695
    %v3707 = vpow.pop %v3706
    %v3708 = vsel %vm251, %v3693, 0.0
    %3709 = vadd.xlane.f32.xlu0 %v3708
    %v3710 = vpop.xlane.xlu0 %3709
    %v3711 = vsel %vm251, %v3695, 0.0
    %3712 = vadd.xlane.f32.xlu0 %v3711
    %v3713 = vpop.xlane.xlu0 %3712
    %v3714 = vsel %vm251, %v3697, 0.0
    %3715 = vadd.xlane.f32.xlu0 %v3714
    %v3716 = vpop.xlane.xlu0 %3715
    %v3717 = vsel %vm251, %v3699, 0.0
    %3718 = vadd.xlane.f32.xlu0 %v3717
    %v3719 = vpop.xlane.xlu0 %3718
    %v3720 = vsel %vm251, %v3701, 0.0
    %3721 = vadd.xlane.f32.xlu0 %v3720
    %v3722 = vpop.xlane.xlu0 %3721
    %v3723 = vsel %vm251, %v3703, 0.0
    %3724 = vadd.xlane.f32.xlu0 %v3723
    %v3725 = vpop.xlane.xlu0 %3724
    %v3726 = vsel %vm251, %v3705, 0.0
    %3727 = vadd.xlane.f32.xlu0 %v3726
    %v3728 = vpop.xlane.xlu0 %3727
    %v3729 = vsel %vm251, %v3707, 0.0
    %3730 = vadd.xlane.f32.xlu0 %v3729
    %v3731 = vpop.xlane.xlu0 %3730
    %v3732 = vmul.f32 %v3693, %v262
    %v3733 = vmul.f32 %v3695, %v263
    %v3734 = vmul.f32 %v3697, %v262
    %v3735 = vmul.f32 %v3699, %v263
    %v3736 = vmul.f32 %v3701, %v262
    %v3737 = vmul.f32 %v3703, %v263
    %v3738 = vmul.f32 %v3705, %v262
    %v3739 = vmul.f32 %v3707, %v263
    %v3740 = vrcp.pop %v3710
    %v3741 = vrcp.pop %v3713
    %v3742 = vrcp.pop %v3716
    %v3743 = vrcp.pop %v3719
    %v3744 = vrcp.pop %v3722
    %v3745 = vrcp.pop %v3725
    %v3746 = vrcp.pop %v3728
    %v3747 = vrcp.pop %v3731
    %v3748 = vpack.c.bf16 %v3733, %v3732
    %v3749 = vpack.c.bf16 %v2766, %v2763
    %v3750 = vpack.c.bf16 %v2771, %v2771
    %v3752 = vsel %vm251, %v3748, 0
    %v3755 = vsel %vm1443, %v3750, 0
    %3757 = vmatprep.subr.bf16.mxu0 0
    %3758 = vmatpush1.bf16.msra.mxu0 0
    %3759 = vmatprep.subr.bf16.mxu0 0
    %3760 = vmatpush1.bf16.msra.mxu0 0
    %3761 = vmatprep.subr.bf16.mxu0 0
    %3762 = vmatpush1.bf16.msra.mxu0 0
    %3763 = vmatprep.subr.bf16.mxu0 0
    %3764 = vmatpush1.bf16.msra.mxu0 0
    %3765 = vmatprep.subr.bf16.mxu0 0
    %3766 = vmatpush1.bf16.msra.mxu0 0
    %3767 = vmatprep.subr.bf16.mxu0 0
    %3768 = vmatpush1.bf16.msra.mxu0 0
    %3769 = vmatprep.subr.bf16.mxu0 0
    %3770 = vmatpush1.bf16.msra.mxu0 %v3755
    %3771 = vmatprep.subr.bf16.mxu0 0
    %3772 = vmatpush1.bf16.msra.mxu0 %v3749
    %3773 = vmatprep.subr.bf16.mxu0 0
    %3774 = vmatpush2.bf16.msra.mxu0 0
    %3775 = vmatprep.subr.bf16.mxu0 0
    %3776 = vmatpush2.bf16.msra.mxu0 0
    %3777 = vmatprep.subr.bf16.mxu0 0
    %3778 = vmatpush2.bf16.msra.mxu0 0
    %3779 = vmatprep.subr.bf16.mxu0 0
    %3780 = vmatpush2.bf16.msra.mxu0 0
    %3781 = vmatprep.subr.bf16.mxu0 0
    %3782 = vmatpush2.bf16.msra.mxu0 0
    %3783 = vmatprep.subr.bf16.mxu0 0
    %3784 = vmatpush2.bf16.msra.mxu0 0
    %3785 = vmatprep.subr.bf16.mxu0 0
    %3786 = vmatpush2.bf16.msra.mxu0 0
    %3787 = vmatprep.subr.bf16.mxu0 0
    %3788 = vmatpush2.bf16.msra.mxu0 0
    %3789 = vmatprep.mubr.bf16.mxu0 0
    %3790 = vmatmul.mubr.bf16.gmra.mxu0 %v3752
    %v3791 = vpop.f32.mrf.mxu0
    %v3792 = vadd.f32 0.0, %v3791
    %v3793 = vpop.f32.mrf.mxu0
    %v3794 = vpop.f32.mrf.mxu0
    %v3795 = vadd.f32 0.0, %v3794
    %v3796 = vpop.f32.mrf.mxu0
    %3797 = vdwg.mxu0
    %v3798 = vmul.f32 %v3792, %v3740
    %v3799 = vmul.f32 %v3795, %v3741
    %v3800 = vpack.c.bf16 %v3735, %v3734
    %3803 = vrot.lane.b32.xlu0 %v3749, 120
    %v3804 = vpop.permute.xlu0 %3803
    %3805 = vrot.lane.b32.xlu0 %v3750, 120
    %v3806 = vpop.permute.xlu0 %3805
    %v3809 = vsel %vm251, %v3800, 0
    %v3812 = vsel %vm1443, %v3806, 0
    %3814 = vmatprep.subr.bf16.mxu0 0
    %3815 = vmatpush1.bf16.msra.mxu0 0
    %3816 = vmatprep.subr.bf16.mxu0 0
    %3817 = vmatpush1.bf16.msra.mxu0 0
    %3818 = vmatprep.subr.bf16.mxu0 0
    %3819 = vmatpush1.bf16.msra.mxu0 0
    %3820 = vmatprep.subr.bf16.mxu0 0
    %3821 = vmatpush1.bf16.msra.mxu0 0
    %3822 = vmatprep.subr.bf16.mxu0 0
    %3823 = vmatpush1.bf16.msra.mxu0 0
    %3824 = vmatprep.subr.bf16.mxu0 0
    %3825 = vmatpush1.bf16.msra.mxu0 0
    %3826 = vmatprep.subr.bf16.mxu0 0
    %3827 = vmatpush1.bf16.msra.mxu0 %v3812
    %3828 = vmatprep.subr.bf16.mxu0 0
    %3829 = vmatpush1.bf16.msra.mxu0 %v3804
    %3830 = vmatprep.subr.bf16.mxu0 0
    %3831 = vmatpush2.bf16.msra.mxu0 0
    %3832 = vmatprep.subr.bf16.mxu0 0
    %3833 = vmatpush2.bf16.msra.mxu0 0
    %3834 = vmatprep.subr.bf16.mxu0 0
    %3835 = vmatpush2.bf16.msra.mxu0 0
    %3836 = vmatprep.subr.bf16.mxu0 0
    %3837 = vmatpush2.bf16.msra.mxu0 0
    %3838 = vmatprep.subr.bf16.mxu0 0
    %3839 = vmatpush2.bf16.msra.mxu0 0
    %3840 = vmatprep.subr.bf16.mxu0 0
    %3841 = vmatpush2.bf16.msra.mxu0 0
    %3842 = vmatprep.subr.bf16.mxu0 0
    %3843 = vmatpush2.bf16.msra.mxu0 0
    %3844 = vmatprep.subr.bf16.mxu0 0
    %3845 = vmatpush2.bf16.msra.mxu0 0
    %3846 = vmatprep.mubr.bf16.mxu0 0
    %3847 = vmatmul.mubr.bf16.gmra.mxu0 %v3809
    %v3848 = vpop.f32.mrf.mxu0
    %v3849 = vadd.f32 0.0, %v3848
    %v3850 = vpop.f32.mrf.mxu0
    %v3851 = vpop.f32.mrf.mxu0
    %v3852 = vadd.f32 0.0, %v3851
    %v3853 = vpop.f32.mrf.mxu0
    %3854 = vdwg.mxu0
    %v3855 = vmul.f32 %v3849, %v3742
    %v3856 = vmul.f32 %v3852, %v3743
    %v3857 = vpack.c.bf16 %v3737, %v3736
    %3858 = vrot.lane.b32.xlu0 %v3749, 112
    %v3859 = vpop.permute.xlu0 %3858
    %3860 = vrot.lane.b32.xlu0 %v3750, 112
    %v3861 = vpop.permute.xlu0 %3860
    %v3864 = vsel %vm251, %v3857, 0
    %v3867 = vsel %vm1443, %v3861, 0
    %3869 = vmatprep.subr.bf16.mxu0 0
    %3870 = vmatpush1.bf16.msra.mxu0 0
    %3871 = vmatprep.subr.bf16.mxu0 0
    %3872 = vmatpush1.bf16.msra.mxu0 0
    %3873 = vmatprep.subr.bf16.mxu0 0
    %3874 = vmatpush1.bf16.msra.mxu0 0
    %3875 = vmatprep.subr.bf16.mxu0 0
    %3876 = vmatpush1.bf16.msra.mxu0 0
    %3877 = vmatprep.subr.bf16.mxu0 0
    %3878 = vmatpush1.bf16.msra.mxu0 0
    %3879 = vmatprep.subr.bf16.mxu0 0
    %3880 = vmatpush1.bf16.msra.mxu0 0
    %3881 = vmatprep.subr.bf16.mxu0 0
    %3882 = vmatpush1.bf16.msra.mxu0 %v3867
    %3883 = vmatprep.subr.bf16.mxu0 0
    %3884 = vmatpush1.bf16.msra.mxu0 %v3859
    %3885 = vmatprep.subr.bf16.mxu0 0
    %3886 = vmatpush2.bf16.msra.mxu0 0
    %3887 = vmatprep.subr.bf16.mxu0 0
    %3888 = vmatpush2.bf16.msra.mxu0 0
    %3889 = vmatprep.subr.bf16.mxu0 0
    %3890 = vmatpush2.bf16.msra.mxu0 0
    %3891 = vmatprep.subr.bf16.mxu0 0
    %3892 = vmatpush2.bf16.msra.mxu0 0
    %3893 = vmatprep.subr.bf16.mxu0 0
    %3894 = vmatpush2.bf16.msra.mxu0 0
    %3895 = vmatprep.subr.bf16.mxu0 0
    %3896 = vmatpush2.bf16.msra.mxu0 0
    %3897 = vmatprep.subr.bf16.mxu0 0
    %3898 = vmatpush2.bf16.msra.mxu0 0
    %3899 = vmatprep.subr.bf16.mxu0 0
    %3900 = vmatpush2.bf16.msra.mxu0 0
    %3901 = vmatprep.mubr.bf16.mxu0 0
    %3902 = vmatmul.mubr.bf16.gmra.mxu0 %v3864
    %v3903 = vpop.f32.mrf.mxu0
    %v3904 = vadd.f32 0.0, %v3903
    %v3905 = vpop.f32.mrf.mxu0
    %v3906 = vpop.f32.mrf.mxu0
    %v3907 = vadd.f32 0.0, %v3906
    %v3908 = vpop.f32.mrf.mxu0
    %3909 = vdwg.mxu0
    %v3910 = vmul.f32 %v3904, %v3744
    %v3911 = vmul.f32 %v3907, %v3745
    %v3912 = vpack.c.bf16 %v3739, %v3738
    %3913 = vrot.lane.b32.xlu0 %v3749, 104
    %v3914 = vpop.permute.xlu0 %3913
    %3915 = vrot.lane.b32.xlu0 %v3750, 104
    %v3916 = vpop.permute.xlu0 %3915
    %v3919 = vsel %vm251, %v3912, 0
    %v3922 = vsel %vm1443, %v3916, 0
    %3924 = vmatprep.subr.bf16.mxu0 0
    %3925 = vmatpush1.bf16.msra.mxu0 0
    %3926 = vmatprep.subr.bf16.mxu0 0
    %3927 = vmatpush1.bf16.msra.mxu0 0
    %3928 = vmatprep.subr.bf16.mxu0 0
    %3929 = vmatpush1.bf16.msra.mxu0 0
    %3930 = vmatprep.subr.bf16.mxu0 0
    %3931 = vmatpush1.bf16.msra.mxu0 0
    %3932 = vmatprep.subr.bf16.mxu0 0
    %3933 = vmatpush1.bf16.msra.mxu0 0
    %3934 = vmatprep.subr.bf16.mxu0 0
    %3935 = vmatpush1.bf16.msra.mxu0 0
    %3936 = vmatprep.subr.bf16.mxu0 0
    %3937 = vmatpush1.bf16.msra.mxu0 %v3922
    %3938 = vmatprep.subr.bf16.mxu0 0
    %3939 = vmatpush1.bf16.msra.mxu0 %v3914
    %3940 = vmatprep.subr.bf16.mxu0 0
    %3941 = vmatpush2.bf16.msra.mxu0 0
    %3942 = vmatprep.subr.bf16.mxu0 0
    %3943 = vmatpush2.bf16.msra.mxu0 0
    %3944 = vmatprep.subr.bf16.mxu0 0
    %3945 = vmatpush2.bf16.msra.mxu0 0
    %3946 = vmatprep.subr.bf16.mxu0 0
    %3947 = vmatpush2.bf16.msra.mxu0 0
    %3948 = vmatprep.subr.bf16.mxu0 0
    %3949 = vmatpush2.bf16.msra.mxu0 0
    %3950 = vmatprep.subr.bf16.mxu0 0
    %3951 = vmatpush2.bf16.msra.mxu0 0
    %3952 = vmatprep.subr.bf16.mxu0 0
    %3953 = vmatpush2.bf16.msra.mxu0 0
    %3954 = vmatprep.subr.bf16.mxu0 0
    %3955 = vmatpush2.bf16.msra.mxu0 0
    %3956 = vmatprep.mubr.bf16.mxu0 0
    %3957 = vmatmul.mubr.bf16.gmra.mxu0 %v3919
    %v3958 = vpop.f32.mrf.mxu0
    %v3959 = vadd.f32 0.0, %v3958
    %v3960 = vpop.f32.mrf.mxu0
    %v3961 = vpop.f32.mrf.mxu0
    %v3962 = vadd.f32 0.0, %v3961
    %v3963 = vpop.f32.mrf.mxu0
    %3964 = vdwg.mxu0
    %v3965 = vmul.f32 %v3959, %v3746
    %v3966 = vmul.f32 %v3962, %v3747
    %3969 = vrot.lane.b32.xlu0 %v3855, 8
    %v3970 = vpop.permute.xlu0 %3969
    %3971 = vrot.lane.b32.xlu0 %v3856, 8
    %v3972 = vpop.permute.xlu0 %3971
    %3977 = vrot.lane.b32.xlu0 %v3910, 16
    %v3978 = vpop.permute.xlu0 %3977
    %3979 = vrot.lane.b32.xlu0 %v3911, 16
    %v3980 = vpop.permute.xlu0 %3979
    %3985 = vrot.lane.b32.xlu0 %v3965, 24
    %v3986 = vpop.permute.xlu0 %3985
    %3987 = vrot.lane.b32.xlu0 %v3966, 24
    %v3988 = vpop.permute.xlu0 %3987
    %v3991 = vsel %vm1124, %v3798, %v3970
    %v3992 = vsel %vm1124, %v3799, %v3972
    %v3993 = vsel %vm226, %v3991, %v3978
    %v3994 = vsel %vm226, %v3992, %v3980
    %v3995 = vsel %vm251, %v3993, %v3986
    %v3996 = vsel %vm251, %v3994, %v3988
    %v3997 = vmax.f32 %v3995, 0.0
    %v3998 = vmax.f32 %v3996, 0.0
    %3999 = vrot.lane.b32.xlu0 %v2763, 88
    %v4000 = vpop.permute.xlu0 %3999
    %4001 = vrot.lane.b32.xlu0 %v2766, 88
    %v4002 = vpop.permute.xlu0 %4001
    %4003 = vrot.lane.b32.xlu0 %v2771, 88
    %v4004 = vpop.permute.xlu0 %4003
    %4008 = vxpose.xlu0.b32.start [1/16] %v4000, 128
    %4009 = vxpose.xlu0.b32.cont [2/16] %v4002, 128
    %4010 = vxpose.xlu0.b32.cont [3/16] %v4004, 128
    %4011 = vxpose.xlu0.b32.cont [4/16] 0.0, 128
    %4012 = vxpose.xlu0.b32.cont [5/16] 0.0, 128
    %4013 = vxpose.xlu0.b32.cont [6/16] 0.0, 128
    %4014 = vxpose.xlu0.b32.cont [7/16] 0.0, 128
    %4015 = vxpose.xlu0.b32.cont [8/16] 0.0, 128
    %4016 = vxpose.xlu0.b32.cont [9/16] 0.0, 128
    %4017 = vxpose.xlu0.b32.cont [10/16] 0.0, 128
    %4018 = vxpose.xlu0.b32.cont [11/16] 0.0, 128
    %4019 = vxpose.xlu0.b32.cont [12/16] 0.0, 128
    %4020 = vxpose.xlu0.b32.cont [13/16] 0.0, 128
    %4021 = vxpose.xlu0.b32.cont [14/16] 0.0, 128
    %4022 = vxpose.xlu0.b32.cont [15/16] 0.0, 128
    %4023 = vxpose.xlu0.b32.end [16/16] 0.0, 128
    %v4024 = vpop.trf.xlu0
    %v4025 = vpop.trf.xlu0
    %v4026 = vpop.trf.xlu0
    %v4027 = vpop.trf.xlu0
    %v4028 = vpop.trf.xlu0
    %v4029 = vpop.trf.xlu0
    %v4030 = vpop.trf.xlu0
    %v4031 = vpop.trf.xlu0
    %v4032 = vpop.trf.xlu0
    %v4033 = vpop.trf.xlu0
    %v4034 = vpop.trf.xlu0
    %v4035 = vpop.trf.xlu0
    %v4036 = vpop.trf.xlu0
    %v4037 = vpop.trf.xlu0
    %v4038 = vpop.trf.xlu0
    %v4039 = vpop.trf.xlu0
    %4040 = vrot.lane.b32.xlu0 %v2763, 76
    %v4041 = vpop.permute.xlu0 %4040
    %4042 = vrot.lane.b32.xlu0 %v2766, 76
    %v4043 = vpop.permute.xlu0 %4042
    %4044 = vrot.lane.b32.xlu0 %v2771, 76
    %v4045 = vpop.permute.xlu0 %4044
    %4049 = vxpose.xlu0.b32.start [1/16] %v4041, 128
    %4050 = vxpose.xlu0.b32.cont [2/16] %v4043, 128
    %4051 = vxpose.xlu0.b32.cont [3/16] %v4045, 128
    %4052 = vxpose.xlu0.b32.cont [4/16] 0.0, 128
    %4053 = vxpose.xlu0.b32.cont [5/16] 0.0, 128
    %4054 = vxpose.xlu0.b32.cont [6/16] 0.0, 128
    %4055 = vxpose.xlu0.b32.cont [7/16] 0.0, 128
    %4056 = vxpose.xlu0.b32.cont [8/16] 0.0, 128
    %4057 = vxpose.xlu0.b32.cont [9/16] 0.0, 128
    %4058 = vxpose.xlu0.b32.cont [10/16] 0.0, 128
    %4059 = vxpose.xlu0.b32.cont [11/16] 0.0, 128
    %4060 = vxpose.xlu0.b32.cont [12/16] 0.0, 128
    %4061 = vxpose.xlu0.b32.cont [13/16] 0.0, 128
    %4062 = vxpose.xlu0.b32.cont [14/16] 0.0, 128
    %4063 = vxpose.xlu0.b32.cont [15/16] 0.0, 128
    %4064 = vxpose.xlu0.b32.end [16/16] 0.0, 128
    %v4065 = vpop.trf.xlu0
    %v4066 = vpop.trf.xlu0
    %v4067 = vpop.trf.xlu0
    %v4068 = vpop.trf.xlu0
    %v4069 = vpop.trf.xlu0
    %v4070 = vpop.trf.xlu0
    %v4071 = vpop.trf.xlu0
    %v4072 = vpop.trf.xlu0
    %v4073 = vpop.trf.xlu0
    %v4074 = vpop.trf.xlu0
    %v4075 = vpop.trf.xlu0
    %v4076 = vpop.trf.xlu0
    %v4077 = vpop.trf.xlu0
    %v4078 = vpop.trf.xlu0
    %v4079 = vpop.trf.xlu0
    %v4080 = vpop.trf.xlu0
    %v4081 = vlaneseq
    %v4082 = vshrl.u32 %v4081, 7
    %v4083 = vsub.s32 0, %v4082
    %v4084 = vrot.slane %v4065, %v4083
    %4086 = vbcast.lane.b32.xlu0 %v4084, 256
    %v4087 = vpop.permute.xlu0 %4086
    %s4089 = sor.u32 256, 8
    %4090 = vbcast.lane.b32.xlu0 %v4084, %s4089
    %v4091 = vpop.permute.xlu0 %4090
    %s4093 = sor.u32 256, 16
    %4094 = vbcast.lane.b32.xlu0 %v4084, %s4093
    %v4095 = vpop.permute.xlu0 %4094
    %v4096 = vlaneseq
    %v4097 = vshrl.u32 %v4096, 7
    %v4098 = vsub.s32 1, %v4097
    %v4099 = vrot.slane %v4065, %v4098
    %4101 = vbcast.lane.b32.xlu0 %v4099, 256
    %v4102 = vpop.permute.xlu0 %4101
    %s4104 = sor.u32 256, 8
    %4105 = vbcast.lane.b32.xlu0 %v4099, %s4104
    %v4106 = vpop.permute.xlu0 %4105
    %s4108 = sor.u32 256, 16
    %4109 = vbcast.lane.b32.xlu0 %v4099, %s4108
    %v4110 = vpop.permute.xlu0 %4109
    %v4111 = vlaneseq
    %v4112 = vshrl.u32 %v4111, 7
    %v4113 = vsub.s32 2, %v4112
    %v4114 = vrot.slane %v4065, %v4113
    %4116 = vbcast.lane.b32.xlu0 %v4114, 256
    %v4117 = vpop.permute.xlu0 %4116
    %s4119 = sor.u32 256, 8
    %4120 = vbcast.lane.b32.xlu0 %v4114, %s4119
    %v4121 = vpop.permute.xlu0 %4120
    %s4123 = sor.u32 256, 16
    %4124 = vbcast.lane.b32.xlu0 %v4114, %s4123
    %v4125 = vpop.permute.xlu0 %4124
    %v4126 = vlaneseq
    %v4127 = vshrl.u32 %v4126, 7
    %v4128 = vsub.s32 3, %v4127
    %v4129 = vrot.slane %v4065, %v4128
    %4131 = vbcast.lane.b32.xlu0 %v4129, 256
    %v4132 = vpop.permute.xlu0 %4131
    %s4134 = sor.u32 256, 8
    %4135 = vbcast.lane.b32.xlu0 %v4129, %s4134
    %v4136 = vpop.permute.xlu0 %4135
    %s4138 = sor.u32 256, 16
    %4139 = vbcast.lane.b32.xlu0 %v4129, %s4138
    %v4140 = vpop.permute.xlu0 %4139
    %v4143 = vunpack.c.l.s4 1966171168
    %v4144 = vunpack.c.0.s8 %v4143
    %v4145 = vlaneseq
    %v4146 = vshrl.u32 %v4145, 7
    %v4147 = vsub.s32 %v4144, %v4146
    %v4148 = vrot.slane %v4024, %v4147
    %v4149 = vcombine.high %v4148, %v4148
    %v4151 = vunpack.c.l.s4 1966171168
    %v4152 = vunpack.c.0.s8 %v4151
    %v4153 = vlaneseq
    %v4154 = vshrl.u32 %v4153, 7
    %v4155 = vsub.s32 %v4152, %v4154
    %v4156 = vrot.slane %v4148, %v4155
    %v4158 = vunpack.c.l.s4 1966171168
    %v4159 = vunpack.c.0.s8 %v4158
    %v4160 = vlaneseq
    %v4161 = vshrl.u32 %v4160, 7
    %v4162 = vsub.s32 %v4159, %v4161
    %v4163 = vrot.slane %v4149, %v4162
    %v4164 = vcombine.high %v4156, %v4156
    %v4165 = vcombine.high %v4163, %v4163
    %v4166 = vlaneseq
    %v4167 = vshrl.u32 %v4166, 7
    %v4168 = vsub.s32 0, %v4167
    %v4169 = vrot.slane %v4156, %v4168
    %v4170 = vlaneseq
    %v4171 = vshrl.u32 %v4170, 7
    %v4172 = vsub.s32 0, %v4171
    %v4173 = vrot.slane %v4163, %v4172
    %v4174 = vlaneseq
    %v4175 = vshrl.u32 %v4174, 7
    %v4176 = vsub.s32 0, %v4175
    %v4177 = vrot.slane %v4164, %v4176
    %v4178 = vlaneseq
    %v4179 = vshrl.u32 %v4178, 7
    %v4180 = vsub.s32 0, %v4179
    %v4181 = vrot.slane %v4165, %v4180
    %v4186 = vadd.f32 %v4087, %v4169
    %v4187 = vadd.f32 %v4091, %v4169
    %v4188 = vadd.f32 %v4095, %v4169
    %v4189 = vadd.f32 %v4102, %v4173
    %v4190 = vadd.f32 %v4106, %v4173
    %v4191 = vadd.f32 %v4110, %v4173
    %v4192 = vadd.f32 %v4117, %v4177
    %v4193 = vadd.f32 %v4121, %v4177
    %v4194 = vadd.f32 %v4125, %v4177
    %v4195 = vadd.f32 %v4132, %v4181
    %v4196 = vadd.f32 %v4136, %v4181
    %v4197 = vadd.f32 %v4140, %v4181
    %vm4198 = vcmp.ge.f32.partialorder %v4186, 0.0
    %vm4199 = vcmp.ge.f32.partialorder %v4187, 0.0
    %vm4200 = vcmp.ge.f32.partialorder %v4188, 0.0
    %vm4201 = vcmp.ge.f32.partialorder %v4189, 0.0
    %vm4202 = vcmp.ge.f32.partialorder %v4190, 0.0
    %vm4203 = vcmp.ge.f32.partialorder %v4191, 0.0
    %vm4204 = vcmp.ge.f32.partialorder %v4192, 0.0
    %vm4205 = vcmp.ge.f32.partialorder %v4193, 0.0
    %vm4206 = vcmp.ge.f32.partialorder %v4194, 0.0
    %vm4207 = vcmp.ge.f32.partialorder %v4195, 0.0
    %vm4208 = vcmp.ge.f32.partialorder %v4196, 0.0
    %vm4209 = vcmp.ge.f32.partialorder %v4197, 0.0
    %v4210 = vmul.f32 %v4186, 0.2
    %v4211 = vmul.f32 %v4187, 0.2
    %v4212 = vmul.f32 %v4188, 0.2
    %v4213 = vmul.f32 %v4189, 0.2
    %v4214 = vmul.f32 %v4190, 0.2
    %v4215 = vmul.f32 %v4191, 0.2
    %v4216 = vmul.f32 %v4192, 0.2
    %v4217 = vmul.f32 %v4193, 0.2
    %v4218 = vmul.f32 %v4194, 0.2
    %v4219 = vmul.f32 %v4195, 0.2
    %v4220 = vmul.f32 %v4196, 0.2
    %v4221 = vmul.f32 %v4197, 0.2
    %v4222 = vsel %vm4198, %v4186, %v4210
    %v4223 = vsel %vm4199, %v4187, %v4211
    %v4224 = vsel %vm4200, %v4188, %v4212
    %v4225 = vsel %vm4201, %v4189, %v4213
    %v4226 = vsel %vm4202, %v4190, %v4214
    %v4227 = vsel %vm4203, %v4191, %v4215
    %v4228 = vsel %vm4204, %v4192, %v4216
    %v4229 = vsel %vm4205, %v4193, %v4217
    %v4230 = vsel %vm4206, %v4194, %v4218
    %v4231 = vsel %vm4207, %v4195, %v4219
    %v4232 = vsel %vm4208, %v4196, %v4220
    %v4233 = vsel %vm4209, %v4197, %v4221
    %v4234 = vsel %vm1927, %v4222, -1e+30
    %v4235 = vsel %vm1928, %v4223, -1e+30
    %v4236 = vsel %vm1929, %v4224, -1e+30
    %v4237 = vsel %vm1927, %v4225, -1e+30
    %v4238 = vsel %vm1928, %v4226, -1e+30
    %v4239 = vsel %vm1929, %v4227, -1e+30
    %v4240 = vsel %vm1927, %v4228, -1e+30
    %v4241 = vsel %vm1928, %v4229, -1e+30
    %v4242 = vsel %vm1929, %v4230, -1e+30
    %v4243 = vsel %vm1927, %v4231, -1e+30
    %v4244 = vsel %vm1928, %v4232, -1e+30
    %v4245 = vsel %vm1929, %v4233, -1e+30
    %v4246 = vsel %vm251, %v4234, -inf
    %4247 = vmax.xlane.f32.xlu0 %v4246
    %v4248 = vpop.xlane.xlu0 %4247
    %v4249 = vsel %vm251, %v4235, -inf
    %4250 = vmax.xlane.f32.xlu0 %v4249
    %v4251 = vpop.xlane.xlu0 %4250
    %v4252 = vsel %vm251, %v4236, -inf
    %4253 = vmax.xlane.f32.xlu0 %v4252
    %v4254 = vpop.xlane.xlu0 %4253
    %v4255 = vsel %vm251, %v4237, -inf
    %4256 = vmax.xlane.f32.xlu0 %v4255
    %v4257 = vpop.xlane.xlu0 %4256
    %v4258 = vsel %vm251, %v4238, -inf
    %4259 = vmax.xlane.f32.xlu0 %v4258
    %v4260 = vpop.xlane.xlu0 %4259
    %v4261 = vsel %vm251, %v4239, -inf
    %4262 = vmax.xlane.f32.xlu0 %v4261
    %v4263 = vpop.xlane.xlu0 %4262
    %v4264 = vsel %vm251, %v4240, -inf
    %4265 = vmax.xlane.f32.xlu0 %v4264
    %v4266 = vpop.xlane.xlu0 %4265
    %v4267 = vsel %vm251, %v4241, -inf
    %4268 = vmax.xlane.f32.xlu0 %v4267
    %v4269 = vpop.xlane.xlu0 %4268
    %v4270 = vsel %vm251, %v4242, -inf
    %4271 = vmax.xlane.f32.xlu0 %v4270
    %v4272 = vpop.xlane.xlu0 %4271
    %v4273 = vsel %vm251, %v4243, -inf
    %4274 = vmax.xlane.f32.xlu0 %v4273
    %v4275 = vpop.xlane.xlu0 %4274
    %v4276 = vsel %vm251, %v4244, -inf
    %4277 = vmax.xlane.f32.xlu0 %v4276
    %v4278 = vpop.xlane.xlu0 %4277
    %v4279 = vsel %vm251, %v4245, -inf
    %4280 = vmax.xlane.f32.xlu0 %v4279
    %v4281 = vpop.xlane.xlu0 %4280
    %v4282 = vsub.f32 %v4234, %v4248
    %v4283 = vsub.f32 %v4235, %v4251
    %v4284 = vsub.f32 %v4236, %v4254
    %v4285 = vsub.f32 %v4237, %v4257
    %v4286 = vsub.f32 %v4238, %v4260
    %v4287 = vsub.f32 %v4239, %v4263
    %v4288 = vsub.f32 %v4240, %v4266
    %v4289 = vsub.f32 %v4241, %v4269
    %v4290 = vsub.f32 %v4242, %v4272
    %v4291 = vsub.f32 %v4243, %v4275
    %v4292 = vsub.f32 %v4244, %v4278
    %v4293 = vsub.f32 %v4245, %v4281
    %v4294 = vmul.f32 %v4282, 1.442695
    %v4295 = vpow.pop %v4294
    %v4296 = vmul.f32 %v4283, 1.442695
    %v4297 = vpow.pop %v4296
    %v4298 = vmul.f32 %v4284, 1.442695
    %v4299 = vpow.pop %v4298
    %v4300 = vmul.f32 %v4285, 1.442695
    %v4301 = vpow.pop %v4300
    %v4302 = vmul.f32 %v4286, 1.442695
    %v4303 = vpow.pop %v4302
    %v4304 = vmul.f32 %v4287, 1.442695
    %v4305 = vpow.pop %v4304
    %v4306 = vmul.f32 %v4288, 1.442695
    %v4307 = vpow.pop %v4306
    %v4308 = vmul.f32 %v4289, 1.442695
    %v4309 = vpow.pop %v4308
    %v4310 = vmul.f32 %v4290, 1.442695
    %v4311 = vpow.pop %v4310
    %v4312 = vmul.f32 %v4291, 1.442695
    %v4313 = vpow.pop %v4312
    %v4314 = vmul.f32 %v4292, 1.442695
    %v4315 = vpow.pop %v4314
    %v4316 = vmul.f32 %v4293, 1.442695
    %v4317 = vpow.pop %v4316
    %v4318 = vsel %vm251, %v4295, 0.0
    %4319 = vadd.xlane.f32.xlu0 %v4318
    %v4320 = vpop.xlane.xlu0 %4319
    %v4321 = vsel %vm251, %v4297, 0.0
    %4322 = vadd.xlane.f32.xlu0 %v4321
    %v4323 = vpop.xlane.xlu0 %4322
    %v4324 = vsel %vm251, %v4299, 0.0
    %4325 = vadd.xlane.f32.xlu0 %v4324
    %v4326 = vpop.xlane.xlu0 %4325
    %v4327 = vsel %vm251, %v4301, 0.0
    %4328 = vadd.xlane.f32.xlu0 %v4327
    %v4329 = vpop.xlane.xlu0 %4328
    %v4330 = vsel %vm251, %v4303, 0.0
    %4331 = vadd.xlane.f32.xlu0 %v4330
    %v4332 = vpop.xlane.xlu0 %4331
    %v4333 = vsel %vm251, %v4305, 0.0
    %4334 = vadd.xlane.f32.xlu0 %v4333
    %v4335 = vpop.xlane.xlu0 %4334
    %v4336 = vsel %vm251, %v4307, 0.0
    %4337 = vadd.xlane.f32.xlu0 %v4336
    %v4338 = vpop.xlane.xlu0 %4337
    %v4339 = vsel %vm251, %v4309, 0.0
    %4340 = vadd.xlane.f32.xlu0 %v4339
    %v4341 = vpop.xlane.xlu0 %4340
    %v4342 = vsel %vm251, %v4311, 0.0
    %4343 = vadd.xlane.f32.xlu0 %v4342
    %v4344 = vpop.xlane.xlu0 %4343
    %v4345 = vsel %vm251, %v4313, 0.0
    %4346 = vadd.xlane.f32.xlu0 %v4345
    %v4347 = vpop.xlane.xlu0 %4346
    %v4348 = vsel %vm251, %v4315, 0.0
    %4349 = vadd.xlane.f32.xlu0 %v4348
    %v4350 = vpop.xlane.xlu0 %4349
    %v4351 = vsel %vm251, %v4317, 0.0
    %4352 = vadd.xlane.f32.xlu0 %v4351
    %v4353 = vpop.xlane.xlu0 %4352
    %v4354 = vmul.f32 %v4295, %v288
    %v4355 = vmul.f32 %v4297, %v289
    %v4356 = vmul.f32 %v4299, %v290
    %v4357 = vmul.f32 %v4301, %v288
    %v4358 = vmul.f32 %v4303, %v289
    %v4359 = vmul.f32 %v4305, %v290
    %v4360 = vmul.f32 %v4307, %v288
    %v4361 = vmul.f32 %v4309, %v289
    %v4362 = vmul.f32 %v4311, %v290
    %v4363 = vmul.f32 %v4313, %v288
    %v4364 = vmul.f32 %v4315, %v289
    %v4365 = vmul.f32 %v4317, %v290
    %v4366 = vrcp.pop %v4320
    %v4367 = vrcp.pop %v4323
    %v4368 = vrcp.pop %v4326
    %v4369 = vrcp.pop %v4329
    %v4370 = vrcp.pop %v4332
    %v4371 = vrcp.pop %v4335
    %v4372 = vrcp.pop %v4338
    %v4373 = vrcp.pop %v4341
    %v4374 = vrcp.pop %v4344
    %v4375 = vrcp.pop %v4347
    %v4376 = vrcp.pop %v4350
    %v4377 = vrcp.pop %v4353
    %v4378 = vpack.c.bf16 %v4355, %v4354
    %v4379 = vpack.c.bf16 %v4356, %v4356
    %v4381 = vsel %vm251, %v4378, 0
    %v4384 = vsel %vm251, %v4379, 0
    %4386 = vmatprep.subr.bf16.mxu0 0
    %4387 = vmatpush1.bf16.msra.mxu0 0
    %4388 = vmatprep.subr.bf16.mxu0 0
    %4389 = vmatpush1.bf16.msra.mxu0 0
    %4390 = vmatprep.subr.bf16.mxu0 0
    %4391 = vmatpush1.bf16.msra.mxu0 0
    %4392 = vmatprep.subr.bf16.mxu0 0
    %4393 = vmatpush1.bf16.msra.mxu0 0
    %4394 = vmatprep.subr.bf16.mxu0 0
    %4395 = vmatpush1.bf16.msra.mxu0 0
    %4396 = vmatprep.subr.bf16.mxu0 0
    %4397 = vmatpush1.bf16.msra.mxu0 0
    %4398 = vmatprep.subr.bf16.mxu0 0
    %4399 = vmatpush1.bf16.msra.mxu0 %v3755
    %4400 = vmatprep.subr.bf16.mxu0 0
    %4401 = vmatpush1.bf16.msra.mxu0 %v3749
    %4402 = vmatprep.subr.bf16.mxu0 0
    %4403 = vmatpush2.bf16.msra.mxu0 0
    %4404 = vmatprep.subr.bf16.mxu0 0
    %4405 = vmatpush2.bf16.msra.mxu0 0
    %4406 = vmatprep.subr.bf16.mxu0 0
    %4407 = vmatpush2.bf16.msra.mxu0 0
    %4408 = vmatprep.subr.bf16.mxu0 0
    %4409 = vmatpush2.bf16.msra.mxu0 0
    %4410 = vmatprep.subr.bf16.mxu0 0
    %4411 = vmatpush2.bf16.msra.mxu0 0
    %4412 = vmatprep.subr.bf16.mxu0 0
    %4413 = vmatpush2.bf16.msra.mxu0 0
    %4414 = vmatprep.subr.bf16.mxu0 0
    %4415 = vmatpush2.bf16.msra.mxu0 0
    %4416 = vmatprep.subr.bf16.mxu0 0
    %4417 = vmatpush2.bf16.msra.mxu0 0
    %4418 = vmatprep.mubr.bf16.mxu0 0
    %4419 = vmatmul.mubr.bf16.gmra.mxu0 %v4381
    %v4420 = vpop.f32.mrf.mxu0
    %v4421 = vadd.f32 0.0, %v4420
    %v4422 = vpop.f32.mrf.mxu0
    %v4423 = vpop.f32.mrf.mxu0
    %v4424 = vadd.f32 0.0, %v4423
    %v4425 = vpop.f32.mrf.mxu0
    %4426 = vmatprep.mubr.bf16.mxu0 0
    %4427 = vmatmul.mubr.bf16.gmra.mxu0 %v4384
    %v4428 = vpop.f32.mrf.mxu0
    %v4429 = vadd.f32 0.0, %v4428
    %v4430 = vpop.f32.mrf.mxu0
    %v4431 = vpop.f32.mrf.mxu0
    %v4432 = vpop.f32.mrf.mxu0
    %4433 = vdwg.mxu0
    %v4434 = vmul.f32 %v4421, %v4366
    %v4435 = vmul.f32 %v4424, %v4367
    %v4436 = vmul.f32 %v4429, %v4368
    %v4437 = vpack.c.bf16 %v4358, %v4357
    %v4438 = vpack.c.bf16 %v4359, %v4359
    %v4440 = vsel %vm251, %v4437, 0
    %v4443 = vsel %vm251, %v4438, 0
    %4445 = vmatprep.subr.bf16.mxu0 0
    %4446 = vmatpush1.bf16.msra.mxu0 0
    %4447 = vmatprep.subr.bf16.mxu0 0
    %4448 = vmatpush1.bf16.msra.mxu0 0
    %4449 = vmatprep.subr.bf16.mxu0 0
    %4450 = vmatpush1.bf16.msra.mxu0 0
    %4451 = vmatprep.subr.bf16.mxu0 0
    %4452 = vmatpush1.bf16.msra.mxu0 0
    %4453 = vmatprep.subr.bf16.mxu0 0
    %4454 = vmatpush1.bf16.msra.mxu0 0
    %4455 = vmatprep.subr.bf16.mxu0 0
    %4456 = vmatpush1.bf16.msra.mxu0 0
    %4457 = vmatprep.subr.bf16.mxu0 0
    %4458 = vmatpush1.bf16.msra.mxu0 %v3812
    %4459 = vmatprep.subr.bf16.mxu0 0
    %4460 = vmatpush1.bf16.msra.mxu0 %v3804
    %4461 = vmatprep.subr.bf16.mxu0 0
    %4462 = vmatpush2.bf16.msra.mxu0 0
    %4463 = vmatprep.subr.bf16.mxu0 0
    %4464 = vmatpush2.bf16.msra.mxu0 0
    %4465 = vmatprep.subr.bf16.mxu0 0
    %4466 = vmatpush2.bf16.msra.mxu0 0
    %4467 = vmatprep.subr.bf16.mxu0 0
    %4468 = vmatpush2.bf16.msra.mxu0 0
    %4469 = vmatprep.subr.bf16.mxu0 0
    %4470 = vmatpush2.bf16.msra.mxu0 0
    %4471 = vmatprep.subr.bf16.mxu0 0
    %4472 = vmatpush2.bf16.msra.mxu0 0
    %4473 = vmatprep.subr.bf16.mxu0 0
    %4474 = vmatpush2.bf16.msra.mxu0 0
    %4475 = vmatprep.subr.bf16.mxu0 0
    %4476 = vmatpush2.bf16.msra.mxu0 0
    %4477 = vmatprep.mubr.bf16.mxu0 0
    %4478 = vmatmul.mubr.bf16.gmra.mxu0 %v4440
    %v4479 = vpop.f32.mrf.mxu0
    %v4480 = vadd.f32 0.0, %v4479
    %v4481 = vpop.f32.mrf.mxu0
    %v4482 = vpop.f32.mrf.mxu0
    %v4483 = vadd.f32 0.0, %v4482
    %v4484 = vpop.f32.mrf.mxu0
    %4485 = vmatprep.mubr.bf16.mxu0 0
    %4486 = vmatmul.mubr.bf16.gmra.mxu0 %v4443
    %v4487 = vpop.f32.mrf.mxu0
    %v4488 = vadd.f32 0.0, %v4487
    %v4489 = vpop.f32.mrf.mxu0
    %v4490 = vpop.f32.mrf.mxu0
    %v4491 = vpop.f32.mrf.mxu0
    %4492 = vdwg.mxu0
    %v4493 = vmul.f32 %v4480, %v4369
    %v4494 = vmul.f32 %v4483, %v4370
    %v4495 = vmul.f32 %v4488, %v4371
    %v4496 = vpack.c.bf16 %v4361, %v4360
    %v4497 = vpack.c.bf16 %v4362, %v4362
    %v4499 = vsel %vm251, %v4496, 0
    %v4502 = vsel %vm251, %v4497, 0
    %4504 = vmatprep.subr.bf16.mxu0 0
    %4505 = vmatpush1.bf16.msra.mxu0 0
    %4506 = vmatprep.subr.bf16.mxu0 0
    %4507 = vmatpush1.bf16.msra.mxu0 0
    %4508 = vmatprep.subr.bf16.mxu0 0
    %4509 = vmatpush1.bf16.msra.mxu0 0
    %4510 = vmatprep.subr.bf16.mxu0 0
    %4511 = vmatpush1.bf16.msra.mxu0 0
    %4512 = vmatprep.subr.bf16.mxu0 0
    %4513 = vmatpush1.bf16.msra.mxu0 0
    %4514 = vmatprep.subr.bf16.mxu0 0
    %4515 = vmatpush1.bf16.msra.mxu0 0
    %4516 = vmatprep.subr.bf16.mxu0 0
    %4517 = vmatpush1.bf16.msra.mxu0 %v3867
    %4518 = vmatprep.subr.bf16.mxu0 0
    %4519 = vmatpush1.bf16.msra.mxu0 %v3859
    %4520 = vmatprep.subr.bf16.mxu0 0
    %4521 = vmatpush2.bf16.msra.mxu0 0
    %4522 = vmatprep.subr.bf16.mxu0 0
    %4523 = vmatpush2.bf16.msra.mxu0 0
    %4524 = vmatprep.subr.bf16.mxu0 0
    %4525 = vmatpush2.bf16.msra.mxu0 0
    %4526 = vmatprep.subr.bf16.mxu0 0
    %4527 = vmatpush2.bf16.msra.mxu0 0
    %4528 = vmatprep.subr.bf16.mxu0 0
    %4529 = vmatpush2.bf16.msra.mxu0 0
    %4530 = vmatprep.subr.bf16.mxu0 0
    %4531 = vmatpush2.bf16.msra.mxu0 0
    %4532 = vmatprep.subr.bf16.mxu0 0
    %4533 = vmatpush2.bf16.msra.mxu0 0
    %4534 = vmatprep.subr.bf16.mxu0 0
    %4535 = vmatpush2.bf16.msra.mxu0 0
    %4536 = vmatprep.mubr.bf16.mxu0 0
    %4537 = vmatmul.mubr.bf16.gmra.mxu0 %v4499
    %v4538 = vpop.f32.mrf.mxu0
    %v4539 = vadd.f32 0.0, %v4538
    %v4540 = vpop.f32.mrf.mxu0
    %v4541 = vpop.f32.mrf.mxu0
    %v4542 = vadd.f32 0.0, %v4541
    %v4543 = vpop.f32.mrf.mxu0
    %4544 = vmatprep.mubr.bf16.mxu0 0
    %4545 = vmatmul.mubr.bf16.gmra.mxu0 %v4502
    %v4546 = vpop.f32.mrf.mxu0
    %v4547 = vadd.f32 0.0, %v4546
    %v4548 = vpop.f32.mrf.mxu0
    %v4549 = vpop.f32.mrf.mxu0
    %v4550 = vpop.f32.mrf.mxu0
    %4551 = vdwg.mxu0
    %v4552 = vmul.f32 %v4539, %v4372
    %v4553 = vmul.f32 %v4542, %v4373
    %v4554 = vmul.f32 %v4547, %v4374
    %v4555 = vpack.c.bf16 %v4364, %v4363
    %v4556 = vpack.c.bf16 %v4365, %v4365
    %v4558 = vsel %vm251, %v4555, 0
    %v4561 = vsel %vm251, %v4556, 0
    %4563 = vmatprep.subr.bf16.mxu0 0
    %4564 = vmatpush1.bf16.msra.mxu0 0
    %4565 = vmatprep.subr.bf16.mxu0 0
    %4566 = vmatpush1.bf16.msra.mxu0 0
    %4567 = vmatprep.subr.bf16.mxu0 0
    %4568 = vmatpush1.bf16.msra.mxu0 0
    %4569 = vmatprep.subr.bf16.mxu0 0
    %4570 = vmatpush1.bf16.msra.mxu0 0
    %4571 = vmatprep.subr.bf16.mxu0 0
    %4572 = vmatpush1.bf16.msra.mxu0 0
    %4573 = vmatprep.subr.bf16.mxu0 0
    %4574 = vmatpush1.bf16.msra.mxu0 0
    %4575 = vmatprep.subr.bf16.mxu0 0
    %4576 = vmatpush1.bf16.msra.mxu0 %v3922
    %4577 = vmatprep.subr.bf16.mxu0 0
    %4578 = vmatpush1.bf16.msra.mxu0 %v3914
    %4579 = vmatprep.subr.bf16.mxu0 0
    %4580 = vmatpush2.bf16.msra.mxu0 0
    %4581 = vmatprep.subr.bf16.mxu0 0
    %4582 = vmatpush2.bf16.msra.mxu0 0
    %4583 = vmatprep.subr.bf16.mxu0 0
    %4584 = vmatpush2.bf16.msra.mxu0 0
    %4585 = vmatprep.subr.bf16.mxu0 0
    %4586 = vmatpush2.bf16.msra.mxu0 0
    %4587 = vmatprep.subr.bf16.mxu0 0
    %4588 = vmatpush2.bf16.msra.mxu0 0
    %4589 = vmatprep.subr.bf16.mxu0 0
    %4590 = vmatpush2.bf16.msra.mxu0 0
    %4591 = vmatprep.subr.bf16.mxu0 0
    %4592 = vmatpush2.bf16.msra.mxu0 0
    %4593 = vmatprep.subr.bf16.mxu0 0
    %4594 = vmatpush2.bf16.msra.mxu0 0
    %4595 = vmatprep.mubr.bf16.mxu0 0
    %4596 = vmatmul.mubr.bf16.gmra.mxu0 %v4558
    %v4597 = vpop.f32.mrf.mxu0
    %v4598 = vadd.f32 0.0, %v4597
    %v4599 = vpop.f32.mrf.mxu0
    %v4600 = vpop.f32.mrf.mxu0
    %v4601 = vadd.f32 0.0, %v4600
    %v4602 = vpop.f32.mrf.mxu0
    %4603 = vmatprep.mubr.bf16.mxu0 0
    %4604 = vmatmul.mubr.bf16.gmra.mxu0 %v4561
    %v4605 = vpop.f32.mrf.mxu0
    %v4606 = vadd.f32 0.0, %v4605
    %v4607 = vpop.f32.mrf.mxu0
    %v4608 = vpop.f32.mrf.mxu0
    %v4609 = vpop.f32.mrf.mxu0
    %4610 = vdwg.mxu0
    %v4611 = vmul.f32 %v4598, %v4375
    %v4612 = vmul.f32 %v4601, %v4376
    %v4613 = vmul.f32 %v4606, %v4377
    %4617 = vrot.lane.b32.xlu0 %v4493, 8
    %v4618 = vpop.permute.xlu0 %4617
    %4619 = vrot.lane.b32.xlu0 %v4494, 8
    %v4620 = vpop.permute.xlu0 %4619
    %4621 = vrot.lane.b32.xlu0 %v4495, 8
    %v4622 = vpop.permute.xlu0 %4621
    %4629 = vrot.lane.b32.xlu0 %v4552, 16
    %v4630 = vpop.permute.xlu0 %4629
    %4631 = vrot.lane.b32.xlu0 %v4553, 16
    %v4632 = vpop.permute.xlu0 %4631
    %4633 = vrot.lane.b32.xlu0 %v4554, 16
    %v4634 = vpop.permute.xlu0 %4633
    %4641 = vrot.lane.b32.xlu0 %v4611, 24
    %v4642 = vpop.permute.xlu0 %4641
    %4643 = vrot.lane.b32.xlu0 %v4612, 24
    %v4644 = vpop.permute.xlu0 %4643
    %4645 = vrot.lane.b32.xlu0 %v4613, 24
    %v4646 = vpop.permute.xlu0 %4645
    %v4650 = vsel %vm1124, %v4434, %v4618
    %v4651 = vsel %vm1124, %v4435, %v4620
    %v4652 = vsel %vm1124, %v4436, %v4622
    %v4653 = vsel %vm226, %v4650, %v4630
    %v4654 = vsel %vm226, %v4651, %v4632
    %v4655 = vsel %vm226, %v4652, %v4634
    %v4656 = vsel %vm251, %v4653, %v4642
    %v4657 = vsel %vm251, %v4654, %v4644
    %v4658 = vsel %vm251, %v4655, %v4646
    %v4659 = vmax.f32 %v4656, 0.0
    %v4660 = vmax.f32 %v4657, 0.0
    %v4661 = vmax.f32 %v4658, 0.0
    %v4662 = vld [vmem:[%s16] sm:$0xf]
    %v4663 = vld [vmem:[%s16 + $0x4] sm:$0xf]
    %v4664 = vld [vmem:[%s16 + $0x8] sm:$0xf]
    %v4665 = vld [vmem:[%s16 + $0xc] sm:$0xf]
    %v4666 = vld [vmem:[%s17] sm:$0x1]
    %v4667 = vld [vmem:[%s18] sm:$0x1]
    %v4668 = vpack.c.bf16 %v3998, %v3997
    %v4670 = vlaneseq
    %v4671 = vshrl.u32 %v4670, 7
    %v4672 = vsub.s32 0, %v4671
    %v4673 = vrot.slane %v4666, %v4672
    %v4679 = vunpack.c.l.b16 %v4662
    %v4680 = vunpack.c.l.b16 %v4663
    %v4681 = vunpack.c.l.b16 %v4664
    %v4682 = vunpack.c.l.b16 %v4665
    %v4683 = vpack.c.b16 %v4680, %v4679
    %v4684 = vpack.c.b16 %v4682, %v4681
    %v4688 = vsel %vm324, %v4668, 0
    %4690 = vmatprep.subr.bf16.mxu0 0
    %4691 = vmatpush1.bf16.msra.mxu0 0
    %4692 = vmatprep.subr.bf16.mxu0 0
    %4693 = vmatpush1.bf16.msra.mxu0 0
    %4694 = vmatprep.subr.bf16.mxu0 0
    %4695 = vmatpush1.bf16.msra.mxu0 0
    %4696 = vmatprep.subr.bf16.mxu0 0
    %4697 = vmatpush1.bf16.msra.mxu0 0
    %4698 = vmatprep.subr.bf16.mxu0 0
    %4699 = vmatpush1.bf16.msra.mxu0 0
    %4700 = vmatprep.subr.bf16.mxu0 0
    %4701 = vmatpush1.bf16.msra.mxu0 0
    %4702 = vmatprep.subr.bf16.mxu0 0
    %4703 = vmatpush1.bf16.msra.mxu0 %v4684
    %4704 = vmatprep.subr.bf16.mxu0 0
    %4705 = vmatpush1.bf16.msra.mxu0 %v4683
    %4706 = vmatprep.subr.bf16.mxu0 0
    %4707 = vmatpush2.bf16.msra.mxu0 0
    %4708 = vmatprep.subr.bf16.mxu0 0
    %4709 = vmatpush2.bf16.msra.mxu0 0
    %4710 = vmatprep.subr.bf16.mxu0 0
    %4711 = vmatpush2.bf16.msra.mxu0 0
    %4712 = vmatprep.subr.bf16.mxu0 0
    %4713 = vmatpush2.bf16.msra.mxu0 0
    %4714 = vmatprep.subr.bf16.mxu0 0
    %4715 = vmatpush2.bf16.msra.mxu0 0
    %4716 = vmatprep.subr.bf16.mxu0 0
    %4717 = vmatpush2.bf16.msra.mxu0 0
    %4718 = vmatprep.subr.bf16.mxu0 0
    %4719 = vmatpush2.bf16.msra.mxu0 0
    %4720 = vmatprep.subr.bf16.mxu0 0
    %4721 = vmatpush2.bf16.msra.mxu0 0
    %4722 = vmatprep.mubr.bf16.mxu0 0
    %4723 = vmatmul.mubr.bf16.gmra.mxu0 %v4688
    %v4724 = vpop.f32.mrf.mxu0
    %v4725 = vadd.f32 %v4673, %v4724
    %v4726 = vpop.f32.mrf.mxu0
    %v4727 = vpop.f32.mrf.mxu0
    %v4728 = vadd.f32 %v4673, %v4727
    %v4729 = vpop.f32.mrf.mxu0
    %4730 = vdwg.mxu0
    %v4731 = vtanh.pop %v4725
    %v4732 = vtanh.pop %v4728
    %v4733 = vmul.f32 %v4731, %v2436
    %v4734 = vmul.f32 %v4732, %v2437
    %v4735 = vsel %vm324, %v4733, 0.0
    %v4736 = vsel %vm324, %v4734, 0.0
    %v4737 = vadd.f32 %v4735, %v4736
    %v4738 = vrot.slane %v4737, 4
    %v4739 = vadd.f32 %v4737, %v4738
    %v4740 = vrot.slane %v4739, 2
    %v4741 = vadd.f32 %v4739, %v4740
    %v4742 = vrot.slane %v4741, 1
    %v4743 = vadd.f32 %v4741, %v4742
    %v4744 = vmul.f32 %v4743, 0.0625
    %v4745 = vmul.f32 %v4667, %v4744
    %v4746 = vsel %vm2451, %v4745, 0.0
    %4747 = vadd.xlane.f32.xlu0 %v4746
    %v4748 = vpop.xlane.xlu0 %4747
    %v4749 = vrot.slane %v4748, 4
    %v4750 = vadd.f32 %v4748, %v4749
    %v4751 = vrot.slane %v4750, 2
    %v4752 = vadd.f32 %v4750, %v4751
    %v4753 = vrot.slane %v4752, 1
    %v4754 = vadd.f32 %v4752, %v4753
    %s4755 = vtos %v4754
    %v4756 = vstv %s4755
    %v4757 = vsub.f32 %v4756, %v4756
    %v4758 = vmul.f32 %v4757, 1.442695
    %v4759 = vpow.pop %v4758
    %v4760 = vrcp.pop %v4759
    %v4761 = vmul.f32 %v4759, %v4760
    %v4762 = vmul.f32 %v4761, %v3997
    %v4763 = vmul.f32 %v4761, %v3998
    %v4764 = vpack.c.bf16 %v3450, %v3449
    %v4765 = vpack.c.bf16 %v4659, %v3451
    %v4766 = vpack.c.bf16 %v4661, %v4660
    %v4768 = vsel %vm324, %v4764, 0
    %v4771 = vsel %vm324, %v4765, 0
    %v4774 = vsel %vm324, %v4766, 0
    %4776 = vmatprep.subr.bf16.mxu0 0
    %4777 = vmatpush1.bf16.msra.mxu0 0
    %4778 = vmatprep.subr.bf16.mxu0 0
    %4779 = vmatpush1.bf16.msra.mxu0 0
    %4780 = vmatprep.subr.bf16.mxu0 0
    %4781 = vmatpush1.bf16.msra.mxu0 0
    %4782 = vmatprep.subr.bf16.mxu0 0
    %4783 = vmatpush1.bf16.msra.mxu0 0
    %4784 = vmatprep.subr.bf16.mxu0 0
    %4785 = vmatpush1.bf16.msra.mxu0 0
    %4786 = vmatprep.subr.bf16.mxu0 0
    %4787 = vmatpush1.bf16.msra.mxu0 0
    %4788 = vmatprep.subr.bf16.mxu0 0
    %4789 = vmatpush1.bf16.msra.mxu0 %v4684
    %4790 = vmatprep.subr.bf16.mxu0 0
    %4791 = vmatpush1.bf16.msra.mxu0 %v4683
    %4792 = vmatprep.subr.bf16.mxu0 0
    %4793 = vmatpush2.bf16.msra.mxu0 0
    %4794 = vmatprep.subr.bf16.mxu0 0
    %4795 = vmatpush2.bf16.msra.mxu0 0
    %4796 = vmatprep.subr.bf16.mxu0 0
    %4797 = vmatpush2.bf16.msra.mxu0 0
    %4798 = vmatprep.subr.bf16.mxu0 0
    %4799 = vmatpush2.bf16.msra.mxu0 0
    %4800 = vmatprep.subr.bf16.mxu0 0
    %4801 = vmatpush2.bf16.msra.mxu0 0
    %4802 = vmatprep.subr.bf16.mxu0 0
    %4803 = vmatpush2.bf16.msra.mxu0 0
    %4804 = vmatprep.subr.bf16.mxu0 0
    %4805 = vmatpush2.bf16.msra.mxu0 0
    %4806 = vmatprep.subr.bf16.mxu0 0
    %4807 = vmatpush2.bf16.msra.mxu0 0
    %4808 = vmatprep.mubr.bf16.mxu0 0
    %4809 = vmatmul.mubr.bf16.gmra.mxu0 %v4768
    %v4810 = vpop.f32.mrf.mxu0
    %v4811 = vadd.f32 %v4673, %v4810
    %v4812 = vpop.f32.mrf.mxu0
    %v4813 = vpop.f32.mrf.mxu0
    %v4814 = vadd.f32 %v4673, %v4813
    %v4815 = vpop.f32.mrf.mxu0
    %4816 = vmatprep.mubr.bf16.mxu0 0
    %4817 = vmatmul.mubr.bf16.gmra.mxu0 %v4771
    %v4818 = vpop.f32.mrf.mxu0
    %v4819 = vadd.f32 %v4673, %v4818
    %v4820 = vpop.f32.mrf.mxu0
    %v4821 = vpop.f32.mrf.mxu0
    %v4822 = vadd.f32 %v4673, %v4821
    %v4823 = vpop.f32.mrf.mxu0
    %4824 = vmatprep.mubr.bf16.mxu0 0
    %4825 = vmatmul.mubr.bf16.gmra.mxu0 %v4774
    %v4826 = vpop.f32.mrf.mxu0
    %v4827 = vadd.f32 %v4673, %v4826
    %v4828 = vpop.f32.mrf.mxu0
    %v4829 = vpop.f32.mrf.mxu0
    %v4830 = vadd.f32 %v4673, %v4829
    %v4831 = vpop.f32.mrf.mxu0
    %4832 = vdwg.mxu0
    %v4833 = vtanh.pop %v4811
    %v4834 = vtanh.pop %v4814
    %v4835 = vtanh.pop %v4819
    %v4836 = vtanh.pop %v4822
    %v4837 = vtanh.pop %v4827
    %v4838 = vtanh.pop %v4830
    %v4839 = vmul.f32 %v4833, %v2552
    %v4840 = vmul.f32 %v4834, %v2553
    %v4841 = vmul.f32 %v4835, %v2554
    %v4842 = vsel %vm324, %v4839, 0.0
    %v4843 = vsel %vm324, %v4840, 0.0
    %v4844 = vadd.f32 %v4842, %v4843
    %v4845 = vsel %vm324, %v4841, 0.0
    %v4846 = vadd.f32 %v4844, %v4845
    %v4847 = vrot.slane %v4846, 4
    %v4848 = vadd.f32 %v4846, %v4847
    %v4849 = vrot.slane %v4848, 2
    %v4850 = vadd.f32 %v4848, %v4849
    %v4851 = vrot.slane %v4850, 1
    %v4852 = vadd.f32 %v4850, %v4851
    %v4853 = vmul.f32 %v4852, 0.041666668
    %v4854 = vmul.f32 %v4667, %v4853
    %v4855 = vsel %vm2451, %v4854, 0.0
    %4856 = vadd.xlane.f32.xlu0 %v4855
    %v4857 = vpop.xlane.xlu0 %4856
    %v4858 = vrot.slane %v4857, 4
    %v4859 = vadd.f32 %v4857, %v4858
    %v4860 = vrot.slane %v4859, 2
    %v4861 = vadd.f32 %v4859, %v4860
    %v4862 = vrot.slane %v4861, 1
    %v4863 = vadd.f32 %v4861, %v4862
    %s4864 = vtos %v4863
    %v4865 = vstv %s4864
    %v4866 = vmul.f32 %v4836, %v2552
    %v4867 = vmul.f32 %v4837, %v2553
    %v4868 = vmul.f32 %v4838, %v2554
    %v4869 = vsel %vm324, %v4866, 0.0
    %v4870 = vsel %vm324, %v4867, 0.0
    %v4871 = vadd.f32 %v4869, %v4870
    %v4872 = vsel %vm324, %v4868, 0.0
    %v4873 = vadd.f32 %v4871, %v4872
    %v4874 = vrot.slane %v4873, 4
    %v4875 = vadd.f32 %v4873, %v4874
    %v4876 = vrot.slane %v4875, 2
    %v4877 = vadd.f32 %v4875, %v4876
    %v4878 = vrot.slane %v4877, 1
    %v4879 = vadd.f32 %v4877, %v4878
    %v4880 = vmul.f32 %v4879, 0.041666668
    %v4881 = vmul.f32 %v4667, %v4880
    %v4882 = vsel %vm2451, %v4881, 0.0
    %4883 = vadd.xlane.f32.xlu0 %v4882
    %v4884 = vpop.xlane.xlu0 %4883
    %v4885 = vrot.slane %v4884, 4
    %v4886 = vadd.f32 %v4884, %v4885
    %v4887 = vrot.slane %v4886, 2
    %v4888 = vadd.f32 %v4886, %v4887
    %v4889 = vrot.slane %v4888, 1
    %v4890 = vadd.f32 %v4888, %v4889
    %s4891 = vtos %v4890
    %v4892 = vstv %s4891
    %v4893 = vmax.f32 %v4865, %v4892
    %v4894 = vsub.f32 %v4865, %v4893
    %v4895 = vmul.f32 %v4894, 1.442695
    %v4896 = vpow.pop %v4895
    %v4897 = vsub.f32 %v4892, %v4893
    %v4898 = vmul.f32 %v4897, 1.442695
    %v4899 = vpow.pop %v4898
    %v4900 = vadd.f32 %v4896, %v4899
    %v4901 = vrcp.pop %v4900
    %v4902 = vmul.f32 %v4896, %v4901
    %v4903 = vmul.f32 %v4902, %v3449
    %v4904 = vmul.f32 %v4902, %v3450
    %v4905 = vmul.f32 %v4902, %v3451
    %v4906 = vmul.f32 %v4899, %v4901
    %v4907 = vmul.f32 %v4906, %v4659
    %v4908 = vmul.f32 %v4906, %v4660
    %v4909 = vmul.f32 %v4906, %v4661
    %v4910 = vadd.f32 %v4903, %v4907
    %v4911 = vadd.f32 %v4904, %v4908
    %v4912 = vadd.f32 %v4905, %v4909
    %4916 = vrot.lane.b32.xlu0 %v4910, 32
    %v4917 = vpop.permute.xlu0 %4916
    %4918 = vrot.lane.b32.xlu0 %v4911, 32
    %v4919 = vpop.permute.xlu0 %4918
    %4920 = vrot.lane.b32.xlu0 %v4912, 32
    %v4921 = vpop.permute.xlu0 %4920
    %v4925 = vsel %vm324, %v4762, %v4917
    %v4926 = vsel %vm324, %v4763, %v4919
    %v4927 = vsel %vm324, 0.0, %v4921
    %vm4928 = vcmask 523264
    %4929 = vst.msk [vmem:[#allocation22] sm:$0xff] %vm4928, %v4925
    %4930 = vst.msk [vmem:[#allocation22 + $0x8] sm:$0xff] %vm4928, %v4926
    %4931 = vst.msk [vmem:[#allocation22 + $0x10] sm:$0xff] %vm4928, %v4927
    // Predicated region
    $region126: #{tpu_custom_call.1} parent=1 // pred_check
      _
    $region127: #{tpu_custom_call.1} parent=1 // pred_check_branch
      %4933 = sbr.rel (0) target = $region129
    $region128: #{tpu_custom_call.1} parent=1 // pred_region
      %s4935 = ssub.s32 384, 384
      %4936 = vsyncadd [#allocation4], %s4935
      %s4937 = sshll.u32 [#allocation22], 4
      %s4938 = int_to_ptr.vmem [resolvable:$true] %s4937
      %4943 = dma.vmem_to_hbm [thread:$0]  %s4938, 384, %s19, [#allocation4], 128, 128, 8
    $region129: #{tpu_custom_call.1} parent=1 // pred_fallthru
      _
    // Predicated region
    $region130: #{tpu_custom_call.1} parent=1 // pred_check
      _
    $region131: #{tpu_custom_call.1} parent=1 // pred_check_branch
      %4945 = sbr.rel (0) target = $region133
    $region132: #{tpu_custom_call.1} parent=1 // pred_region
      %4946 = dma.done [#allocation4], 384
    $region133: #{tpu_custom_call.1} parent=1 // pred_fallthru
      _
    %4947 = vsyncpa [#allocation3], 1
    %4948 = vsyncpa [#allocation6], 1
    %4949 = vsyncpa [#allocation9], 1
    %4950 = vsyncpa [#allocation12], 1
    %4951 = vsyncpa [#allocation15], 1
    %4952 = vsyncpa [#allocation18], 1
    %4953 = vsyncpa [#allocation21], 1
    %4954 = vsyncpa [#allocation4], 1

</llo_original>
